<compile_context>
chip_gen: v6e
topology: v6e:2x2x1
jax: 0.10.0
libtpu: 0.0.40
codegen_flags: <defaults>
</compile_context>

<pallas_src>
import functools
import math

import jax
import jax.numpy as jnp
from jax.experimental import pallas as pl
from jax.experimental.pallas import tpu as pltpu


# ----------------------------------------------------------------------------
# In-kernel building blocks (operate on traced VMEM-resident values)
# ----------------------------------------------------------------------------
def _conv_nlc(x, w, b, *, stride=1, dilation=1, pad=0, relu_in=False,
              relu_out=False):
    """Conv1d on channels-last x: (B, T, Cin); w: (K*Cin, Cout); b: (1, Cout)."""
    Bn, T, Cin = x.shape
    KCin, Cout = w.shape
    K = KCin // Cin

    if relu_in:
        x = jnp.maximum(x, 0.0)               # relu(0)=0 -> zero padding unaffected

    T_out = (T + 2 * pad - dilation * (K - 1) - 1) // stride + 1
    P = T_out * stride                        # stride-1 rows computed
    right = P + (K - 1) * dilation - pad - T  # extra right zero rows needed

    pieces = []
    if pad > 0:
        pieces.append(jnp.zeros((Bn, pad, Cin), jnp.float32))
    pieces.append(x)
    if right > 0:
        pieces.append(jnp.zeros((Bn, right, Cin), jnp.float32))
    xp = pieces[0] if len(pieces) == 1 else jnp.concatenate(pieces, axis=1)

    # im2col: gather the K (dilated) taps along the channel (lane) axis.
    taps = [xp[:, k * dilation:k * dilation + P, :] for k in range(K)]
    xin = taps[0] if K == 1 else jnp.concatenate(taps, axis=-1)   # (B, P, K*Cin)

    y = jnp.dot(xin.reshape(Bn * P, KCin), w,
                preferred_element_type=jnp.float32)               # (B*P, Cout)
    y = y.reshape(Bn, P, Cout) + b
    if relu_out:
        y = jnp.maximum(y, 0.0)
    if stride > 1:
        # Cheap decimation: keep every `stride`-th row (lane dim unchanged).
        y = y.reshape(Bn, T_out, stride, Cout)[:, :, 0, :]
    return y


def _upsample2_nearest(x):
    """nn.Upsample(scale_factor=2, mode='nearest') on (B, T, C)."""
    Bn, T, C = x.shape
    x2 = jnp.concatenate([x[:, :, None, :], x[:, :, None, :]], axis=2)  # (B,T,2,C)
    return x2.reshape(Bn, 2 * T, C)


# ----------------------------------------------------------------------------
# Fused encoder + VQ + decoder kernel
# ----------------------------------------------------------------------------
def _fused_kernel(x_ref, *refs, treedef, dils, n_params):
    param_refs = refs[:n_params]
    dec_ref, idx_ref, loss_ref, q_ref = refs[n_params:]
    p = jax.tree_util.tree_unflatten(treedef, param_refs)

    def conv(h, cp, **kw):
        return _conv_nlc(h, cp[0][...], cp[1][...], **kw)

    x = x_ref[...]                                        # (B, T, 4)

    # ----- Encoder (T2M-GPT style) -----
    enc = p["enc"]
    h = conv(x, enc["in"], pad=1, relu_out=True)
    for blk in enc["blocks"]:
        h = conv(h, blk["down"], stride=2, pad=1)         # Conv1d(w, w, 4, 2, 1)
        for rp, d in zip(blk["res"], dils):               # ResConv1D blocks
            r = conv(h, rp["c1"], dilation=d, pad=d, relu_in=True)
            r = conv(r, rp["c2"], relu_in=True)
            h = h + r
    x_enc = conv(h, enc["out"], pad=1)                    # (B, Td, D)

    # ----- Vector quantization (eval-mode nearest-code lookup) -----
    Bn, Td, D = x_enc.shape
    cb = p["codebook"][...]                               # (Ncode, D)
    xf = x_enc.reshape(Bn * Td, D)                        # (M, D)
    cbT = cb.T
    dots = jnp.dot(xf, cbT, preferred_element_type=jnp.float32)   # (M, Ncode)
    e2 = jnp.sum(cbT * cbT, axis=0, keepdims=True)                # (1, Ncode)
    dist = e2 - 2.0 * dots        # ||x||^2 dropped: per-row constant for argmin

    iota = jax.lax.broadcasted_iota(jnp.int32, dist.shape, 1)
    minval = jnp.min(dist, axis=-1, keepdims=True)
    idx = jnp.min(jnp.where(dist <= minval, iota, jnp.int32(2 ** 30)),
                  axis=-1, keepdims=True)                 # (M, 1) first argmin
    onehot = (iota == idx).astype(jnp.float32)
    qf = jnp.dot(onehot, cb, preferred_element_type=jnp.float32)  # (M, D)

    idx_ref[...] = idx
    diff = qf - xf
    s = jnp.sum(jnp.sum(diff * diff, axis=1, keepdims=True), axis=0, keepdims=True)
    # TODO(synk): verify commitment-loss normalization/beta against the
    #             reference quantizer (eval-mode lucidrains VQ may return 0).
    loss_ref[...] = s / float(Bn * Td * D)

    x_q = qf.reshape(Bn, Td, D)
    q_ref[...] = x_q

    # ----- Decoder -----
    dec = p["dec"]
    h = conv(x_q, dec["in"], pad=1, relu_out=True)
    for blk in dec["blocks"]:
        for rp, d in zip(blk["res"], dils):
            r = conv(h, rp["c1"], dilation=d, pad=d, relu_in=True)
            r = conv(r, rp["c2"], relu_in=True)
            h = h + r
        h = _upsample2_nearest(h)                         # nn.Upsample(2, nearest)
        h = conv(h, blk["up_conv"], pad=1)
    h = conv(h, dec["mid"], pad=1, relu_out=True)
    dec_ref[...] = conv(h, dec["out"], pad=1)             # (B, T, 4)


def _full_spec(shape):
    zeros = (0,) * len(shape)
    return pl.BlockSpec(shape, lambda *_args, _z=zeros: _z)


# ----------------------------------------------------------------------------
# Parameter construction (deterministic synthetic weights)
# ----------------------------------------------------------------------------
def make_params(key, *, input_dim=4, width=32, code_dim=32, nb_code=64,
                down_t=2, depth=2, dilation_growth_rate=3):
    keys = iter(jax.random.split(key, 256))

    def conv_p(cin, cout, k):
        w = jax.random.normal(next(keys), (k, cin, cout),
                              jnp.float32) / math.sqrt(cin * k)
        b = 0.01 * jax.random.normal(next(keys), (1, cout), jnp.float32)
        return (w.reshape(k * cin, cout), b)              # im2col-ready layout

    def res_blocks():
        return [{"c1": conv_p(width, width, 3), "c2": conv_p(width, width, 1)}
                for _ in range(depth)]

    enc = {"in": conv_p(input_dim, width, 3),
           "blocks": [{"down": conv_p(width, width, 4), "res": res_blocks()}
                      for _ in range(down_t)],
           "out": conv_p(width, code_dim, 3)}

    dec = {"in": conv_p(code_dim, width, 3),
           "blocks": [{"res": res_blocks(), "up_conv": conv_p(width, width, 3)}
                      for _ in range(down_t)],
           "mid": conv_p(width, width, 3),
           "out": conv_p(width, input_dim, 3)}

    codebook = jax.random.normal(next(keys), (nb_code, code_dim), jnp.float32)

    # TODO(synk): dilation ordering follows the T2M-GPT reversed convention for
    #             both encoder and decoder (same as previous accepted version).
    dils = tuple(dilation_growth_rate ** d for d in range(depth))[::-1]
    return {"enc": enc, "dec": dec, "codebook": codebook, "dils": dils}


# ----------------------------------------------------------------------------
# Forward pass (preprocess in plain JAX, one fused Pallas call for the model)
# ----------------------------------------------------------------------------
def quat_to_cos_sin(q):
    # rows [0,0] and [0,2] of quaternion_to_matrix(q)
    r, i, j, k = q[..., 0], q[..., 1], q[..., 2], q[..., 3]
    two_s = 2.0 / jnp.sum(q * q, axis=-1)
    m00 = 1.0 - two_s * (j * j + k * k)
    m02 = two_s * (i * k + j * r)
    return jnp.stack([m00, m02], axis=-1)


def translation_vqvae_forward(params, motion):
    """Eval-mode TranslationVQVAE.forward (mask=None). motion: (B, T, 4+3)."""
    r_rot = motion[..., :4]
    rel_pos = motion[..., 4:]
    if rel_pos.shape[-1] == 3:
        rel_pos = jnp.stack([rel_pos[..., 0], rel_pos[..., 2]], axis=-1)
    r_cs = quat_to_cos_sin(r_rot)
    x = jnp.concatenate([rel_pos, r_cs], axis=-1).astype(jnp.float32)  # (B,T,4)
    # TODO(synk): training-time channel-mask augmentation and the motion-mask
    #             path (max_pool1d downsampled mask) are not exercised here.
    # TODO(synk): quantizer kmeans init / EMA updates / affine params /
    #             stochastic sampling are training-time features; eval path is
    #             a deterministic nearest-code lookup (implemented in-kernel).

    B, T, Cin = x.shape
    down_t = len(params["enc"]["blocks"])
    Td = T // (2 ** down_t)
    D = params["codebook"].shape[1]
    M = B * Td

    arrays = {"enc": params["enc"], "dec": params["dec"],
              "codebook": params["codebook"]}
    leaves, treedef = jax.tree_util.tree_flatten(arrays)

    kernel = functools.partial(_fused_kernel, treedef=treedef,
                               dils=params["dils"], n_params=len(leaves))

    dec_out, idx_out, loss_out, q_out = pl.pallas_call(
        kernel,
        out_shape=(jax.ShapeDtypeStruct((B, T, Cin), jnp.float32),
                   jax.ShapeDtypeStruct((M, 1), jnp.int32),
                   jax.ShapeDtypeStruct((1, 1), jnp.float32),
                   jax.ShapeDtypeStruct((B, Td, D), jnp.float32)),
        in_specs=[_full_spec(x.shape)] + [_full_spec(l.shape) for l in leaves],
        out_specs=(_full_spec((B, T, Cin)), _full_spec((M, 1)),
                   _full_spec((1, 1)), _full_spec((B, Td, D))),
        compiler_params=pltpu.CompilerParams(vmem_limit_bytes=32 * 1024 * 1024),
    )(x, *leaves)

    return {
        "decoded_motion": dec_out,                  # == postprocess(decoder(...))
        "indices": idx_out[:, 0].reshape(B, Td),    # (B, T//4)
        "commit_loss": loss_out[0, 0],              # scalar
        "quantized_motion": q_out,                  # (B, T//4, D)
    }


# ----------------------------------------------------------------------------
if __name__ == "__main__":
    key = jax.random.PRNGKey(0)
    pkey, qkey, rkey = jax.random.split(key, 3)

    # args: motion_dim=4, codebook_size=64, codebook_dim=32,
    #       down_sampling_ratio=4 (-> down_t=stride_t=2), dim=32, depth=2
    params = make_params(pkey, input_dim=4, width=32, code_dim=32, nb_code=64,
                         down_t=2, depth=2, dilation_growth_rate=3)

    B, T = 2, 16
    quat = jax.random.normal(qkey, (B, T, 4), jnp.float32)
    quat = quat / jnp.linalg.norm(quat, axis=-1, keepdims=True)
    rel_pos = jax.random.normal(rkey, (B, T, 3), jnp.float32)
    motion = jnp.concatenate([quat, rel_pos], axis=-1)   # (2, 16, 7)

    fwd = jax.jit(lambda m: translation_vqvae_forward(params, m))
    out = fwd(motion)
    jax.block_until_ready(out)

    assert out["decoded_motion"].shape == (B, T, 4)
    assert out["indices"].shape == (B, T // 4)
    assert out["quantized_motion"].shape == (B, T // 4, 32)
    assert out["commit_loss"].shape == ()
    print("KERNEL_OK")
</pallas_src>

<mosaic_0001>
module attributes {stable_mosaic.version = 11 : i64} {
  func.func @_fused_kernel(%arg0: memref<2x16x4xf32, #tpu.memory_space<vmem>>, %arg1: memref<64x32xf32, #tpu.memory_space<vmem>>, %arg2: memref<96x32xf32, #tpu.memory_space<vmem>>, %arg3: memref<1x32xf32, #tpu.memory_space<vmem>>, %arg4: memref<32x32xf32, #tpu.memory_space<vmem>>, %arg5: memref<1x32xf32, #tpu.memory_space<vmem>>, %arg6: memref<96x32xf32, #tpu.memory_space<vmem>>, %arg7: memref<1x32xf32, #tpu.memory_space<vmem>>, %arg8: memref<32x32xf32, #tpu.memory_space<vmem>>, %arg9: memref<1x32xf32, #tpu.memory_space<vmem>>, %arg10: memref<96x32xf32, #tpu.memory_space<vmem>>, %arg11: memref<1x32xf32, #tpu.memory_space<vmem>>, %arg12: memref<96x32xf32, #tpu.memory_space<vmem>>, %arg13: memref<1x32xf32, #tpu.memory_space<vmem>>, %arg14: memref<32x32xf32, #tpu.memory_space<vmem>>, %arg15: memref<1x32xf32, #tpu.memory_space<vmem>>, %arg16: memref<96x32xf32, #tpu.memory_space<vmem>>, %arg17: memref<1x32xf32, #tpu.memory_space<vmem>>, %arg18: memref<32x32xf32, #tpu.memory_space<vmem>>, %arg19: memref<1x32xf32, #tpu.memory_space<vmem>>, %arg20: memref<96x32xf32, #tpu.memory_space<vmem>>, %arg21: memref<1x32xf32, #tpu.memory_space<vmem>>, %arg22: memref<96x32xf32, #tpu.memory_space<vmem>>, %arg23: memref<1x32xf32, #tpu.memory_space<vmem>>, %arg24: memref<96x32xf32, #tpu.memory_space<vmem>>, %arg25: memref<1x32xf32, #tpu.memory_space<vmem>>, %arg26: memref<96x4xf32, #tpu.memory_space<vmem>>, %arg27: memref<1x4xf32, #tpu.memory_space<vmem>>, %arg28: memref<128x32xf32, #tpu.memory_space<vmem>>, %arg29: memref<1x32xf32, #tpu.memory_space<vmem>>, %arg30: memref<96x32xf32, #tpu.memory_space<vmem>>, %arg31: memref<1x32xf32, #tpu.memory_space<vmem>>, %arg32: memref<32x32xf32, #tpu.memory_space<vmem>>, %arg33: memref<1x32xf32, #tpu.memory_space<vmem>>, %arg34: memref<96x32xf32, #tpu.memory_space<vmem>>, %arg35: memref<1x32xf32, #tpu.memory_space<vmem>>, %arg36: memref<32x32xf32, #tpu.memory_space<vmem>>, %arg37: memref<1x32xf32, #tpu.memory_space<vmem>>, %arg38: memref<128x32xf32, #tpu.memory_space<vmem>>, %arg39: memref<1x32xf32, #tpu.memory_space<vmem>>, %arg40: memref<96x32xf32, #tpu.memory_space<vmem>>, %arg41: memref<1x32xf32, #tpu.memory_space<vmem>>, %arg42: memref<32x32xf32, #tpu.memory_space<vmem>>, %arg43: memref<1x32xf32, #tpu.memory_space<vmem>>, %arg44: memref<96x32xf32, #tpu.memory_space<vmem>>, %arg45: memref<1x32xf32, #tpu.memory_space<vmem>>, %arg46: memref<32x32xf32, #tpu.memory_space<vmem>>, %arg47: memref<1x32xf32, #tpu.memory_space<vmem>>, %arg48: memref<12x32xf32, #tpu.memory_space<vmem>>, %arg49: memref<1x32xf32, #tpu.memory_space<vmem>>, %arg50: memref<96x32xf32, #tpu.memory_space<vmem>>, %arg51: memref<1x32xf32, #tpu.memory_space<vmem>>, %arg52: memref<2x16x4xf32, #tpu.memory_space<vmem>>, %arg53: memref<8x1xi32, #tpu.memory_space<vmem>>, %arg54: memref<1x1xf32, #tpu.memory_space<vmem>>, %arg55: memref<2x4x32xf32, #tpu.memory_space<vmem>>) attributes {dimension_semantics = [], scalar_prefetch = 0 : i64, scratch_operands = 0 : i64, tpu.core_type = #tpu.core_type<tc>} {
    %c0 = arith.constant 0 : index
    %c0_0 = arith.constant 0 : index
    %c0_1 = arith.constant 0 : index
    %0 = vector.load %arg0[%c0, %c0_0, %c0_1] : memref<2x16x4xf32, #tpu.memory_space<vmem>>, vector<2x16x4xf32>
    %c0_2 = arith.constant 0 : index
    %c0_3 = arith.constant 0 : index
    %1 = vector.load %arg48[%c0_2, %c0_3] : memref<12x32xf32, #tpu.memory_space<vmem>>, vector<12x32xf32>
    %c0_4 = arith.constant 0 : index
    %c0_5 = arith.constant 0 : index
    %2 = vector.load %arg49[%c0_4, %c0_5] : memref<1x32xf32, #tpu.memory_space<vmem>>, vector<1x32xf32>
    %cst = arith.constant 0.000000e+00 : f32
    %3 = vector.broadcast %cst : f32 to vector<2x1x4xf32>
    %cst_6 = arith.constant 0.000000e+00 : f32
    %4 = vector.broadcast %cst_6 : f32 to vector<2x1x4xf32>
    %5 = tpu.concatenate %3, %0, %4 in 1 : vector<2x1x4xf32>, vector<2x16x4xf32>, vector<2x1x4xf32> -> vector<2x18x4xf32>
    %6 = vector.extract_strided_slice %5 {offsets = [0, 0, 0], sizes = [2, 16, 4], strides = [1, 1, 1]} : vector<2x18x4xf32> to vector<2x16x4xf32>
    %7 = vector.extract_strided_slice %5 {offsets = [0, 1, 0], sizes = [2, 16, 4], strides = [1, 1, 1]} : vector<2x18x4xf32> to vector<2x16x4xf32>
    %8 = vector.extract_strided_slice %5 {offsets = [0, 2, 0], sizes = [2, 16, 4], strides = [1, 1, 1]} : vector<2x18x4xf32> to vector<2x16x4xf32>
    %9 = tpu.concatenate %6, %7, %8 in 2 : vector<2x16x4xf32>, vector<2x16x4xf32>, vector<2x16x4xf32> -> vector<2x16x12xf32>
    %10 = vector.shape_cast %9 : vector<2x16x12xf32> to vector<32x12xf32>
    %cst_7 = arith.constant dense<0.000000e+00> : vector<32x32xf32>
    %11 = tpu.matmul %10, %1, %cst_7 {dimension_numbers = #tpu.dot_dimension_numbers<[1], [0], [0], [1], [0, 0, 1, 1], [], []>} : vector<32x12xf32>, vector<12x32xf32>, vector<32x32xf32> -> vector<32x32xf32>
    %12 = vector.shape_cast %11 : vector<32x32xf32> to vector<2x16x32xf32>
    %13 = vector.shape_cast %2 : vector<1x32xf32> to vector<1x1x32xf32>
    %14 = vector.broadcast %13 : vector<1x1x32xf32> to vector<2x16x32xf32>
    %15 = arith.addf %12, %14 : vector<2x16x32xf32>
    %cst_8 = arith.constant 0.000000e+00 : f32
    %16 = vector.broadcast %cst_8 : f32 to vector<2x16x32xf32>
    %17 = arith.maximumf %15, %16 : vector<2x16x32xf32>
    %c0_9 = arith.constant 0 : index
    %c0_10 = arith.constant 0 : index
    %18 = vector.load %arg28[%c0_9, %c0_10] : memref<128x32xf32, #tpu.memory_space<vmem>>, vector<128x32xf32>
    %c0_11 = arith.constant 0 : index
    %c0_12 = arith.constant 0 : index
    %19 = vector.load %arg29[%c0_11, %c0_12] : memref<1x32xf32, #tpu.memory_space<vmem>>, vector<1x32xf32>
    %cst_13 = arith.constant 0.000000e+00 : f32
    %20 = vector.broadcast %cst_13 : f32 to vector<2x1x32xf32>
    %cst_14 = arith.constant 0.000000e+00 : f32
    %21 = vector.broadcast %cst_14 : f32 to vector<2x2x32xf32>
    %22 = tpu.concatenate %20, %17, %21 in 1 : vector<2x1x32xf32>, vector<2x16x32xf32>, vector<2x2x32xf32> -> vector<2x19x32xf32>
    %23 = vector.extract_strided_slice %22 {offsets = [0, 0, 0], sizes = [2, 16, 32], strides = [1, 1, 1]} : vector<2x19x32xf32> to vector<2x16x32xf32>
    %24 = vector.extract_strided_slice %22 {offsets = [0, 1, 0], sizes = [2, 16, 32], strides = [1, 1, 1]} : vector<2x19x32xf32> to vector<2x16x32xf32>
    %25 = vector.extract_strided_slice %22 {offsets = [0, 2, 0], sizes = [2, 16, 32], strides = [1, 1, 1]} : vector<2x19x32xf32> to vector<2x16x32xf32>
    %26 = vector.extract_strided_slice %22 {offsets = [0, 3, 0], sizes = [2, 16, 32], strides = [1, 1, 1]} : vector<2x19x32xf32> to vector<2x16x32xf32>
    %27 = tpu.concatenate %23, %24, %25, %26 in 2 : vector<2x16x32xf32>, vector<2x16x32xf32>, vector<2x16x32xf32>, vector<2x16x32xf32> -> vector<2x16x128xf32>
    %28 = vector.shape_cast %27 : vector<2x16x128xf32> to vector<32x128xf32>
    %cst_15 = arith.constant dense<0.000000e+00> : vector<32x32xf32>
    %29 = tpu.matmul %28, %18, %cst_15 {dimension_numbers = #tpu.dot_dimension_numbers<[1], [0], [0], [1], [0, 0, 1, 1], [], []>} : vector<32x128xf32>, vector<128x32xf32>, vector<32x32xf32> -> vector<32x32xf32>
    %30 = vector.shape_cast %29 : vector<32x32xf32> to vector<2x16x32xf32>
    %31 = vector.shape_cast %19 : vector<1x32xf32> to vector<1x1x32xf32>
    %32 = vector.broadcast %31 : vector<1x1x32xf32> to vector<2x16x32xf32>
    %33 = arith.addf %30, %32 : vector<2x16x32xf32>
    %34 = vector.shape_cast %33 : vector<2x16x32xf32> to vector<2x8x2x32xf32>
    %35 = vector.extract_strided_slice %34 {offsets = [0, 0, 0, 0], sizes = [2, 8, 1, 32], strides = [1, 1, 1, 1]} : vector<2x8x2x32xf32> to vector<2x8x1x32xf32>
    %36 = vector.shape_cast %35 : vector<2x8x1x32xf32> to vector<2x8x32xf32>
    %c0_16 = arith.constant 0 : index
    %c0_17 = arith.constant 0 : index
    %37 = vector.load %arg30[%c0_16, %c0_17] : memref<96x32xf32, #tpu.memory_space<vmem>>, vector<96x32xf32>
    %c0_18 = arith.constant 0 : index
    %c0_19 = arith.constant 0 : index
    %38 = vector.load %arg31[%c0_18, %c0_19] : memref<1x32xf32, #tpu.memory_space<vmem>>, vector<1x32xf32>
    %cst_20 = arith.constant 0.000000e+00 : f32
    %39 = vector.broadcast %cst_20 : f32 to vector<2x8x32xf32>
    %40 = arith.maximumf %36, %39 : vector<2x8x32xf32>
    %cst_21 = arith.constant 0.000000e+00 : f32
    %41 = vector.broadcast %cst_21 : f32 to vector<2x3x32xf32>
    %cst_22 = arith.constant 0.000000e+00 : f32
    %42 = vector.broadcast %cst_22 : f32 to vector<2x3x32xf32>
    %43 = tpu.concatenate %41, %40, %42 in 1 : vector<2x3x32xf32>, vector<2x8x32xf32>, vector<2x3x32xf32> -> vector<2x14x32xf32>
    %44 = vector.extract_strided_slice %43 {offsets = [0, 0, 0], sizes = [2, 8, 32], strides = [1, 1, 1]} : vector<2x14x32xf32> to vector<2x8x32xf32>
    %45 = vector.extract_strided_slice %43 {offsets = [0, 3, 0], sizes = [2, 8, 32], strides = [1, 1, 1]} : vector<2x14x32xf32> to vector<2x8x32xf32>
    %46 = vector.extract_strided_slice %43 {offsets = [0, 6, 0], sizes = [2, 8, 32], strides = [1, 1, 1]} : vector<2x14x32xf32> to vector<2x8x32xf32>
    %47 = tpu.concatenate %44, %45, %46 in 2 : vector<2x8x32xf32>, vector<2x8x32xf32>, vector<2x8x32xf32> -> vector<2x8x96xf32>
    %48 = vector.shape_cast %47 : vector<2x8x96xf32> to vector<16x96xf32>
    %cst_23 = arith.constant dense<0.000000e+00> : vector<16x32xf32>
    %49 = tpu.matmul %48, %37, %cst_23 {dimension_numbers = #tpu.dot_dimension_numbers<[1], [0], [0], [1], [0, 0, 1, 1], [], []>} : vector<16x96xf32>, vector<96x32xf32>, vector<16x32xf32> -> vector<16x32xf32>
    %50 = vector.shape_cast %49 : vector<16x32xf32> to vector<2x8x32xf32>
    %51 = vector.shape_cast %38 : vector<1x32xf32> to vector<1x1x32xf32>
    %52 = vector.broadcast %51 : vector<1x1x32xf32> to vector<2x8x32xf32>
    %53 = arith.addf %50, %52 : vector<2x8x32xf32>
    %c0_24 = arith.constant 0 : index
    %c0_25 = arith.constant 0 : index
    %54 = vector.load %arg32[%c0_24, %c0_25] : memref<32x32xf32, #tpu.memory_space<vmem>>, vector<32x32xf32>
    %c0_26 = arith.constant 0 : index
    %c0_27 = arith.constant 0 : index
    %55 = vector.load %arg33[%c0_26, %c0_27] : memref<1x32xf32, #tpu.memory_space<vmem>>, vector<1x32xf32>
    %cst_28 = arith.constant 0.000000e+00 : f32
    %56 = vector.broadcast %cst_28 : f32 to vector<2x8x32xf32>
    %57 = arith.maximumf %53, %56 : vector<2x8x32xf32>
    %58 = vector.shape_cast %57 : vector<2x8x32xf32> to vector<16x32xf32>
    %cst_29 = arith.constant dense<0.000000e+00> : vector<16x32xf32>
    %59 = tpu.matmul %58, %54, %cst_29 {dimension_numbers = #tpu.dot_dimension_numbers<[1], [0], [0], [1], [0, 0, 1, 1], [], []>} : vector<16x32xf32>, vector<32x32xf32>, vector<16x32xf32> -> vector<16x32xf32>
    %60 = vector.shape_cast %59 : vector<16x32xf32> to vector<2x8x32xf32>
    %61 = vector.shape_cast %55 : vector<1x32xf32> to vector<1x1x32xf32>
    %62 = vector.broadcast %61 : vector<1x1x32xf32> to vector<2x8x32xf32>
    %63 = arith.addf %60, %62 : vector<2x8x32xf32>
    %64 = arith.addf %36, %63 : vector<2x8x32xf32>
    %c0_30 = arith.constant 0 : index
    %c0_31 = arith.constant 0 : index
    %65 = vector.load %arg34[%c0_30, %c0_31] : memref<96x32xf32, #tpu.memory_space<vmem>>, vector<96x32xf32>
    %c0_32 = arith.constant 0 : index
    %c0_33 = arith.constant 0 : index
    %66 = vector.load %arg35[%c0_32, %c0_33] : memref<1x32xf32, #tpu.memory_space<vmem>>, vector<1x32xf32>
    %cst_34 = arith.constant 0.000000e+00 : f32
    %67 = vector.broadcast %cst_34 : f32 to vector<2x8x32xf32>
    %68 = arith.maximumf %64, %67 : vector<2x8x32xf32>
    %cst_35 = arith.constant 0.000000e+00 : f32
    %69 = vector.broadcast %cst_35 : f32 to vector<2x1x32xf32>
    %cst_36 = arith.constant 0.000000e+00 : f32
    %70 = vector.broadcast %cst_36 : f32 to vector<2x1x32xf32>
    %71 = tpu.concatenate %69, %68, %70 in 1 : vector<2x1x32xf32>, vector<2x8x32xf32>, vector<2x1x32xf32> -> vector<2x10x32xf32>
    %72 = vector.extract_strided_slice %71 {offsets = [0, 0, 0], sizes = [2, 8, 32], strides = [1, 1, 1]} : vector<2x10x32xf32> to vector<2x8x32xf32>
    %73 = vector.extract_strided_slice %71 {offsets = [0, 1, 0], sizes = [2, 8, 32], strides = [1, 1, 1]} : vector<2x10x32xf32> to vector<2x8x32xf32>
    %74 = vector.extract_strided_slice %71 {offsets = [0, 2, 0], sizes = [2, 8, 32], strides = [1, 1, 1]} : vector<2x10x32xf32> to vector<2x8x32xf32>
    %75 = tpu.concatenate %72, %73, %74 in 2 : vector<2x8x32xf32>, vector<2x8x32xf32>, vector<2x8x32xf32> -> vector<2x8x96xf32>
    %76 = vector.shape_cast %75 : vector<2x8x96xf32> to vector<16x96xf32>
    %cst_37 = arith.constant dense<0.000000e+00> : vector<16x32xf32>
    %77 = tpu.matmul %76, %65, %cst_37 {dimension_numbers = #tpu.dot_dimension_numbers<[1], [0], [0], [1], [0, 0, 1, 1], [], []>} : vector<16x96xf32>, vector<96x32xf32>, vector<16x32xf32> -> vector<16x32xf32>
    %78 = vector.shape_cast %77 : vector<16x32xf32> to vector<2x8x32xf32>
    %79 = vector.shape_cast %66 : vector<1x32xf32> to vector<1x1x32xf32>
    %80 = vector.broadcast %79 : vector<1x1x32xf32> to vector<2x8x32xf32>
    %81 = arith.addf %78, %80 : vector<2x8x32xf32>
    %c0_38 = arith.constant 0 : index
    %c0_39 = arith.constant 0 : index
    %82 = vector.load %arg36[%c0_38, %c0_39] : memref<32x32xf32, #tpu.memory_space<vmem>>, vector<32x32xf32>
    %c0_40 = arith.constant 0 : index
    %c0_41 = arith.constant 0 : index
    %83 = vector.load %arg37[%c0_40, %c0_41] : memref<1x32xf32, #tpu.memory_space<vmem>>, vector<1x32xf32>
    %cst_42 = arith.constant 0.000000e+00 : f32
    %84 = vector.broadcast %cst_42 : f32 to vector<2x8x32xf32>
    %85 = arith.maximumf %81, %84 : vector<2x8x32xf32>
    %86 = vector.shape_cast %85 : vector<2x8x32xf32> to vector<16x32xf32>
    %cst_43 = arith.constant dense<0.000000e+00> : vector<16x32xf32>
    %87 = tpu.matmul %86, %82, %cst_43 {dimension_numbers = #tpu.dot_dimension_numbers<[1], [0], [0], [1], [0, 0, 1, 1], [], []>} : vector<16x32xf32>, vector<32x32xf32>, vector<16x32xf32> -> vector<16x32xf32>
    %88 = vector.shape_cast %87 : vector<16x32xf32> to vector<2x8x32xf32>
    %89 = vector.shape_cast %83 : vector<1x32xf32> to vector<1x1x32xf32>
    %90 = vector.broadcast %89 : vector<1x1x32xf32> to vector<2x8x32xf32>
    %91 = arith.addf %88, %90 : vector<2x8x32xf32>
    %92 = arith.addf %64, %91 : vector<2x8x32xf32>
    %c0_44 = arith.constant 0 : index
    %c0_45 = arith.constant 0 : index
    %93 = vector.load %arg38[%c0_44, %c0_45] : memref<128x32xf32, #tpu.memory_space<vmem>>, vector<128x32xf32>
    %c0_46 = arith.constant 0 : index
    %c0_47 = arith.constant 0 : index
    %94 = vector.load %arg39[%c0_46, %c0_47] : memref<1x32xf32, #tpu.memory_space<vmem>>, vector<1x32xf32>
    %cst_48 = arith.constant 0.000000e+00 : f32
    %95 = vector.broadcast %cst_48 : f32 to vector<2x1x32xf32>
    %cst_49 = arith.constant 0.000000e+00 : f32
    %96 = vector.broadcast %cst_49 : f32 to vector<2x2x32xf32>
    %97 = tpu.concatenate %95, %92, %96 in 1 : vector<2x1x32xf32>, vector<2x8x32xf32>, vector<2x2x32xf32> -> vector<2x11x32xf32>
    %98 = vector.extract_strided_slice %97 {offsets = [0, 0, 0], sizes = [2, 8, 32], strides = [1, 1, 1]} : vector<2x11x32xf32> to vector<2x8x32xf32>
    %99 = vector.extract_strided_slice %97 {offsets = [0, 1, 0], sizes = [2, 8, 32], strides = [1, 1, 1]} : vector<2x11x32xf32> to vector<2x8x32xf32>
    %100 = vector.extract_strided_slice %97 {offsets = [0, 2, 0], sizes = [2, 8, 32], strides = [1, 1, 1]} : vector<2x11x32xf32> to vector<2x8x32xf32>
    %101 = vector.extract_strided_slice %97 {offsets = [0, 3, 0], sizes = [2, 8, 32], strides = [1, 1, 1]} : vector<2x11x32xf32> to vector<2x8x32xf32>
    %102 = tpu.concatenate %98, %99, %100, %101 in 2 : vector<2x8x32xf32>, vector<2x8x32xf32>, vector<2x8x32xf32>, vector<2x8x32xf32> -> vector<2x8x128xf32>
    %103 = vector.shape_cast %102 : vector<2x8x128xf32> to vector<16x128xf32>
    %cst_50 = arith.constant dense<0.000000e+00> : vector<16x32xf32>
    %104 = tpu.matmul %103, %93, %cst_50 {dimension_numbers = #tpu.dot_dimension_numbers<[1], [0], [0], [1], [0, 0, 1, 1], [], []>} : vector<16x128xf32>, vector<128x32xf32>, vector<16x32xf32> -> vector<16x32xf32>
    %105 = vector.shape_cast %104 : vector<16x32xf32> to vector<2x8x32xf32>
    %106 = vector.shape_cast %94 : vector<1x32xf32> to vector<1x1x32xf32>
    %107 = vector.broadcast %106 : vector<1x1x32xf32> to vector<2x8x32xf32>
    %108 = arith.addf %105, %107 : vector<2x8x32xf32>
    %109 = vector.shape_cast %108 : vector<2x8x32xf32> to vector<2x4x2x32xf32>
    %110 = vector.extract_strided_slice %109 {offsets = [0, 0, 0, 0], sizes = [2, 4, 1, 32], strides = [1, 1, 1, 1]} : vector<2x4x2x32xf32> to vector<2x4x1x32xf32>
    %111 = vector.shape_cast %110 : vector<2x4x1x32xf32> to vector<2x4x32xf32>
    %c0_51 = arith.constant 0 : index
    %c0_52 = arith.constant 0 : index
    %112 = vector.load %arg40[%c0_51, %c0_52] : memref<96x32xf32, #tpu.memory_space<vmem>>, vector<96x32xf32>
    %c0_53 = arith.constant 0 : index
    %c0_54 = arith.constant 0 : index
    %113 = vector.load %arg41[%c0_53, %c0_54] : memref<1x32xf32, #tpu.memory_space<vmem>>, vector<1x32xf32>
    %cst_55 = arith.constant 0.000000e+00 : f32
    %114 = vector.broadcast %cst_55 : f32 to vector<2x4x32xf32>
    %115 = arith.maximumf %111, %114 : vector<2x4x32xf32>
    %cst_56 = arith.constant 0.000000e+00 : f32
    %116 = vector.broadcast %cst_56 : f32 to vector<2x3x32xf32>
    %cst_57 = arith.constant 0.000000e+00 : f32
    %117 = vector.broadcast %cst_57 : f32 to vector<2x3x32xf32>
    %118 = tpu.concatenate %116, %115, %117 in 1 : vector<2x3x32xf32>, vector<2x4x32xf32>, vector<2x3x32xf32> -> vector<2x10x32xf32>
    %119 = vector.extract_strided_slice %118 {offsets = [0, 0, 0], sizes = [2, 4, 32], strides = [1, 1, 1]} : vector<2x10x32xf32> to vector<2x4x32xf32>
    %120 = vector.extract_strided_slice %118 {offsets = [0, 3, 0], sizes = [2, 4, 32], strides = [1, 1, 1]} : vector<2x10x32xf32> to vector<2x4x32xf32>
    %121 = vector.extract_strided_slice %118 {offsets = [0, 6, 0], sizes = [2, 4, 32], strides = [1, 1, 1]} : vector<2x10x32xf32> to vector<2x4x32xf32>
    %122 = tpu.concatenate %119, %120, %121 in 2 : vector<2x4x32xf32>, vector<2x4x32xf32>, vector<2x4x32xf32> -> vector<2x4x96xf32>
    %123 = vector.shape_cast %122 : vector<2x4x96xf32> to vector<8x96xf32>
    %cst_58 = arith.constant dense<0.000000e+00> : vector<8x32xf32>
    %124 = tpu.matmul %123, %112, %cst_58 {dimension_numbers = #tpu.dot_dimension_numbers<[1], [0], [0], [1], [0, 0, 1, 1], [], []>} : vector<8x96xf32>, vector<96x32xf32>, vector<8x32xf32> -> vector<8x32xf32>
    %125 = vector.shape_cast %124 : vector<8x32xf32> to vector<2x4x32xf32>
    %126 = vector.shape_cast %113 : vector<1x32xf32> to vector<1x1x32xf32>
    %127 = vector.broadcast %126 : vector<1x1x32xf32> to vector<2x4x32xf32>
    %128 = arith.addf %125, %127 : vector<2x4x32xf32>
    %c0_59 = arith.constant 0 : index
    %c0_60 = arith.constant 0 : index
    %129 = vector.load %arg42[%c0_59, %c0_60] : memref<32x32xf32, #tpu.memory_space<vmem>>, vector<32x32xf32>
    %c0_61 = arith.constant 0 : index
    %c0_62 = arith.constant 0 : index
    %130 = vector.load %arg43[%c0_61, %c0_62] : memref<1x32xf32, #tpu.memory_space<vmem>>, vector<1x32xf32>
    %cst_63 = arith.constant 0.000000e+00 : f32
    %131 = vector.broadcast %cst_63 : f32 to vector<2x4x32xf32>
    %132 = arith.maximumf %128, %131 : vector<2x4x32xf32>
    %133 = vector.shape_cast %132 : vector<2x4x32xf32> to vector<8x32xf32>
    %cst_64 = arith.constant dense<0.000000e+00> : vector<8x32xf32>
    %134 = tpu.matmul %133, %129, %cst_64 {dimension_numbers = #tpu.dot_dimension_numbers<[1], [0], [0], [1], [0, 0, 1, 1], [], []>} : vector<8x32xf32>, vector<32x32xf32>, vector<8x32xf32> -> vector<8x32xf32>
    %135 = vector.shape_cast %134 : vector<8x32xf32> to vector<2x4x32xf32>
    %136 = vector.shape_cast %130 : vector<1x32xf32> to vector<1x1x32xf32>
    %137 = vector.broadcast %136 : vector<1x1x32xf32> to vector<2x4x32xf32>
    %138 = arith.addf %135, %137 : vector<2x4x32xf32>
    %139 = arith.addf %111, %138 : vector<2x4x32xf32>
    %c0_65 = arith.constant 0 : index
    %c0_66 = arith.constant 0 : index
    %140 = vector.load %arg44[%c0_65, %c0_66] : memref<96x32xf32, #tpu.memory_space<vmem>>, vector<96x32xf32>
    %c0_67 = arith.constant 0 : index
    %c0_68 = arith.constant 0 : index
    %141 = vector.load %arg45[%c0_67, %c0_68] : memref<1x32xf32, #tpu.memory_space<vmem>>, vector<1x32xf32>
    %cst_69 = arith.constant 0.000000e+00 : f32
    %142 = vector.broadcast %cst_69 : f32 to vector<2x4x32xf32>
    %143 = arith.maximumf %139, %142 : vector<2x4x32xf32>
    %cst_70 = arith.constant 0.000000e+00 : f32
    %144 = vector.broadcast %cst_70 : f32 to vector<2x1x32xf32>
    %cst_71 = arith.constant 0.000000e+00 : f32
    %145 = vector.broadcast %cst_71 : f32 to vector<2x1x32xf32>
    %146 = tpu.concatenate %144, %143, %145 in 1 : vector<2x1x32xf32>, vector<2x4x32xf32>, vector<2x1x32xf32> -> vector<2x6x32xf32>
    %147 = vector.extract_strided_slice %146 {offsets = [0, 0, 0], sizes = [2, 4, 32], strides = [1, 1, 1]} : vector<2x6x32xf32> to vector<2x4x32xf32>
    %148 = vector.extract_strided_slice %146 {offsets = [0, 1, 0], sizes = [2, 4, 32], strides = [1, 1, 1]} : vector<2x6x32xf32> to vector<2x4x32xf32>
    %149 = vector.extract_strided_slice %146 {offsets = [0, 2, 0], sizes = [2, 4, 32], strides = [1, 1, 1]} : vector<2x6x32xf32> to vector<2x4x32xf32>
    %150 = tpu.concatenate %147, %148, %149 in 2 : vector<2x4x32xf32>, vector<2x4x32xf32>, vector<2x4x32xf32> -> vector<2x4x96xf32>
    %151 = vector.shape_cast %150 : vector<2x4x96xf32> to vector<8x96xf32>
    %cst_72 = arith.constant dense<0.000000e+00> : vector<8x32xf32>
    %152 = tpu.matmul %151, %140, %cst_72 {dimension_numbers = #tpu.dot_dimension_numbers<[1], [0], [0], [1], [0, 0, 1, 1], [], []>} : vector<8x96xf32>, vector<96x32xf32>, vector<8x32xf32> -> vector<8x32xf32>
    %153 = vector.shape_cast %152 : vector<8x32xf32> to vector<2x4x32xf32>
    %154 = vector.shape_cast %141 : vector<1x32xf32> to vector<1x1x32xf32>
    %155 = vector.broadcast %154 : vector<1x1x32xf32> to vector<2x4x32xf32>
    %156 = arith.addf %153, %155 : vector<2x4x32xf32>
    %c0_73 = arith.constant 0 : index
    %c0_74 = arith.constant 0 : index
    %157 = vector.load %arg46[%c0_73, %c0_74] : memref<32x32xf32, #tpu.memory_space<vmem>>, vector<32x32xf32>
    %c0_75 = arith.constant 0 : index
    %c0_76 = arith.constant 0 : index
    %158 = vector.load %arg47[%c0_75, %c0_76] : memref<1x32xf32, #tpu.memory_space<vmem>>, vector<1x32xf32>
    %cst_77 = arith.constant 0.000000e+00 : f32
    %159 = vector.broadcast %cst_77 : f32 to vector<2x4x32xf32>
    %160 = arith.maximumf %156, %159 : vector<2x4x32xf32>
    %161 = vector.shape_cast %160 : vector<2x4x32xf32> to vector<8x32xf32>
    %cst_78 = arith.constant dense<0.000000e+00> : vector<8x32xf32>
    %162 = tpu.matmul %161, %157, %cst_78 {dimension_numbers = #tpu.dot_dimension_numbers<[1], [0], [0], [1], [0, 0, 1, 1], [], []>} : vector<8x32xf32>, vector<32x32xf32>, vector<8x32xf32> -> vector<8x32xf32>
    %163 = vector.shape_cast %162 : vector<8x32xf32> to vector<2x4x32xf32>
    %164 = vector.shape_cast %158 : vector<1x32xf32> to vector<1x1x32xf32>
    %165 = vector.broadcast %164 : vector<1x1x32xf32> to vector<2x4x32xf32>
    %166 = arith.addf %163, %165 : vector<2x4x32xf32>
    %167 = arith.addf %139, %166 : vector<2x4x32xf32>
    %c0_79 = arith.constant 0 : index
    %c0_80 = arith.constant 0 : index
    %168 = vector.load %arg50[%c0_79, %c0_80] : memref<96x32xf32, #tpu.memory_space<vmem>>, vector<96x32xf32>
    %c0_81 = arith.constant 0 : index
    %c0_82 = arith.constant 0 : index
    %169 = vector.load %arg51[%c0_81, %c0_82] : memref<1x32xf32, #tpu.memory_space<vmem>>, vector<1x32xf32>
    %cst_83 = arith.constant 0.000000e+00 : f32
    %170 = vector.broadcast %cst_83 : f32 to vector<2x1x32xf32>
    %cst_84 = arith.constant 0.000000e+00 : f32
    %171 = vector.broadcast %cst_84 : f32 to vector<2x1x32xf32>
    %172 = tpu.concatenate %170, %167, %171 in 1 : vector<2x1x32xf32>, vector<2x4x32xf32>, vector<2x1x32xf32> -> vector<2x6x32xf32>
    %173 = vector.extract_strided_slice %172 {offsets = [0, 0, 0], sizes = [2, 4, 32], strides = [1, 1, 1]} : vector<2x6x32xf32> to vector<2x4x32xf32>
    %174 = vector.extract_strided_slice %172 {offsets = [0, 1, 0], sizes = [2, 4, 32], strides = [1, 1, 1]} : vector<2x6x32xf32> to vector<2x4x32xf32>
    %175 = vector.extract_strided_slice %172 {offsets = [0, 2, 0], sizes = [2, 4, 32], strides = [1, 1, 1]} : vector<2x6x32xf32> to vector<2x4x32xf32>
    %176 = tpu.concatenate %173, %174, %175 in 2 : vector<2x4x32xf32>, vector<2x4x32xf32>, vector<2x4x32xf32> -> vector<2x4x96xf32>
    %177 = vector.shape_cast %176 : vector<2x4x96xf32> to vector<8x96xf32>
    %cst_85 = arith.constant dense<0.000000e+00> : vector<8x32xf32>
    %178 = tpu.matmul %177, %168, %cst_85 {dimension_numbers = #tpu.dot_dimension_numbers<[1], [0], [0], [1], [0, 0, 1, 1], [], []>} : vector<8x96xf32>, vector<96x32xf32>, vector<8x32xf32> -> vector<8x32xf32>
    %179 = vector.shape_cast %178 : vector<8x32xf32> to vector<2x4x32xf32>
    %180 = vector.shape_cast %169 : vector<1x32xf32> to vector<1x1x32xf32>
    %181 = vector.broadcast %180 : vector<1x1x32xf32> to vector<2x4x32xf32>
    %182 = arith.addf %179, %181 : vector<2x4x32xf32>
    %c0_86 = arith.constant 0 : index
    %c0_87 = arith.constant 0 : index
    %183 = vector.load %arg1[%c0_86, %c0_87] : memref<64x32xf32, #tpu.memory_space<vmem>>, vector<64x32xf32>
    %184 = vector.shape_cast %182 : vector<2x4x32xf32> to vector<8x32xf32>
    %185 = tpu.transpose %183, [1, 0] : vector<64x32xf32> -> vector<32x64xf32>
    %cst_88 = arith.constant dense<0.000000e+00> : vector<8x64xf32>
    %186 = tpu.matmul %184, %185, %cst_88 {dimension_numbers = #tpu.dot_dimension_numbers<[1], [0], [0], [1], [0, 0, 1, 1], [], []>} : vector<8x32xf32>, vector<32x64xf32>, vector<8x64xf32> -> vector<8x64xf32>
    %187 = arith.mulf %185, %185 : vector<32x64xf32>
    %cst_89 = arith.constant dense<0.000000e+00> : vector<64xf32>
    %188 = vector.multi_reduction <add>, %187, %cst_89 [0] : vector<32x64xf32> to vector<64xf32>
    %189 = vector.shape_cast %188 : vector<64xf32> to vector<1x64xf32>
    %cst_90 = arith.constant 2.000000e+00 : f32
    %190 = vector.broadcast %cst_90 : f32 to vector<8x64xf32>
    %191 = arith.mulf %190, %186 : vector<8x64xf32>
    %192 = vector.broadcast %189 : vector<1x64xf32> to vector<8x64xf32>
    %193 = arith.subf %192, %191 : vector<8x64xf32>
    %194 = tpu.iota {dimensions = array<i32: 1>} : vector<8x64xi32>
    %cst_91 = arith.constant dense<0x7F800000> : vector<8xf32>
    %195 = vector.multi_reduction <minimumf>, %193, %cst_91 [1] : vector<8x64xf32> to vector<8xf32>
    %196 = vector.shape_cast %195 : vector<8xf32> to vector<8x1xf32>
    %197 = vector.broadcast %196 : vector<8x1xf32> to vector<8x64xf32>
    %198 = arith.cmpf ole, %193, %197 : vector<8x64xf32>
    %c1073741824_i32 = arith.constant 1073741824 : i32
    %199 = vector.broadcast %c1073741824_i32 : i32 to vector<8x64xi32>
    %200 = arith.select %198, %194, %199 : vector<8x64xi1>, vector<8x64xi32>
    %cst_92 = arith.constant dense<2147483647> : vector<8xi32>
    %201 = vector.multi_reduction <minsi>, %200, %cst_92 [1] : vector<8x64xi32> to vector<8xi32>
    %202 = vector.shape_cast %201 : vector<8xi32> to vector<8x1xi32>
    %203 = vector.broadcast %202 : vector<8x1xi32> to vector<8x64xi32>
    %204 = arith.cmpi eq, %194, %203 : vector<8x64xi32>
    %205 = arith.extui %204 : vector<8x64xi1> to vector<8x64xi32>
    %206 = arith.sitofp %205 : vector<8x64xi32> to vector<8x64xf32>
    %cst_93 = arith.constant dense<0.000000e+00> : vector<8x32xf32>
    %207 = tpu.matmul %206, %183, %cst_93 {dimension_numbers = #tpu.dot_dimension_numbers<[1], [0], [0], [1], [0, 0, 1, 1], [], []>} : vector<8x64xf32>, vector<64x32xf32>, vector<8x32xf32> -> vector<8x32xf32>
    %c0_94 = arith.constant 0 : index
    %c0_95 = arith.constant 0 : index
    %208 = vector.load %arg53[%c0_94, %c0_95] : memref<8x1xi32, #tpu.memory_space<vmem>>, vector<8x1xi32>
    tpu.vector_store %arg53[%c0_94, %c0_95], %202 {strides = array<i32>} : memref<8x1xi32, #tpu.memory_space<vmem>>, vector<8x1xi32>,
    %209 = arith.subf %207, %184 : vector<8x32xf32>
    %210 = arith.mulf %209, %209 : vector<8x32xf32>
    %cst_96 = arith.constant dense<0.000000e+00> : vector<8xf32>
    %211 = vector.multi_reduction <add>, %210, %cst_96 [1] : vector<8x32xf32> to vector<8xf32>
    %212 = vector.shape_cast %211 : vector<8xf32> to vector<8x1xf32>
    %cst_97 = arith.constant dense<0.000000e+00> : vector<1xf32>
    %213 = vector.multi_reduction <add>, %212, %cst_97 [0] : vector<8x1xf32> to vector<1xf32>
    %214 = vector.shape_cast %213 : vector<1xf32> to vector<1x1xf32>
    %cst_98 = arith.constant 2.560000e+02 : f32
    %215 = vector.broadcast %cst_98 : f32 to vector<1x1xf32>
    %216 = arith.divf %214, %215 : vector<1x1xf32>
    %c0_99 = arith.constant 0 : index
    %c0_100 = arith.constant 0 : index
    %217 = vector.load %arg54[%c0_99, %c0_100] : memref<1x1xf32, #tpu.memory_space<vmem>>, vector<1x1xf32>
    tpu.vector_store %arg54[%c0_99, %c0_100], %216 {strides = array<i32>} : memref<1x1xf32, #tpu.memory_space<vmem>>, vector<1x1xf32>,
    %218 = vector.shape_cast %207 : vector<8x32xf32> to vector<2x4x32xf32>
    %c0_101 = arith.constant 0 : index
    %c0_102 = arith.constant 0 : index
    %c0_103 = arith.constant 0 : index
    %219 = vector.load %arg55[%c0_101, %c0_102, %c0_103] : memref<2x4x32xf32, #tpu.memory_space<vmem>>, vector<2x4x32xf32>
    tpu.vector_store %arg55[%c0_101, %c0_102, %c0_103], %218 {strides = array<i32>} : memref<2x4x32xf32, #tpu.memory_space<vmem>>, vector<2x4x32xf32>,
    %c0_104 = arith.constant 0 : index
    %c0_105 = arith.constant 0 : index
    %220 = vector.load %arg22[%c0_104, %c0_105] : memref<96x32xf32, #tpu.memory_space<vmem>>, vector<96x32xf32>
    %c0_106 = arith.constant 0 : index
    %c0_107 = arith.constant 0 : index
    %221 = vector.load %arg23[%c0_106, %c0_107] : memref<1x32xf32, #tpu.memory_space<vmem>>, vector<1x32xf32>
    %cst_108 = arith.constant 0.000000e+00 : f32
    %222 = vector.broadcast %cst_108 : f32 to vector<2x1x32xf32>
    %cst_109 = arith.constant 0.000000e+00 : f32
    %223 = vector.broadcast %cst_109 : f32 to vector<2x1x32xf32>
    %224 = tpu.concatenate %222, %218, %223 in 1 : vector<2x1x32xf32>, vector<2x4x32xf32>, vector<2x1x32xf32> -> vector<2x6x32xf32>
    %225 = vector.extract_strided_slice %224 {offsets = [0, 0, 0], sizes = [2, 4, 32], strides = [1, 1, 1]} : vector<2x6x32xf32> to vector<2x4x32xf32>
    %226 = vector.extract_strided_slice %224 {offsets = [0, 1, 0], sizes = [2, 4, 32], strides = [1, 1, 1]} : vector<2x6x32xf32> to vector<2x4x32xf32>
    %227 = vector.extract_strided_slice %224 {offsets = [0, 2, 0], sizes = [2, 4, 32], strides = [1, 1, 1]} : vector<2x6x32xf32> to vector<2x4x32xf32>
    %228 = tpu.concatenate %225, %226, %227 in 2 : vector<2x4x32xf32>, vector<2x4x32xf32>, vector<2x4x32xf32> -> vector<2x4x96xf32>
    %229 = vector.shape_cast %228 : vector<2x4x96xf32> to vector<8x96xf32>
    %cst_110 = arith.constant dense<0.000000e+00> : vector<8x32xf32>
    %230 = tpu.matmul %229, %220, %cst_110 {dimension_numbers = #tpu.dot_dimension_numbers<[1], [0], [0], [1], [0, 0, 1, 1], [], []>} : vector<8x96xf32>, vector<96x32xf32>, vector<8x32xf32> -> vector<8x32xf32>
    %231 = vector.shape_cast %230 : vector<8x32xf32> to vector<2x4x32xf32>
    %232 = vector.shape_cast %221 : vector<1x32xf32> to vector<1x1x32xf32>
    %233 = vector.broadcast %232 : vector<1x1x32xf32> to vector<2x4x32xf32>
    %234 = arith.addf %231, %233 : vector<2x4x32xf32>
    %cst_111 = arith.constant 0.000000e+00 : f32
    %235 = vector.broadcast %cst_111 : f32 to vector<2x4x32xf32>
    %236 = arith.maximumf %234, %235 : vector<2x4x32xf32>
    %c0_112 = arith.constant 0 : index
    %c0_113 = arith.constant 0 : index
    %237 = vector.load %arg2[%c0_112, %c0_113] : memref<96x32xf32, #tpu.memory_space<vmem>>, vector<96x32xf32>
    %c0_114 = arith.constant 0 : index
    %c0_115 = arith.constant 0 : index
    %238 = vector.load %arg3[%c0_114, %c0_115] : memref<1x32xf32, #tpu.memory_space<vmem>>, vector<1x32xf32>
    %cst_116 = arith.constant 0.000000e+00 : f32
    %239 = vector.broadcast %cst_116 : f32 to vector<2x4x32xf32>
    %240 = arith.maximumf %236, %239 : vector<2x4x32xf32>
    %cst_117 = arith.constant 0.000000e+00 : f32
    %241 = vector.broadcast %cst_117 : f32 to vector<2x3x32xf32>
    %cst_118 = arith.constant 0.000000e+00 : f32
    %242 = vector.broadcast %cst_118 : f32 to vector<2x3x32xf32>
    %243 = tpu.concatenate %241, %240, %242 in 1 : vector<2x3x32xf32>, vector<2x4x32xf32>, vector<2x3x32xf32> -> vector<2x10x32xf32>
    %244 = vector.extract_strided_slice %243 {offsets = [0, 0, 0], sizes = [2, 4, 32], strides = [1, 1, 1]} : vector<2x10x32xf32> to vector<2x4x32xf32>
    %245 = vector.extract_strided_slice %243 {offsets = [0, 3, 0], sizes = [2, 4, 32], strides = [1, 1, 1]} : vector<2x10x32xf32> to vector<2x4x32xf32>
    %246 = vector.extract_strided_slice %243 {offsets = [0, 6, 0], sizes = [2, 4, 32], strides = [1, 1, 1]} : vector<2x10x32xf32> to vector<2x4x32xf32>
    %247 = tpu.concatenate %244, %245, %246 in 2 : vector<2x4x32xf32>, vector<2x4x32xf32>, vector<2x4x32xf32> -> vector<2x4x96xf32>
    %248 = vector.shape_cast %247 : vector<2x4x96xf32> to vector<8x96xf32>
    %cst_119 = arith.constant dense<0.000000e+00> : vector<8x32xf32>
    %249 = tpu.matmul %248, %237, %cst_119 {dimension_numbers = #tpu.dot_dimension_numbers<[1], [0], [0], [1], [0, 0, 1, 1], [], []>} : vector<8x96xf32>, vector<96x32xf32>, vector<8x32xf32> -> vector<8x32xf32>
    %250 = vector.shape_cast %249 : vector<8x32xf32> to vector<2x4x32xf32>
    %251 = vector.shape_cast %238 : vector<1x32xf32> to vector<1x1x32xf32>
    %252 = vector.broadcast %251 : vector<1x1x32xf32> to vector<2x4x32xf32>
    %253 = arith.addf %250, %252 : vector<2x4x32xf32>
    %c0_120 = arith.constant 0 : index
    %c0_121 = arith.constant 0 : index
    %254 = vector.load %arg4[%c0_120, %c0_121] : memref<32x32xf32, #tpu.memory_space<vmem>>, vector<32x32xf32>
    %c0_122 = arith.constant 0 : index
    %c0_123 = arith.constant 0 : index
    %255 = vector.load %arg5[%c0_122, %c0_123] : memref<1x32xf32, #tpu.memory_space<vmem>>, vector<1x32xf32>
    %cst_124 = arith.constant 0.000000e+00 : f32
    %256 = vector.broadcast %cst_124 : f32 to vector<2x4x32xf32>
    %257 = arith.maximumf %253, %256 : vector<2x4x32xf32>
    %258 = vector.shape_cast %257 : vector<2x4x32xf32> to vector<8x32xf32>
    %cst_125 = arith.constant dense<0.000000e+00> : vector<8x32xf32>
    %259 = tpu.matmul %258, %254, %cst_125 {dimension_numbers = #tpu.dot_dimension_numbers<[1], [0], [0], [1], [0, 0, 1, 1], [], []>} : vector<8x32xf32>, vector<32x32xf32>, vector<8x32xf32> -> vector<8x32xf32>
    %260 = vector.shape_cast %259 : vector<8x32xf32> to vector<2x4x32xf32>
    %261 = vector.shape_cast %255 : vector<1x32xf32> to vector<1x1x32xf32>
    %262 = vector.broadcast %261 : vector<1x1x32xf32> to vector<2x4x32xf32>
    %263 = arith.addf %260, %262 : vector<2x4x32xf32>
    %264 = arith.addf %236, %263 : vector<2x4x32xf32>
    %c0_126 = arith.constant 0 : index
    %c0_127 = arith.constant 0 : index
    %265 = vector.load %arg6[%c0_126, %c0_127] : memref<96x32xf32, #tpu.memory_space<vmem>>, vector<96x32xf32>
    %c0_128 = arith.constant 0 : index
    %c0_129 = arith.constant 0 : index
    %266 = vector.load %arg7[%c0_128, %c0_129] : memref<1x32xf32, #tpu.memory_space<vmem>>, vector<1x32xf32>
    %cst_130 = arith.constant 0.000000e+00 : f32
    %267 = vector.broadcast %cst_130 : f32 to vector<2x4x32xf32>
    %268 = arith.maximumf %264, %267 : vector<2x4x32xf32>
    %cst_131 = arith.constant 0.000000e+00 : f32
    %269 = vector.broadcast %cst_131 : f32 to vector<2x1x32xf32>
    %cst_132 = arith.constant 0.000000e+00 : f32
    %270 = vector.broadcast %cst_132 : f32 to vector<2x1x32xf32>
    %271 = tpu.concatenate %269, %268, %270 in 1 : vector<2x1x32xf32>, vector<2x4x32xf32>, vector<2x1x32xf32> -> vector<2x6x32xf32>
    %272 = vector.extract_strided_slice %271 {offsets = [0, 0, 0], sizes = [2, 4, 32], strides = [1, 1, 1]} : vector<2x6x32xf32> to vector<2x4x32xf32>
    %273 = vector.extract_strided_slice %271 {offsets = [0, 1, 0], sizes = [2, 4, 32], strides = [1, 1, 1]} : vector<2x6x32xf32> to vector<2x4x32xf32>
    %274 = vector.extract_strided_slice %271 {offsets = [0, 2, 0], sizes = [2, 4, 32], strides = [1, 1, 1]} : vector<2x6x32xf32> to vector<2x4x32xf32>
    %275 = tpu.concatenate %272, %273, %274 in 2 : vector<2x4x32xf32>, vector<2x4x32xf32>, vector<2x4x32xf32> -> vector<2x4x96xf32>
    %276 = vector.shape_cast %275 : vector<2x4x96xf32> to vector<8x96xf32>
    %cst_133 = arith.constant dense<0.000000e+00> : vector<8x32xf32>
    %277 = tpu.matmul %276, %265, %cst_133 {dimension_numbers = #tpu.dot_dimension_numbers<[1], [0], [0], [1], [0, 0, 1, 1], [], []>} : vector<8x96xf32>, vector<96x32xf32>, vector<8x32xf32> -> vector<8x32xf32>
    %278 = vector.shape_cast %277 : vector<8x32xf32> to vector<2x4x32xf32>
    %279 = vector.shape_cast %266 : vector<1x32xf32> to vector<1x1x32xf32>
    %280 = vector.broadcast %279 : vector<1x1x32xf32> to vector<2x4x32xf32>
    %281 = arith.addf %278, %280 : vector<2x4x32xf32>
    %c0_134 = arith.constant 0 : index
    %c0_135 = arith.constant 0 : index
    %282 = vector.load %arg8[%c0_134, %c0_135] : memref<32x32xf32, #tpu.memory_space<vmem>>, vector<32x32xf32>
    %c0_136 = arith.constant 0 : index
    %c0_137 = arith.constant 0 : index
    %283 = vector.load %arg9[%c0_136, %c0_137] : memref<1x32xf32, #tpu.memory_space<vmem>>, vector<1x32xf32>
    %cst_138 = arith.constant 0.000000e+00 : f32
    %284 = vector.broadcast %cst_138 : f32 to vector<2x4x32xf32>
    %285 = arith.maximumf %281, %284 : vector<2x4x32xf32>
    %286 = vector.shape_cast %285 : vector<2x4x32xf32> to vector<8x32xf32>
    %cst_139 = arith.constant dense<0.000000e+00> : vector<8x32xf32>
    %287 = tpu.matmul %286, %282, %cst_139 {dimension_numbers = #tpu.dot_dimension_numbers<[1], [0], [0], [1], [0, 0, 1, 1], [], []>} : vector<8x32xf32>, vector<32x32xf32>, vector<8x32xf32> -> vector<8x32xf32>
    %288 = vector.shape_cast %287 : vector<8x32xf32> to vector<2x4x32xf32>
    %289 = vector.shape_cast %283 : vector<1x32xf32> to vector<1x1x32xf32>
    %290 = vector.broadcast %289 : vector<1x1x32xf32> to vector<2x4x32xf32>
    %291 = arith.addf %288, %290 : vector<2x4x32xf32>
    %292 = arith.addf %264, %291 : vector<2x4x32xf32>
    %293 = vector.shape_cast %292 : vector<2x4x32xf32> to vector<2x4x1x32xf32>
    %294 = vector.shape_cast %292 : vector<2x4x32xf32> to vector<2x4x1x32xf32>
    %295 = tpu.concatenate %293, %294 in 2 : vector<2x4x1x32xf32>, vector<2x4x1x32xf32> -> vector<2x4x2x32xf32>
    %296 = vector.shape_cast %295 : vector<2x4x2x32xf32> to vector<2x8x32xf32>
    %c0_140 = arith.constant 0 : index
    %c0_141 = arith.constant 0 : index
    %297 = vector.load %arg10[%c0_140, %c0_141] : memref<96x32xf32, #tpu.memory_space<vmem>>, vector<96x32xf32>
    %c0_142 = arith.constant 0 : index
    %c0_143 = arith.constant 0 : index
    %298 = vector.load %arg11[%c0_142, %c0_143] : memref<1x32xf32, #tpu.memory_space<vmem>>, vector<1x32xf32>
    %cst_144 = arith.constant 0.000000e+00 : f32
    %299 = vector.broadcast %cst_144 : f32 to vector<2x1x32xf32>
    %cst_145 = arith.constant 0.000000e+00 : f32
    %300 = vector.broadcast %cst_145 : f32 to vector<2x1x32xf32>
    %301 = tpu.concatenate %299, %296, %300 in 1 : vector<2x1x32xf32>, vector<2x8x32xf32>, vector<2x1x32xf32> -> vector<2x10x32xf32>
    %302 = vector.extract_strided_slice %301 {offsets = [0, 0, 0], sizes = [2, 8, 32], strides = [1, 1, 1]} : vector<2x10x32xf32> to vector<2x8x32xf32>
    %303 = vector.extract_strided_slice %301 {offsets = [0, 1, 0], sizes = [2, 8, 32], strides = [1, 1, 1]} : vector<2x10x32xf32> to vector<2x8x32xf32>
    %304 = vector.extract_strided_slice %301 {offsets = [0, 2, 0], sizes = [2, 8, 32], strides = [1, 1, 1]} : vector<2x10x32xf32> to vector<2x8x32xf32>
    %305 = tpu.concatenate %302, %303, %304 in 2 : vector<2x8x32xf32>, vector<2x8x32xf32>, vector<2x8x32xf32> -> vector<2x8x96xf32>
    %306 = vector.shape_cast %305 : vector<2x8x96xf32> to vector<16x96xf32>
    %cst_146 = arith.constant dense<0.000000e+00> : vector<16x32xf32>
    %307 = tpu.matmul %306, %297, %cst_146 {dimension_numbers = #tpu.dot_dimension_numbers<[1], [0], [0], [1], [0, 0, 1, 1], [], []>} : vector<16x96xf32>, vector<96x32xf32>, vector<16x32xf32> -> vector<16x32xf32>
    %308 = vector.shape_cast %307 : vector<16x32xf32> to vector<2x8x32xf32>
    %309 = vector.shape_cast %298 : vector<1x32xf32> to vector<1x1x32xf32>
    %310 = vector.broadcast %309 : vector<1x1x32xf32> to vector<2x8x32xf32>
    %311 = arith.addf %308, %310 : vector<2x8x32xf32>
    %c0_147 = arith.constant 0 : index
    %c0_148 = arith.constant 0 : index
    %312 = vector.load %arg12[%c0_147, %c0_148] : memref<96x32xf32, #tpu.memory_space<vmem>>, vector<96x32xf32>
    %c0_149 = arith.constant 0 : index
    %c0_150 = arith.constant 0 : index
    %313 = vector.load %arg13[%c0_149, %c0_150] : memref<1x32xf32, #tpu.memory_space<vmem>>, vector<1x32xf32>
    %cst_151 = arith.constant 0.000000e+00 : f32
    %314 = vector.broadcast %cst_151 : f32 to vector<2x8x32xf32>
    %315 = arith.maximumf %311, %314 : vector<2x8x32xf32>
    %cst_152 = arith.constant 0.000000e+00 : f32
    %316 = vector.broadcast %cst_152 : f32 to vector<2x3x32xf32>
    %cst_153 = arith.constant 0.000000e+00 : f32
    %317 = vector.broadcast %cst_153 : f32 to vector<2x3x32xf32>
    %318 = tpu.concatenate %316, %315, %317 in 1 : vector<2x3x32xf32>, vector<2x8x32xf32>, vector<2x3x32xf32> -> vector<2x14x32xf32>
    %319 = vector.extract_strided_slice %318 {offsets = [0, 0, 0], sizes = [2, 8, 32], strides = [1, 1, 1]} : vector<2x14x32xf32> to vector<2x8x32xf32>
    %320 = vector.extract_strided_slice %318 {offsets = [0, 3, 0], sizes = [2, 8, 32], strides = [1, 1, 1]} : vector<2x14x32xf32> to vector<2x8x32xf32>
    %321 = vector.extract_strided_slice %318 {offsets = [0, 6, 0], sizes = [2, 8, 32], strides = [1, 1, 1]} : vector<2x14x32xf32> to vector<2x8x32xf32>
    %322 = tpu.concatenate %319, %320, %321 in 2 : vector<2x8x32xf32>, vector<2x8x32xf32>, vector<2x8x32xf32> -> vector<2x8x96xf32>
    %323 = vector.shape_cast %322 : vector<2x8x96xf32> to vector<16x96xf32>
    %cst_154 = arith.constant dense<0.000000e+00> : vector<16x32xf32>
    %324 = tpu.matmul %323, %312, %cst_154 {dimension_numbers = #tpu.dot_dimension_numbers<[1], [0], [0], [1], [0, 0, 1, 1], [], []>} : vector<16x96xf32>, vector<96x32xf32>, vector<16x32xf32> -> vector<16x32xf32>
    %325 = vector.shape_cast %324 : vector<16x32xf32> to vector<2x8x32xf32>
    %326 = vector.shape_cast %313 : vector<1x32xf32> to vector<1x1x32xf32>
    %327 = vector.broadcast %326 : vector<1x1x32xf32> to vector<2x8x32xf32>
    %328 = arith.addf %325, %327 : vector<2x8x32xf32>
    %c0_155 = arith.constant 0 : index
    %c0_156 = arith.constant 0 : index
    %329 = vector.load %arg14[%c0_155, %c0_156] : memref<32x32xf32, #tpu.memory_space<vmem>>, vector<32x32xf32>
    %c0_157 = arith.constant 0 : index
    %c0_158 = arith.constant 0 : index
    %330 = vector.load %arg15[%c0_157, %c0_158] : memref<1x32xf32, #tpu.memory_space<vmem>>, vector<1x32xf32>
    %cst_159 = arith.constant 0.000000e+00 : f32
    %331 = vector.broadcast %cst_159 : f32 to vector<2x8x32xf32>
    %332 = arith.maximumf %328, %331 : vector<2x8x32xf32>
    %333 = vector.shape_cast %332 : vector<2x8x32xf32> to vector<16x32xf32>
    %cst_160 = arith.constant dense<0.000000e+00> : vector<16x32xf32>
    %334 = tpu.matmul %333, %329, %cst_160 {dimension_numbers = #tpu.dot_dimension_numbers<[1], [0], [0], [1], [0, 0, 1, 1], [], []>} : vector<16x32xf32>, vector<32x32xf32>, vector<16x32xf32> -> vector<16x32xf32>
    %335 = vector.shape_cast %334 : vector<16x32xf32> to vector<2x8x32xf32>
    %336 = vector.shape_cast %330 : vector<1x32xf32> to vector<1x1x32xf32>
    %337 = vector.broadcast %336 : vector<1x1x32xf32> to vector<2x8x32xf32>
    %338 = arith.addf %335, %337 : vector<2x8x32xf32>
    %339 = arith.addf %311, %338 : vector<2x8x32xf32>
    %c0_161 = arith.constant 0 : index
    %c0_162 = arith.constant 0 : index
    %340 = vector.load %arg16[%c0_161, %c0_162] : memref<96x32xf32, #tpu.memory_space<vmem>>, vector<96x32xf32>
    %c0_163 = arith.constant 0 : index
    %c0_164 = arith.constant 0 : index
    %341 = vector.load %arg17[%c0_163, %c0_164] : memref<1x32xf32, #tpu.memory_space<vmem>>, vector<1x32xf32>
    %cst_165 = arith.constant 0.000000e+00 : f32
    %342 = vector.broadcast %cst_165 : f32 to vector<2x8x32xf32>
    %343 = arith.maximumf %339, %342 : vector<2x8x32xf32>
    %cst_166 = arith.constant 0.000000e+00 : f32
    %344 = vector.broadcast %cst_166 : f32 to vector<2x1x32xf32>
    %cst_167 = arith.constant 0.000000e+00 : f32
    %345 = vector.broadcast %cst_167 : f32 to vector<2x1x32xf32>
    %346 = tpu.concatenate %344, %343, %345 in 1 : vector<2x1x32xf32>, vector<2x8x32xf32>, vector<2x1x32xf32> -> vector<2x10x32xf32>
    %347 = vector.extract_strided_slice %346 {offsets = [0, 0, 0], sizes = [2, 8, 32], strides = [1, 1, 1]} : vector<2x10x32xf32> to vector<2x8x32xf32>
    %348 = vector.extract_strided_slice %346 {offsets = [0, 1, 0], sizes = [2, 8, 32], strides = [1, 1, 1]} : vector<2x10x32xf32> to vector<2x8x32xf32>
    %349 = vector.extract_strided_slice %346 {offsets = [0, 2, 0], sizes = [2, 8, 32], strides = [1, 1, 1]} : vector<2x10x32xf32> to vector<2x8x32xf32>
    %350 = tpu.concatenate %347, %348, %349 in 2 : vector<2x8x32xf32>, vector<2x8x32xf32>, vector<2x8x32xf32> -> vector<2x8x96xf32>
    %351 = vector.shape_cast %350 : vector<2x8x96xf32> to vector<16x96xf32>
    %cst_168 = arith.constant dense<0.000000e+00> : vector<16x32xf32>
    %352 = tpu.matmul %351, %340, %cst_168 {dimension_numbers = #tpu.dot_dimension_numbers<[1], [0], [0], [1], [0, 0, 1, 1], [], []>} : vector<16x96xf32>, vector<96x32xf32>, vector<16x32xf32> -> vector<16x32xf32>
    %353 = vector.shape_cast %352 : vector<16x32xf32> to vector<2x8x32xf32>
    %354 = vector.shape_cast %341 : vector<1x32xf32> to vector<1x1x32xf32>
    %355 = vector.broadcast %354 : vector<1x1x32xf32> to vector<2x8x32xf32>
    %356 = arith.addf %353, %355 : vector<2x8x32xf32>
    %c0_169 = arith.constant 0 : index
    %c0_170 = arith.constant 0 : index
    %357 = vector.load %arg18[%c0_169, %c0_170] : memref<32x32xf32, #tpu.memory_space<vmem>>, vector<32x32xf32>
    %c0_171 = arith.constant 0 : index
    %c0_172 = arith.constant 0 : index
    %358 = vector.load %arg19[%c0_171, %c0_172] : memref<1x32xf32, #tpu.memory_space<vmem>>, vector<1x32xf32>
    %cst_173 = arith.constant 0.000000e+00 : f32
    %359 = vector.broadcast %cst_173 : f32 to vector<2x8x32xf32>
    %360 = arith.maximumf %356, %359 : vector<2x8x32xf32>
    %361 = vector.shape_cast %360 : vector<2x8x32xf32> to vector<16x32xf32>
    %cst_174 = arith.constant dense<0.000000e+00> : vector<16x32xf32>
    %362 = tpu.matmul %361, %357, %cst_174 {dimension_numbers = #tpu.dot_dimension_numbers<[1], [0], [0], [1], [0, 0, 1, 1], [], []>} : vector<16x32xf32>, vector<32x32xf32>, vector<16x32xf32> -> vector<16x32xf32>
    %363 = vector.shape_cast %362 : vector<16x32xf32> to vector<2x8x32xf32>
    %364 = vector.shape_cast %358 : vector<1x32xf32> to vector<1x1x32xf32>
    %365 = vector.broadcast %364 : vector<1x1x32xf32> to vector<2x8x32xf32>
    %366 = arith.addf %363, %365 : vector<2x8x32xf32>
    %367 = arith.addf %339, %366 : vector<2x8x32xf32>
    %368 = vector.shape_cast %367 : vector<2x8x32xf32> to vector<2x8x1x32xf32>
    %369 = vector.shape_cast %367 : vector<2x8x32xf32> to vector<2x8x1x32xf32>
    %370 = tpu.concatenate %368, %369 in 2 : vector<2x8x1x32xf32>, vector<2x8x1x32xf32> -> vector<2x8x2x32xf32>
    %371 = vector.shape_cast %370 : vector<2x8x2x32xf32> to vector<2x16x32xf32>
    %c0_175 = arith.constant 0 : index
    %c0_176 = arith.constant 0 : index
    %372 = vector.load %arg20[%c0_175, %c0_176] : memref<96x32xf32, #tpu.memory_space<vmem>>, vector<96x32xf32>
    %c0_177 = arith.constant 0 : index
    %c0_178 = arith.constant 0 : index
    %373 = vector.load %arg21[%c0_177, %c0_178] : memref<1x32xf32, #tpu.memory_space<vmem>>, vector<1x32xf32>
    %cst_179 = arith.constant 0.000000e+00 : f32
    %374 = vector.broadcast %cst_179 : f32 to vector<2x1x32xf32>
    %cst_180 = arith.constant 0.000000e+00 : f32
    %375 = vector.broadcast %cst_180 : f32 to vector<2x1x32xf32>
    %376 = tpu.concatenate %374, %371, %375 in 1 : vector<2x1x32xf32>, vector<2x16x32xf32>, vector<2x1x32xf32> -> vector<2x18x32xf32>
    %377 = vector.extract_strided_slice %376 {offsets = [0, 0, 0], sizes = [2, 16, 32], strides = [1, 1, 1]} : vector<2x18x32xf32> to vector<2x16x32xf32>
    %378 = vector.extract_strided_slice %376 {offsets = [0, 1, 0], sizes = [2, 16, 32], strides = [1, 1, 1]} : vector<2x18x32xf32> to vector<2x16x32xf32>
    %379 = vector.extract_strided_slice %376 {offsets = [0, 2, 0], sizes = [2, 16, 32], strides = [1, 1, 1]} : vector<2x18x32xf32> to vector<2x16x32xf32>
    %380 = tpu.concatenate %377, %378, %379 in 2 : vector<2x16x32xf32>, vector<2x16x32xf32>, vector<2x16x32xf32> -> vector<2x16x96xf32>
    %381 = vector.shape_cast %380 : vector<2x16x96xf32> to vector<32x96xf32>
    %cst_181 = arith.constant dense<0.000000e+00> : vector<32x32xf32>
    %382 = tpu.matmul %381, %372, %cst_181 {dimension_numbers = #tpu.dot_dimension_numbers<[1], [0], [0], [1], [0, 0, 1, 1], [], []>} : vector<32x96xf32>, vector<96x32xf32>, vector<32x32xf32> -> vector<32x32xf32>
    %383 = vector.shape_cast %382 : vector<32x32xf32> to vector<2x16x32xf32>
    %384 = vector.shape_cast %373 : vector<1x32xf32> to vector<1x1x32xf32>
    %385 = vector.broadcast %384 : vector<1x1x32xf32> to vector<2x16x32xf32>
    %386 = arith.addf %383, %385 : vector<2x16x32xf32>
    %c0_182 = arith.constant 0 : index
    %c0_183 = arith.constant 0 : index
    %387 = vector.load %arg24[%c0_182, %c0_183] : memref<96x32xf32, #tpu.memory_space<vmem>>, vector<96x32xf32>
    %c0_184 = arith.constant 0 : index
    %c0_185 = arith.constant 0 : index
    %388 = vector.load %arg25[%c0_184, %c0_185] : memref<1x32xf32, #tpu.memory_space<vmem>>, vector<1x32xf32>
    %cst_186 = arith.constant 0.000000e+00 : f32
    %389 = vector.broadcast %cst_186 : f32 to vector<2x1x32xf32>
    %cst_187 = arith.constant 0.000000e+00 : f32
    %390 = vector.broadcast %cst_187 : f32 to vector<2x1x32xf32>
    %391 = tpu.concatenate %389, %386, %390 in 1 : vector<2x1x32xf32>, vector<2x16x32xf32>, vector<2x1x32xf32> -> vector<2x18x32xf32>
    %392 = vector.extract_strided_slice %391 {offsets = [0, 0, 0], sizes = [2, 16, 32], strides = [1, 1, 1]} : vector<2x18x32xf32> to vector<2x16x32xf32>
    %393 = vector.extract_strided_slice %391 {offsets = [0, 1, 0], sizes = [2, 16, 32], strides = [1, 1, 1]} : vector<2x18x32xf32> to vector<2x16x32xf32>
    %394 = vector.extract_strided_slice %391 {offsets = [0, 2, 0], sizes = [2, 16, 32], strides = [1, 1, 1]} : vector<2x18x32xf32> to vector<2x16x32xf32>
    %395 = tpu.concatenate %392, %393, %394 in 2 : vector<2x16x32xf32>, vector<2x16x32xf32>, vector<2x16x32xf32> -> vector<2x16x96xf32>
    %396 = vector.shape_cast %395 : vector<2x16x96xf32> to vector<32x96xf32>
    %cst_188 = arith.constant dense<0.000000e+00> : vector<32x32xf32>
    %397 = tpu.matmul %396, %387, %cst_188 {dimension_numbers = #tpu.dot_dimension_numbers<[1], [0], [0], [1], [0, 0, 1, 1], [], []>} : vector<32x96xf32>, vector<96x32xf32>, vector<32x32xf32> -> vector<32x32xf32>
    %398 = vector.shape_cast %397 : vector<32x32xf32> to vector<2x16x32xf32>
    %399 = vector.shape_cast %388 : vector<1x32xf32> to vector<1x1x32xf32>
    %400 = vector.broadcast %399 : vector<1x1x32xf32> to vector<2x16x32xf32>
    %401 = arith.addf %398, %400 : vector<2x16x32xf32>
    %cst_189 = arith.constant 0.000000e+00 : f32
    %402 = vector.broadcast %cst_189 : f32 to vector<2x16x32xf32>
    %403 = arith.maximumf %401, %402 : vector<2x16x32xf32>
    %c0_190 = arith.constant 0 : index
    %c0_191 = arith.constant 0 : index
    %404 = vector.load %arg26[%c0_190, %c0_191] : memref<96x4xf32, #tpu.memory_space<vmem>>, vector<96x4xf32>
    %c0_192 = arith.constant 0 : index
    %c0_193 = arith.constant 0 : index
    %405 = vector.load %arg27[%c0_192, %c0_193] : memref<1x4xf32, #tpu.memory_space<vmem>>, vector<1x4xf32>
    %cst_194 = arith.constant 0.000000e+00 : f32
    %406 = vector.broadcast %cst_194 : f32 to vector<2x1x32xf32>
    %cst_195 = arith.constant 0.000000e+00 : f32
    %407 = vector.broadcast %cst_195 : f32 to vector<2x1x32xf32>
    %408 = tpu.concatenate %406, %403, %407 in 1 : vector<2x1x32xf32>, vector<2x16x32xf32>, vector<2x1x32xf32> -> vector<2x18x32xf32>
    %409 = vector.extract_strided_slice %408 {offsets = [0, 0, 0], sizes = [2, 16, 32], strides = [1, 1, 1]} : vector<2x18x32xf32> to vector<2x16x32xf32>
    %410 = vector.extract_strided_slice %408 {offsets = [0, 1, 0], sizes = [2, 16, 32], strides = [1, 1, 1]} : vector<2x18x32xf32> to vector<2x16x32xf32>
    %411 = vector.extract_strided_slice %408 {offsets = [0, 2, 0], sizes = [2, 16, 32], strides = [1, 1, 1]} : vector<2x18x32xf32> to vector<2x16x32xf32>
    %412 = tpu.concatenate %409, %410, %411 in 2 : vector<2x16x32xf32>, vector<2x16x32xf32>, vector<2x16x32xf32> -> vector<2x16x96xf32>
    %413 = vector.shape_cast %412 : vector<2x16x96xf32> to vector<32x96xf32>
    %cst_196 = arith.constant dense<0.000000e+00> : vector<32x4xf32>
    %414 = tpu.matmul %413, %404, %cst_196 {dimension_numbers = #tpu.dot_dimension_numbers<[1], [0], [0], [1], [0, 0, 1, 1], [], []>} : vector<32x96xf32>, vector<96x4xf32>, vector<32x4xf32> -> vector<32x4xf32>
    %415 = vector.shape_cast %414 : vector<32x4xf32> to vector<2x16x4xf32>
    %416 = vector.shape_cast %405 : vector<1x4xf32> to vector<1x1x4xf32>
    %417 = vector.broadcast %416 : vector<1x1x4xf32> to vector<2x16x4xf32>
    %418 = arith.addf %415, %417 : vector<2x16x4xf32>
    %c0_197 = arith.constant 0 : index
    %c0_198 = arith.constant 0 : index
    %c0_199 = arith.constant 0 : index
    %419 = vector.load %arg52[%c0_197, %c0_198, %c0_199] : memref<2x16x4xf32, #tpu.memory_space<vmem>>, vector<2x16x4xf32>
    tpu.vector_store %arg52[%c0_197, %c0_198, %c0_199], %418 {strides = array<i32>} : memref<2x16x4xf32, #tpu.memory_space<vmem>>, vector<2x16x4xf32>,
    return
  }
}

</mosaic_0001>

<llo_original>
// kernel: squeeze.10
$region0: #{squeeze.10}
  %s0 = inlined_call_operand.vmem [shape: s32[8], index: 0, kind: input, shape index: {}]
  %s1 = inlined_call_operand.hbm [shape: s32[2,4], index: 1, kind: output, shape index: {}]
  $region1: #{squeeze.10} parent=0
    #allocation0 [shape = 'u8[1024]{0}', space=vmem, size = 0x400, scoped, tag = 'operand span for operand 1']
    #allocation1 [shape = 's32[1]{0}', space=sflag, size = 0x4, scoped, tag = 'scoped memory for squeeze.10']
    #allocation2 [shape = 'u8[4096]{0}', space=vmem, size = 0x1000, scoped, tag = 'scoped mem for output reshape']
    #allocation3 [shape = 'u8[4096]{0}', space=vmem, size = 0x1000, scoped, tag = 'scoped mem for input reshape']
    %2 = vsyncpa [#allocation1], 0
    %s4 = sshll.u32 1, 1
    %s5 = ssub.s32 %s4, 1
    %v6 = vld [vmem:[%s0] sm:%s5]
    %7 = vst [vmem:[#allocation3] sm:%s5] %v6
    %v8 = vld [vmem:[#allocation3] sm:$0x1]
    %vm9 = vcmask 31744
    %10 = vst.msk [vmem:[#allocation2] sm:$0x1] %vm9, %v8
    %v11 = vld [vmem:[#allocation3] sm:$0x1]
    %12 = vrot.lane.b32.xlu0 %v11, 124
    %v13 = vpop.permute.xlu0 %12
    %vm14 = vcmask 31744
    %s15 = scalar_lea.vmem [#allocation2], 1
    %16 = vst.msk [vmem:[%s15] sm:$0x1] %vm14, %v13
    %s18 = sshll.u32 1, 2
    %s19 = ssub.s32 %s18, 1
    %v21 = vld [vmem:[#allocation2] sm:%s19]
    %s22 = sshll.u32 1, 2
    %s23 = ssub.s32 %s22, 1
    %24 = vst [vmem:[#allocation0] sm:%s23] %v21
    %s26 = ssub.s32 32, 32
    %27 = vsyncadd [#allocation1], %s26
    %s29 = sshll.u32 [#allocation0], 4
    %s30 = int_to_ptr.vmem [resolvable:$true] %s29
    %32 = dma.vmem_to_hbm [thread:$0]  %s30, 32, %s1, [#allocation1]
    %33 = dma.done [#allocation1], 32
    %34 = vsyncpa [#allocation1], 1

// kernel: _lambda_.1
$region0: #{_lambda_.1}
  #allocation0 [shape = 'u32[]', space=smem, size = 0x4, offset = 0x4, fixed_abs, tag = 'smem constant byte address 0x4 - core index']
  #allocation1 [shape = 'u32[144,128]{1,0:T(1,128)}', space=vmem, size = 0x12000, scoped, tag = 'internal scratch']
  %s0 = inlined_call_operand.smem [shape: u32[56], index: -1, kind: input, shape index: {}]
  %s1 = sld [smem:[%s0]]
  %s2 = scalar_lea.smem %s0, 1
  %s3 = sld [smem:[%s2]]
  %s4 = scalar_lea.smem %s0, 2
  %s5 = sld [smem:[%s4]]
  %s6 = scalar_lea.smem %s0, 3
  %s7 = sld [smem:[%s6]]
  %s8 = scalar_lea.smem %s0, 4
  %s9 = sld [smem:[%s8]]
  %s10 = scalar_lea.smem %s0, 5
  %s11 = sld [smem:[%s10]]
  %s12 = scalar_lea.smem %s0, 6
  %s13 = sld [smem:[%s12]]
  %s14 = scalar_lea.smem %s0, 7
  %s15 = sld [smem:[%s14]]
  %s16 = scalar_lea.smem %s0, 8
  %s17 = sld [smem:[%s16]]
  %s18 = scalar_lea.smem %s0, 9
  %s19 = sld [smem:[%s18]]
  %s20 = scalar_lea.smem %s0, 10
  %s21 = sld [smem:[%s20]]
  %s22 = scalar_lea.smem %s0, 11
  %s23 = sld [smem:[%s22]]
  %s24 = scalar_lea.smem %s0, 12
  %s25 = sld [smem:[%s24]]
  %s26 = scalar_lea.smem %s0, 13
  %s27 = sld [smem:[%s26]]
  %s28 = scalar_lea.smem %s0, 14
  %s29 = sld [smem:[%s28]]
  %s30 = scalar_lea.smem %s0, 15
  %s31 = sld [smem:[%s30]]
  %s32 = scalar_lea.smem %s0, 16
  %s33 = sld [smem:[%s32]]
  %s34 = scalar_lea.smem %s0, 17
  %s35 = sld [smem:[%s34]]
  %s36 = scalar_lea.smem %s0, 18
  %s37 = sld [smem:[%s36]]
  %s38 = scalar_lea.smem %s0, 19
  %s39 = sld [smem:[%s38]]
  %s40 = scalar_lea.smem %s0, 20
  %s41 = sld [smem:[%s40]]
  %s42 = scalar_lea.smem %s0, 21
  %s43 = sld [smem:[%s42]]
  %s44 = scalar_lea.smem %s0, 22
  %s45 = sld [smem:[%s44]]
  %s46 = scalar_lea.smem %s0, 23
  %s47 = sld [smem:[%s46]]
  %s48 = scalar_lea.smem %s0, 24
  %s49 = sld [smem:[%s48]]
  %s50 = scalar_lea.smem %s0, 25
  %s51 = sld [smem:[%s50]]
  %s52 = scalar_lea.smem %s0, 26
  %s53 = sld [smem:[%s52]]
  %s54 = scalar_lea.smem %s0, 27
  %s55 = sld [smem:[%s54]]
  %s56 = scalar_lea.smem %s0, 28
  %s57 = sld [smem:[%s56]]
  %s58 = scalar_lea.smem %s0, 29
  %s59 = sld [smem:[%s58]]
  %s60 = scalar_lea.smem %s0, 30
  %s61 = sld [smem:[%s60]]
  %s62 = scalar_lea.smem %s0, 31
  %s63 = sld [smem:[%s62]]
  %s64 = scalar_lea.smem %s0, 32
  %s65 = sld [smem:[%s64]]
  %s66 = scalar_lea.smem %s0, 33
  %s67 = sld [smem:[%s66]]
  %s68 = scalar_lea.smem %s0, 34
  %s69 = sld [smem:[%s68]]
  %s70 = scalar_lea.smem %s0, 35
  %s71 = sld [smem:[%s70]]
  %s72 = scalar_lea.smem %s0, 36
  %s73 = sld [smem:[%s72]]
  %s74 = scalar_lea.smem %s0, 37
  %s75 = sld [smem:[%s74]]
  %s76 = scalar_lea.smem %s0, 38
  %s77 = sld [smem:[%s76]]
  %s78 = scalar_lea.smem %s0, 39
  %s79 = sld [smem:[%s78]]
  %s80 = scalar_lea.smem %s0, 40
  %s81 = sld [smem:[%s80]]
  %s82 = scalar_lea.smem %s0, 41
  %s83 = sld [smem:[%s82]]
  %s84 = scalar_lea.smem %s0, 42
  %s85 = sld [smem:[%s84]]
  %s86 = scalar_lea.smem %s0, 43
  %s87 = sld [smem:[%s86]]
  %s88 = scalar_lea.smem %s0, 44
  %s89 = sld [smem:[%s88]]
  %s90 = scalar_lea.smem %s0, 45
  %s91 = sld [smem:[%s90]]
  %s92 = scalar_lea.smem %s0, 46
  %s93 = sld [smem:[%s92]]
  %s94 = scalar_lea.smem %s0, 47
  %s95 = sld [smem:[%s94]]
  %s96 = scalar_lea.smem %s0, 48
  %s97 = sld [smem:[%s96]]
  %s98 = scalar_lea.smem %s0, 49
  %s99 = sld [smem:[%s98]]
  %s100 = scalar_lea.smem %s0, 50
  %s101 = sld [smem:[%s100]]
  %s102 = scalar_lea.smem %s0, 51
  %s103 = sld [smem:[%s102]]
  %s104 = scalar_lea.smem %s0, 52
  %s105 = sld [smem:[%s104]]
  %s106 = scalar_lea.smem %s0, 53
  %s107 = sld [smem:[%s106]]
  %s108 = scalar_lea.smem %s0, 54
  %s109 = sld [smem:[%s108]]
  %s110 = scalar_lea.smem %s0, 55
  %s111 = sld [smem:[%s110]]
  %112 = xla_tuple %s105, %s107, %s109, %s111
  %s113 = sld [smem:[#allocation0]]
  $region398: #{_lambda_.1} parent=0
    _
  %s115 = ssub.s32 1, %s113
  %s116 = scalar_select 0, %s115, %s113
  $region1: #{_lambda_.1} parent=0
    #allocation2 [shape = 'u8[512]{0}', space=vmem, size = 0x400, scoped, tag = 'input window, operand 3, single buffered']
    #allocation3 [shape = 's32[1]{0}', space=sflag, size = 0x4, scoped, tag = 'scoped memory for _lambda_.1']
    #allocation4 [shape = 's32[1]{0}', space=sflag, size = 0x4, scoped, tag = 'scoped memory for _lambda_.1']
    #allocation5 [shape = 'u8[16384]{0}', space=vmem, size = 0x4000, scoped, tag = 'input window, operand 4, single buffered']
    #allocation6 [shape = 's32[1]{0}', space=sflag, size = 0x4, scoped, tag = 'scoped memory for _lambda_.1']
    #allocation7 [shape = 'u8[512]{0}', space=vmem, size = 0x400, scoped, tag = 'input window, operand 5, single buffered']
    #allocation8 [shape = 'u8[512]{0}', space=vmem, size = 0x400, scoped, tag = 'input window, operand 7, single buffered']
    #allocation9 [shape = 's32[1]{0}', space=sflag, size = 0x4, scoped, tag = 'scoped memory for _lambda_.1']
    #allocation10 [shape = 'u8[16384]{0}', space=vmem, size = 0x4000, scoped, tag = 'input window, operand 8, single buffered']
    #allocation11 [shape = 'u8[512]{0}', space=vmem, size = 0x400, scoped, tag = 'input window, operand 9, single buffered']
    #allocation12 [shape = 's32[1]{0}', space=sflag, size = 0x4, scoped, tag = 'scoped memory for _lambda_.1']
    #allocation13 [shape = 'u8[512]{0}', space=vmem, size = 0x400, scoped, tag = 'input window, operand 11, single buffered']
    #allocation14 [shape = 'u8[49152]{0}', space=vmem, size = 0xc000, scoped, tag = 'input window, operand 12, single buffered']
    #allocation15 [shape = 's32[1]{0}', space=sflag, size = 0x4, scoped, tag = 'scoped memory for _lambda_.1']
    #allocation16 [shape = 'u8[512]{0}', space=vmem, size = 0x400, scoped, tag = 'input window, operand 13, single buffered']
    #allocation17 [shape = 'u8[16384]{0}', space=vmem, size = 0x4000, scoped, tag = 'input window, operand 14, single buffered']
    #allocation18 [shape = 's32[1]{0}', space=sflag, size = 0x4, scoped, tag = 'scoped memory for _lambda_.1']
    #allocation19 [shape = 'u8[512]{0}', space=vmem, size = 0x400, scoped, tag = 'input window, operand 15, single buffered']
    #allocation20 [shape = 'u8[49152]{0}', space=vmem, size = 0xc000, scoped, tag = 'input window, operand 16, single buffered']
    #allocation21 [shape = 's32[1]{0}', space=sflag, size = 0x4, scoped, tag = 'scoped memory for _lambda_.1']
    #allocation22 [shape = 'u8[512]{0}', space=vmem, size = 0x400, scoped, tag = 'input window, operand 17, single buffered']
    #allocation23 [shape = 'u8[16384]{0}', space=vmem, size = 0x4000, scoped, tag = 'input window, operand 18, single buffered']
    #allocation24 [shape = 's32[1]{0}', space=sflag, size = 0x4, scoped, tag = 'scoped memory for _lambda_.1']
    #allocation25 [shape = 'u8[512]{0}', space=vmem, size = 0x400, scoped, tag = 'input window, operand 19, single buffered']
    #allocation26 [shape = 'u8[49152]{0}', space=vmem, size = 0xc000, scoped, tag = 'input window, operand 20, single buffered']
    #allocation27 [shape = 's32[1]{0}', space=sflag, size = 0x4, scoped, tag = 'scoped memory for _lambda_.1']
    #allocation28 [shape = 'u8[512]{0}', space=vmem, size = 0x400, scoped, tag = 'input window, operand 21, single buffered']
    #allocation29 [shape = 'u8[49152]{0}', space=vmem, size = 0xc000, scoped, tag = 'input window, operand 22, single buffered']
    #allocation30 [shape = 's32[1]{0}', space=sflag, size = 0x4, scoped, tag = 'scoped memory for _lambda_.1']
    #allocation31 [shape = 'u8[512]{0}', space=vmem, size = 0x400, scoped, tag = 'input window, operand 23, single buffered']
    #allocation32 [shape = 'u8[49152]{0}', space=vmem, size = 0xc000, scoped, tag = 'input window, operand 24, single buffered']
    #allocation33 [shape = 's32[1]{0}', space=sflag, size = 0x4, scoped, tag = 'scoped memory for _lambda_.1']
    #allocation34 [shape = 'u8[512]{0}', space=vmem, size = 0x400, scoped, tag = 'input window, operand 25, single buffered']
    #allocation35 [shape = 'u8[49152]{0}', space=vmem, size = 0xc000, scoped, tag = 'input window, operand 26, single buffered']
    #allocation36 [shape = 's32[1]{0}', space=sflag, size = 0x4, scoped, tag = 'scoped memory for _lambda_.1']
    #allocation37 [shape = 'u8[512]{0}', space=vmem, size = 0x400, scoped, tag = 'input window, operand 27, single buffered']
    #allocation38 [shape = 'u8[512]{0}', space=vmem, size = 0x400, scoped, tag = 'input window, operand 29, single buffered']
    #allocation39 [shape = 's32[1]{0}', space=sflag, size = 0x4, scoped, tag = 'scoped memory for _lambda_.1']
    #allocation40 [shape = 'u8[49152]{0}', space=vmem, size = 0xc000, scoped, tag = 'input window, operand 30, single buffered']
    #allocation41 [shape = 'u8[512]{0}', space=vmem, size = 0x400, scoped, tag = 'input window, operand 31, single buffered']
    #allocation42 [shape = 's32[1]{0}', space=sflag, size = 0x4, scoped, tag = 'scoped memory for _lambda_.1']
    #allocation43 [shape = 'u8[16384]{0}', space=vmem, size = 0x4000, scoped, tag = 'input window, operand 32, single buffered']
    #allocation44 [shape = 'u8[512]{0}', space=vmem, size = 0x400, scoped, tag = 'input window, operand 33, single buffered']
    #allocation45 [shape = 's32[1]{0}', space=sflag, size = 0x4, scoped, tag = 'scoped memory for _lambda_.1']
    #allocation46 [shape = 'u8[49152]{0}', space=vmem, size = 0xc000, scoped, tag = 'input window, operand 34, single buffered']
    #allocation47 [shape = 'u8[512]{0}', space=vmem, size = 0x400, scoped, tag = 'input window, operand 35, single buffered']
    #allocation48 [shape = 's32[1]{0}', space=sflag, size = 0x4, scoped, tag = 'scoped memory for _lambda_.1']
    #allocation49 [shape = 'u8[16384]{0}', space=vmem, size = 0x4000, scoped, tag = 'input window, operand 36, single buffered']
    #allocation50 [shape = 'u8[512]{0}', space=vmem, size = 0x400, scoped, tag = 'input window, operand 37, single buffered']
    #allocation51 [shape = 's32[1]{0}', space=sflag, size = 0x4, scoped, tag = 'scoped memory for _lambda_.1']
    #allocation52 [shape = 'u8[512]{0}', space=vmem, size = 0x400, scoped, tag = 'input window, operand 39, single buffered']
    #allocation53 [shape = 'u8[49152]{0}', space=vmem, size = 0xc000, scoped, tag = 'input window, operand 40, single buffered']
    #allocation54 [shape = 's32[1]{0}', space=sflag, size = 0x4, scoped, tag = 'scoped memory for _lambda_.1']
    #allocation55 [shape = 'u8[512]{0}', space=vmem, size = 0x400, scoped, tag = 'input window, operand 41, single buffered']
    #allocation56 [shape = 'u8[16384]{0}', space=vmem, size = 0x4000, scoped, tag = 'input window, operand 42, single buffered']
    #allocation57 [shape = 's32[1]{0}', space=sflag, size = 0x4, scoped, tag = 'scoped memory for _lambda_.1']
    #allocation58 [shape = 'u8[512]{0}', space=vmem, size = 0x400, scoped, tag = 'input window, operand 43, single buffered']
    #allocation59 [shape = 'u8[8192]{0}', space=vmem, size = 0x2000, scoped, tag = 'input window, operand 48, single buffered']
    #allocation60 [shape = 's32[1]{0}', space=sflag, size = 0x4, scoped, tag = 'scoped memory for _lambda_.1']
    #allocation61 [shape = 'u8[512]{0}', space=vmem, size = 0x400, scoped, tag = 'input window, operand 51, single buffered']
    #allocation62 [shape = 'u8[512]{0}', space=vmem, size = 0x400, scoped, tag = 'output window, operand 2, single buffered']
    #allocation63 [shape = 'u8[4096]{0}', space=vmem, size = 0x1000, scoped, tag = 'output window, operand 3, single buffered']
    #allocation64 [shape = 's32[1]{0}', space=sflag, size = 0x4, scoped, tag = 'scoped memory for _lambda_.1']
    %117 = vsyncpa [#allocation3], 0
    %118 = vsyncpa [#allocation6], 0
    %119 = vsyncpa [#allocation9], 0
    %120 = vsyncpa [#allocation12], 0
    %121 = vsyncpa [#allocation15], 0
    %122 = vsyncpa [#allocation18], 0
    %123 = vsyncpa [#allocation21], 0
    %124 = vsyncpa [#allocation24], 0
    %125 = vsyncpa [#allocation27], 0
    %126 = vsyncpa [#allocation30], 0
    %127 = vsyncpa [#allocation33], 0
    %128 = vsyncpa [#allocation36], 0
    %129 = vsyncpa [#allocation39], 0
    %130 = vsyncpa [#allocation42], 0
    %131 = vsyncpa [#allocation45], 0
    %132 = vsyncpa [#allocation48], 0
    %133 = vsyncpa [#allocation51], 0
    %134 = vsyncpa [#allocation54], 0
    %135 = vsyncpa [#allocation57], 0
    %136 = vsyncpa [#allocation60], 0
    %137 = vsyncpa [#allocation4], 0
    %138 = vsyncpa [#allocation64], 0
    // Predicated region
    $region2: #{_lambda_.1} parent=1 // pred_check
      _
    $region3: #{_lambda_.1} parent=1 // pred_check_branch
      %140 = sbr.rel (0) target = $region5
    $region4: #{_lambda_.1} parent=1 // pred_region
      _
    $region5: #{_lambda_.1} parent=1 // pred_fallthru
      _
    // Predicated region
    $region6: #{_lambda_.1} parent=1 // pred_check
      _
    $region7: #{_lambda_.1} parent=1 // pred_check_branch
      %142 = sbr.rel (0) target = $region9
    $region8: #{_lambda_.1} parent=1 // pred_region
      _
    $region9: #{_lambda_.1} parent=1 // pred_fallthru
      _
    // Predicated region
    $region10: #{_lambda_.1} parent=1 // pred_check
      _
    $region11: #{_lambda_.1} parent=1 // pred_check_branch
      %144 = sbr.rel (0) target = $region13
    $region12: #{_lambda_.1} parent=1 // pred_region
      _
    $region13: #{_lambda_.1} parent=1 // pred_fallthru
      _
    // Predicated region
    $region14: #{_lambda_.1} parent=1 // pred_check
      _
    $region15: #{_lambda_.1} parent=1 // pred_check_branch
      %146 = sbr.rel (0) target = $region17
    $region16: #{_lambda_.1} parent=1 // pred_region
      %s148 = ssub.s32 16, 16
      %149 = vsyncadd [#allocation3], %s148
      %s151 = sshll.u32 [#allocation2], 4
      %s152 = int_to_ptr.vmem [resolvable:$true] %s151
      %154 = dma.hbm_to_vmem [thread:$0]  %s7, 16, %s152, [#allocation3]
    $region17: #{_lambda_.1} parent=1 // pred_fallthru
      _
    // Predicated region
    $region18: #{_lambda_.1} parent=1 // pred_check
      _
    $region19: #{_lambda_.1} parent=1 // pred_check_branch
      %156 = sbr.rel (0) target = $region21
    $region20: #{_lambda_.1} parent=1 // pred_region
      %s158 = ssub.s32 512, 512
      %159 = vsyncadd [#allocation6], %s158
      %s160 = sshll.u32 [#allocation5], 4
      %s161 = int_to_ptr.vmem [resolvable:$true] %s160
      %166 = dma.hbm_to_vmem [thread:$0]  %s9, 512, %s161, [#allocation6], 128, 128, 8
    $region21: #{_lambda_.1} parent=1 // pred_fallthru
      _
    // Predicated region
    $region22: #{_lambda_.1} parent=1 // pred_check
      _
    $region23: #{_lambda_.1} parent=1 // pred_check_branch
      %168 = sbr.rel (0) target = $region25
    $region24: #{_lambda_.1} parent=1 // pred_region
      %s170 = ssub.s32 16, 16
      %171 = vsyncadd [#allocation6], %s170
      %s173 = sshll.u32 [#allocation7], 4
      %s174 = int_to_ptr.vmem [resolvable:$true] %s173
      %176 = dma.hbm_to_vmem [thread:$0]  %s11, 16, %s174, [#allocation6]
    $region25: #{_lambda_.1} parent=1 // pred_fallthru
      _
    // Predicated region
    $region26: #{_lambda_.1} parent=1 // pred_check
      _
    $region27: #{_lambda_.1} parent=1 // pred_check_branch
      %178 = sbr.rel (0) target = $region29
    $region28: #{_lambda_.1} parent=1 // pred_region
      _
    $region29: #{_lambda_.1} parent=1 // pred_fallthru
      _
    // Predicated region
    $region30: #{_lambda_.1} parent=1 // pred_check
      _
    $region31: #{_lambda_.1} parent=1 // pred_check_branch
      %180 = sbr.rel (0) target = $region33
    $region32: #{_lambda_.1} parent=1 // pred_region
      %s182 = ssub.s32 16, 16
      %183 = vsyncadd [#allocation9], %s182
      %s185 = sshll.u32 [#allocation8], 4
      %s186 = int_to_ptr.vmem [resolvable:$true] %s185
      %188 = dma.hbm_to_vmem [thread:$0]  %s15, 16, %s186, [#allocation9]
    $region33: #{_lambda_.1} parent=1 // pred_fallthru
      _
    // Predicated region
    $region34: #{_lambda_.1} parent=1 // pred_check
      _
    $region35: #{_lambda_.1} parent=1 // pred_check_branch
      %190 = sbr.rel (0) target = $region37
    $region36: #{_lambda_.1} parent=1 // pred_region
      %s192 = ssub.s32 512, 512
      %193 = vsyncadd [#allocation9], %s192
      %s194 = sshll.u32 [#allocation10], 4
      %s195 = int_to_ptr.vmem [resolvable:$true] %s194
      %200 = dma.hbm_to_vmem [thread:$0]  %s17, 512, %s195, [#allocation9], 128, 128, 8
    $region37: #{_lambda_.1} parent=1 // pred_fallthru
      _
    // Predicated region
    $region38: #{_lambda_.1} parent=1 // pred_check
      _
    $region39: #{_lambda_.1} parent=1 // pred_check_branch
      %202 = sbr.rel (0) target = $region41
    $region40: #{_lambda_.1} parent=1 // pred_region
      %s204 = ssub.s32 16, 16
      %205 = vsyncadd [#allocation12], %s204
      %s207 = sshll.u32 [#allocation11], 4
      %s208 = int_to_ptr.vmem [resolvable:$true] %s207
      %210 = dma.hbm_to_vmem [thread:$0]  %s19, 16, %s208, [#allocation12]
    $region41: #{_lambda_.1} parent=1 // pred_fallthru
      _
    // Predicated region
    $region42: #{_lambda_.1} parent=1 // pred_check
      _
    $region43: #{_lambda_.1} parent=1 // pred_check_branch
      %212 = sbr.rel (0) target = $region45
    $region44: #{_lambda_.1} parent=1 // pred_region
      _
    $region45: #{_lambda_.1} parent=1 // pred_fallthru
      _
    // Predicated region
    $region46: #{_lambda_.1} parent=1 // pred_check
      _
    $region47: #{_lambda_.1} parent=1 // pred_check_branch
      %214 = sbr.rel (0) target = $region49
    $region48: #{_lambda_.1} parent=1 // pred_region
      %s216 = ssub.s32 16, 16
      %217 = vsyncadd [#allocation12], %s216
      %s219 = sshll.u32 [#allocation13], 4
      %s220 = int_to_ptr.vmem [resolvable:$true] %s219
      %222 = dma.hbm_to_vmem [thread:$0]  %s23, 16, %s220, [#allocation12]
    $region49: #{_lambda_.1} parent=1 // pred_fallthru
      _
    // Predicated region
    $region50: #{_lambda_.1} parent=1 // pred_check
      _
    $region51: #{_lambda_.1} parent=1 // pred_check_branch
      %224 = sbr.rel (0) target = $region53
    $region52: #{_lambda_.1} parent=1 // pred_region
      %s226 = ssub.s32 1536, 1536
      %227 = vsyncadd [#allocation15], %s226
      %s228 = sshll.u32 [#allocation14], 4
      %s229 = int_to_ptr.vmem [resolvable:$true] %s228
      %234 = dma.hbm_to_vmem [thread:$0]  %s25, 1536, %s229, [#allocation15], 128, 128, 8
    $region53: #{_lambda_.1} parent=1 // pred_fallthru
      _
    // Predicated region
    $region54: #{_lambda_.1} parent=1 // pred_check
      _
    $region55: #{_lambda_.1} parent=1 // pred_check_branch
      %236 = sbr.rel (0) target = $region57
    $region56: #{_lambda_.1} parent=1 // pred_region
      %s238 = ssub.s32 16, 16
      %239 = vsyncadd [#allocation15], %s238
      %s241 = sshll.u32 [#allocation16], 4
      %s242 = int_to_ptr.vmem [resolvable:$true] %s241
      %244 = dma.hbm_to_vmem [thread:$0]  %s27, 16, %s242, [#allocation15]
    $region57: #{_lambda_.1} parent=1 // pred_fallthru
      _
    // Predicated region
    $region58: #{_lambda_.1} parent=1 // pred_check
      _
    $region59: #{_lambda_.1} parent=1 // pred_check_branch
      %246 = sbr.rel (0) target = $region61
    $region60: #{_lambda_.1} parent=1 // pred_region
      %s248 = ssub.s32 512, 512
      %249 = vsyncadd [#allocation18], %s248
      %s250 = sshll.u32 [#allocation17], 4
      %s251 = int_to_ptr.vmem [resolvable:$true] %s250
      %256 = dma.hbm_to_vmem [thread:$0]  %s29, 512, %s251, [#allocation18], 128, 128, 8
    $region61: #{_lambda_.1} parent=1 // pred_fallthru
      _
    // Predicated region
    $region62: #{_lambda_.1} parent=1 // pred_check
      _
    $region63: #{_lambda_.1} parent=1 // pred_check_branch
      %258 = sbr.rel (0) target = $region65
    $region64: #{_lambda_.1} parent=1 // pred_region
      %s260 = ssub.s32 16, 16
      %261 = vsyncadd [#allocation18], %s260
      %s263 = sshll.u32 [#allocation19], 4
      %s264 = int_to_ptr.vmem [resolvable:$true] %s263
      %266 = dma.hbm_to_vmem [thread:$0]  %s31, 16, %s264, [#allocation18]
    $region65: #{_lambda_.1} parent=1 // pred_fallthru
      _
    // Predicated region
    $region66: #{_lambda_.1} parent=1 // pred_check
      _
    $region67: #{_lambda_.1} parent=1 // pred_check_branch
      %268 = sbr.rel (0) target = $region69
    $region68: #{_lambda_.1} parent=1 // pred_region
      %s270 = ssub.s32 1536, 1536
      %271 = vsyncadd [#allocation21], %s270
      %s272 = sshll.u32 [#allocation20], 4
      %s273 = int_to_ptr.vmem [resolvable:$true] %s272
      %278 = dma.hbm_to_vmem [thread:$0]  %s33, 1536, %s273, [#allocation21], 128, 128, 8
    $region69: #{_lambda_.1} parent=1 // pred_fallthru
      _
    // Predicated region
    $region70: #{_lambda_.1} parent=1 // pred_check
      _
    $region71: #{_lambda_.1} parent=1 // pred_check_branch
      %280 = sbr.rel (0) target = $region73
    $region72: #{_lambda_.1} parent=1 // pred_region
      %s282 = ssub.s32 16, 16
      %283 = vsyncadd [#allocation21], %s282
      %s285 = sshll.u32 [#allocation22], 4
      %s286 = int_to_ptr.vmem [resolvable:$true] %s285
      %288 = dma.hbm_to_vmem [thread:$0]  %s35, 16, %s286, [#allocation21]
    $region73: #{_lambda_.1} parent=1 // pred_fallthru
      _
    // Predicated region
    $region74: #{_lambda_.1} parent=1 // pred_check
      _
    $region75: #{_lambda_.1} parent=1 // pred_check_branch
      %290 = sbr.rel (0) target = $region77
    $region76: #{_lambda_.1} parent=1 // pred_region
      %s292 = ssub.s32 512, 512
      %293 = vsyncadd [#allocation24], %s292
      %s294 = sshll.u32 [#allocation23], 4
      %s295 = int_to_ptr.vmem [resolvable:$true] %s294
      %300 = dma.hbm_to_vmem [thread:$0]  %s37, 512, %s295, [#allocation24], 128, 128, 8
    $region77: #{_lambda_.1} parent=1 // pred_fallthru
      _
    // Predicated region
    $region78: #{_lambda_.1} parent=1 // pred_check
      _
    $region79: #{_lambda_.1} parent=1 // pred_check_branch
      %302 = sbr.rel (0) target = $region81
    $region80: #{_lambda_.1} parent=1 // pred_region
      %s304 = ssub.s32 16, 16
      %305 = vsyncadd [#allocation24], %s304
      %s307 = sshll.u32 [#allocation25], 4
      %s308 = int_to_ptr.vmem [resolvable:$true] %s307
      %310 = dma.hbm_to_vmem [thread:$0]  %s39, 16, %s308, [#allocation24]
    $region81: #{_lambda_.1} parent=1 // pred_fallthru
      _
    // Predicated region
    $region82: #{_lambda_.1} parent=1 // pred_check
      _
    $region83: #{_lambda_.1} parent=1 // pred_check_branch
      %312 = sbr.rel (0) target = $region85
    $region84: #{_lambda_.1} parent=1 // pred_region
      %s314 = ssub.s32 1536, 1536
      %315 = vsyncadd [#allocation27], %s314
      %s316 = sshll.u32 [#allocation26], 4
      %s317 = int_to_ptr.vmem [resolvable:$true] %s316
      %322 = dma.hbm_to_vmem [thread:$0]  %s41, 1536, %s317, [#allocation27], 128, 128, 8
    $region85: #{_lambda_.1} parent=1 // pred_fallthru
      _
    // Predicated region
    $region86: #{_lambda_.1} parent=1 // pred_check
      _
    $region87: #{_lambda_.1} parent=1 // pred_check_branch
      %324 = sbr.rel (0) target = $region89
    $region88: #{_lambda_.1} parent=1 // pred_region
      %s326 = ssub.s32 16, 16
      %327 = vsyncadd [#allocation27], %s326
      %s329 = sshll.u32 [#allocation28], 4
      %s330 = int_to_ptr.vmem [resolvable:$true] %s329
      %332 = dma.hbm_to_vmem [thread:$0]  %s43, 16, %s330, [#allocation27]
    $region89: #{_lambda_.1} parent=1 // pred_fallthru
      _
    // Predicated region
    $region90: #{_lambda_.1} parent=1 // pred_check
      _
    $region91: #{_lambda_.1} parent=1 // pred_check_branch
      %334 = sbr.rel (0) target = $region93
    $region92: #{_lambda_.1} parent=1 // pred_region
      %s336 = ssub.s32 1536, 1536
      %337 = vsyncadd [#allocation30], %s336
      %s338 = sshll.u32 [#allocation29], 4
      %s339 = int_to_ptr.vmem [resolvable:$true] %s338
      %344 = dma.hbm_to_vmem [thread:$0]  %s45, 1536, %s339, [#allocation30], 128, 128, 8
    $region93: #{_lambda_.1} parent=1 // pred_fallthru
      _
    // Predicated region
    $region94: #{_lambda_.1} parent=1 // pred_check
      _
    $region95: #{_lambda_.1} parent=1 // pred_check_branch
      %346 = sbr.rel (0) target = $region97
    $region96: #{_lambda_.1} parent=1 // pred_region
      %s348 = ssub.s32 16, 16
      %349 = vsyncadd [#allocation30], %s348
      %s351 = sshll.u32 [#allocation31], 4
      %s352 = int_to_ptr.vmem [resolvable:$true] %s351
      %354 = dma.hbm_to_vmem [thread:$0]  %s47, 16, %s352, [#allocation30]
    $region97: #{_lambda_.1} parent=1 // pred_fallthru
      _
    // Predicated region
    $region98: #{_lambda_.1} parent=1 // pred_check
      _
    $region99: #{_lambda_.1} parent=1 // pred_check_branch
      %356 = sbr.rel (0) target = $region101
    $region100: #{_lambda_.1} parent=1 // pred_region
      %s358 = ssub.s32 1536, 1536
      %359 = vsyncadd [#allocation33], %s358
      %s360 = sshll.u32 [#allocation32], 4
      %s361 = int_to_ptr.vmem [resolvable:$true] %s360
      %366 = dma.hbm_to_vmem [thread:$0]  %s49, 1536, %s361, [#allocation33], 128, 128, 8
    $region101: #{_lambda_.1} parent=1 // pred_fallthru
      _
    // Predicated region
    $region102: #{_lambda_.1} parent=1 // pred_check
      _
    $region103: #{_lambda_.1} parent=1 // pred_check_branch
      %368 = sbr.rel (0) target = $region105
    $region104: #{_lambda_.1} parent=1 // pred_region
      %s370 = ssub.s32 16, 16
      %371 = vsyncadd [#allocation33], %s370
      %s373 = sshll.u32 [#allocation34], 4
      %s374 = int_to_ptr.vmem [resolvable:$true] %s373
      %376 = dma.hbm_to_vmem [thread:$0]  %s51, 16, %s374, [#allocation33]
    $region105: #{_lambda_.1} parent=1 // pred_fallthru
      _
    // Predicated region
    $region106: #{_lambda_.1} parent=1 // pred_check
      _
    $region107: #{_lambda_.1} parent=1 // pred_check_branch
      %378 = sbr.rel (0) target = $region109
    $region108: #{_lambda_.1} parent=1 // pred_region
      %s380 = ssub.s32 1536, 1536
      %381 = vsyncadd [#allocation36], %s380
      %s382 = sshll.u32 [#allocation35], 4
      %s383 = int_to_ptr.vmem [resolvable:$true] %s382
      %388 = dma.hbm_to_vmem [thread:$0]  %s53, 1536, %s383, [#allocation36], 128, 128, 8
    $region109: #{_lambda_.1} parent=1 // pred_fallthru
      _
    // Predicated region
    $region110: #{_lambda_.1} parent=1 // pred_check
      _
    $region111: #{_lambda_.1} parent=1 // pred_check_branch
      %390 = sbr.rel (0) target = $region113
    $region112: #{_lambda_.1} parent=1 // pred_region
      %s392 = ssub.s32 16, 16
      %393 = vsyncadd [#allocation36], %s392
      %s395 = sshll.u32 [#allocation37], 4
      %s396 = int_to_ptr.vmem [resolvable:$true] %s395
      %398 = dma.hbm_to_vmem [thread:$0]  %s55, 16, %s396, [#allocation36]
    $region113: #{_lambda_.1} parent=1 // pred_fallthru
      _
    // Predicated region
    $region114: #{_lambda_.1} parent=1 // pred_check
      _
    $region115: #{_lambda_.1} parent=1 // pred_check_branch
      %400 = sbr.rel (0) target = $region117
    $region116: #{_lambda_.1} parent=1 // pred_region
      _
    $region117: #{_lambda_.1} parent=1 // pred_fallthru
      _
    // Predicated region
    $region118: #{_lambda_.1} parent=1 // pred_check
      _
    $region119: #{_lambda_.1} parent=1 // pred_check_branch
      %402 = sbr.rel (0) target = $region121
    $region120: #{_lambda_.1} parent=1 // pred_region
      %s404 = ssub.s32 16, 16
      %405 = vsyncadd [#allocation39], %s404
      %s407 = sshll.u32 [#allocation38], 4
      %s408 = int_to_ptr.vmem [resolvable:$true] %s407
      %410 = dma.hbm_to_vmem [thread:$0]  %s59, 16, %s408, [#allocation39]
    $region121: #{_lambda_.1} parent=1 // pred_fallthru
      _
    // Predicated region
    $region122: #{_lambda_.1} parent=1 // pred_check
      _
    $region123: #{_lambda_.1} parent=1 // pred_check_branch
      %412 = sbr.rel (0) target = $region125
    $region124: #{_lambda_.1} parent=1 // pred_region
      %s414 = ssub.s32 1536, 1536
      %415 = vsyncadd [#allocation39], %s414
      %s416 = sshll.u32 [#allocation40], 4
      %s417 = int_to_ptr.vmem [resolvable:$true] %s416
      %422 = dma.hbm_to_vmem [thread:$0]  %s61, 1536, %s417, [#allocation39], 128, 128, 8
    $region125: #{_lambda_.1} parent=1 // pred_fallthru
      _
    // Predicated region
    $region126: #{_lambda_.1} parent=1 // pred_check
      _
    $region127: #{_lambda_.1} parent=1 // pred_check_branch
      %424 = sbr.rel (0) target = $region129
    $region128: #{_lambda_.1} parent=1 // pred_region
      %s426 = ssub.s32 16, 16
      %427 = vsyncadd [#allocation42], %s426
      %s429 = sshll.u32 [#allocation41], 4
      %s430 = int_to_ptr.vmem [resolvable:$true] %s429
      %432 = dma.hbm_to_vmem [thread:$0]  %s63, 16, %s430, [#allocation42]
    $region129: #{_lambda_.1} parent=1 // pred_fallthru
      _
    // Predicated region
    $region130: #{_lambda_.1} parent=1 // pred_check
      _
    $region131: #{_lambda_.1} parent=1 // pred_check_branch
      %434 = sbr.rel (0) target = $region133
    $region132: #{_lambda_.1} parent=1 // pred_region
      %s436 = ssub.s32 512, 512
      %437 = vsyncadd [#allocation42], %s436
      %s438 = sshll.u32 [#allocation43], 4
      %s439 = int_to_ptr.vmem [resolvable:$true] %s438
      %444 = dma.hbm_to_vmem [thread:$0]  %s65, 512, %s439, [#allocation42], 128, 128, 8
    $region133: #{_lambda_.1} parent=1 // pred_fallthru
      _
    // Predicated region
    $region134: #{_lambda_.1} parent=1 // pred_check
      _
    $region135: #{_lambda_.1} parent=1 // pred_check_branch
      %446 = sbr.rel (0) target = $region137
    $region136: #{_lambda_.1} parent=1 // pred_region
      %s448 = ssub.s32 16, 16
      %449 = vsyncadd [#allocation45], %s448
      %s451 = sshll.u32 [#allocation44], 4
      %s452 = int_to_ptr.vmem [resolvable:$true] %s451
      %454 = dma.hbm_to_vmem [thread:$0]  %s67, 16, %s452, [#allocation45]
    $region137: #{_lambda_.1} parent=1 // pred_fallthru
      _
    // Predicated region
    $region138: #{_lambda_.1} parent=1 // pred_check
      _
    $region139: #{_lambda_.1} parent=1 // pred_check_branch
      %456 = sbr.rel (0) target = $region141
    $region140: #{_lambda_.1} parent=1 // pred_region
      %s458 = ssub.s32 1536, 1536
      %459 = vsyncadd [#allocation45], %s458
      %s460 = sshll.u32 [#allocation46], 4
      %s461 = int_to_ptr.vmem [resolvable:$true] %s460
      %466 = dma.hbm_to_vmem [thread:$0]  %s69, 1536, %s461, [#allocation45], 128, 128, 8
    $region141: #{_lambda_.1} parent=1 // pred_fallthru
      _
    // Predicated region
    $region142: #{_lambda_.1} parent=1 // pred_check
      _
    $region143: #{_lambda_.1} parent=1 // pred_check_branch
      %468 = sbr.rel (0) target = $region145
    $region144: #{_lambda_.1} parent=1 // pred_region
      %s470 = ssub.s32 16, 16
      %471 = vsyncadd [#allocation48], %s470
      %s473 = sshll.u32 [#allocation47], 4
      %s474 = int_to_ptr.vmem [resolvable:$true] %s473
      %476 = dma.hbm_to_vmem [thread:$0]  %s71, 16, %s474, [#allocation48]
    $region145: #{_lambda_.1} parent=1 // pred_fallthru
      _
    // Predicated region
    $region146: #{_lambda_.1} parent=1 // pred_check
      _
    $region147: #{_lambda_.1} parent=1 // pred_check_branch
      %478 = sbr.rel (0) target = $region149
    $region148: #{_lambda_.1} parent=1 // pred_region
      %s480 = ssub.s32 512, 512
      %481 = vsyncadd [#allocation48], %s480
      %s482 = sshll.u32 [#allocation49], 4
      %s483 = int_to_ptr.vmem [resolvable:$true] %s482
      %488 = dma.hbm_to_vmem [thread:$0]  %s73, 512, %s483, [#allocation48], 128, 128, 8
    $region149: #{_lambda_.1} parent=1 // pred_fallthru
      _
    // Predicated region
    $region150: #{_lambda_.1} parent=1 // pred_check
      _
    $region151: #{_lambda_.1} parent=1 // pred_check_branch
      %490 = sbr.rel (0) target = $region153
    $region152: #{_lambda_.1} parent=1 // pred_region
      %s492 = ssub.s32 16, 16
      %493 = vsyncadd [#allocation51], %s492
      %s495 = sshll.u32 [#allocation50], 4
      %s496 = int_to_ptr.vmem [resolvable:$true] %s495
      %498 = dma.hbm_to_vmem [thread:$0]  %s75, 16, %s496, [#allocation51]
    $region153: #{_lambda_.1} parent=1 // pred_fallthru
      _
    // Predicated region
    $region154: #{_lambda_.1} parent=1 // pred_check
      _
    $region155: #{_lambda_.1} parent=1 // pred_check_branch
      %500 = sbr.rel (0) target = $region157
    $region156: #{_lambda_.1} parent=1 // pred_region
      _
    $region157: #{_lambda_.1} parent=1 // pred_fallthru
      _
    // Predicated region
    $region158: #{_lambda_.1} parent=1 // pred_check
      _
    $region159: #{_lambda_.1} parent=1 // pred_check_branch
      %502 = sbr.rel (0) target = $region161
    $region160: #{_lambda_.1} parent=1 // pred_region
      %s504 = ssub.s32 16, 16
      %505 = vsyncadd [#allocation51], %s504
      %s507 = sshll.u32 [#allocation52], 4
      %s508 = int_to_ptr.vmem [resolvable:$true] %s507
      %510 = dma.hbm_to_vmem [thread:$0]  %s79, 16, %s508, [#allocation51]
    $region161: #{_lambda_.1} parent=1 // pred_fallthru
      _
    // Predicated region
    $region162: #{_lambda_.1} parent=1 // pred_check
      _
    $region163: #{_lambda_.1} parent=1 // pred_check_branch
      %512 = sbr.rel (0) target = $region165
    $region164: #{_lambda_.1} parent=1 // pred_region
      %s514 = ssub.s32 1536, 1536
      %515 = vsyncadd [#allocation54], %s514
      %s516 = sshll.u32 [#allocation53], 4
      %s517 = int_to_ptr.vmem [resolvable:$true] %s516
      %522 = dma.hbm_to_vmem [thread:$0]  %s81, 1536, %s517, [#allocation54], 128, 128, 8
    $region165: #{_lambda_.1} parent=1 // pred_fallthru
      _
    // Predicated region
    $region166: #{_lambda_.1} parent=1 // pred_check
      _
    $region167: #{_lambda_.1} parent=1 // pred_check_branch
      %524 = sbr.rel (0) target = $region169
    $region168: #{_lambda_.1} parent=1 // pred_region
      %s526 = ssub.s32 16, 16
      %527 = vsyncadd [#allocation54], %s526
      %s529 = sshll.u32 [#allocation55], 4
      %s530 = int_to_ptr.vmem [resolvable:$true] %s529
      %532 = dma.hbm_to_vmem [thread:$0]  %s83, 16, %s530, [#allocation54]
    $region169: #{_lambda_.1} parent=1 // pred_fallthru
      _
    // Predicated region
    $region170: #{_lambda_.1} parent=1 // pred_check
      _
    $region171: #{_lambda_.1} parent=1 // pred_check_branch
      %534 = sbr.rel (0) target = $region173
    $region172: #{_lambda_.1} parent=1 // pred_region
      %s536 = ssub.s32 512, 512
      %537 = vsyncadd [#allocation57], %s536
      %s538 = sshll.u32 [#allocation56], 4
      %s539 = int_to_ptr.vmem [resolvable:$true] %s538
      %544 = dma.hbm_to_vmem [thread:$0]  %s85, 512, %s539, [#allocation57], 128, 128, 8
    $region173: #{_lambda_.1} parent=1 // pred_fallthru
      _
    // Predicated region
    $region174: #{_lambda_.1} parent=1 // pred_check
      _
    $region175: #{_lambda_.1} parent=1 // pred_check_branch
      %546 = sbr.rel (0) target = $region177
    $region176: #{_lambda_.1} parent=1 // pred_region
      %s548 = ssub.s32 16, 16
      %549 = vsyncadd [#allocation57], %s548
      %s551 = sshll.u32 [#allocation58], 4
      %s552 = int_to_ptr.vmem [resolvable:$true] %s551
      %554 = dma.hbm_to_vmem [thread:$0]  %s87, 16, %s552, [#allocation57]
    $region177: #{_lambda_.1} parent=1 // pred_fallthru
      _
    // Predicated region
    $region178: #{_lambda_.1} parent=1 // pred_check
      _
    $region179: #{_lambda_.1} parent=1 // pred_check_branch
      %556 = sbr.rel (0) target = $region181
    $region180: #{_lambda_.1} parent=1 // pred_region
      _
    $region181: #{_lambda_.1} parent=1 // pred_fallthru
      _
    // Predicated region
    $region182: #{_lambda_.1} parent=1 // pred_check
      _
    $region183: #{_lambda_.1} parent=1 // pred_check_branch
      %558 = sbr.rel (0) target = $region185
    $region184: #{_lambda_.1} parent=1 // pred_region
      _
    $region185: #{_lambda_.1} parent=1 // pred_fallthru
      _
    // Predicated region
    $region186: #{_lambda_.1} parent=1 // pred_check
      _
    $region187: #{_lambda_.1} parent=1 // pred_check_branch
      %560 = sbr.rel (0) target = $region189
    $region188: #{_lambda_.1} parent=1 // pred_region
      _
    $region189: #{_lambda_.1} parent=1 // pred_fallthru
      _
    // Predicated region
    $region190: #{_lambda_.1} parent=1 // pred_check
      _
    $region191: #{_lambda_.1} parent=1 // pred_check_branch
      %562 = sbr.rel (0) target = $region193
    $region192: #{_lambda_.1} parent=1 // pred_region
      _
    $region193: #{_lambda_.1} parent=1 // pred_fallthru
      _
    // Predicated region
    $region194: #{_lambda_.1} parent=1 // pred_check
      _
    $region195: #{_lambda_.1} parent=1 // pred_check_branch
      %564 = sbr.rel (0) target = $region197
    $region196: #{_lambda_.1} parent=1 // pred_region
      %s566 = ssub.s32 256, 256
      %567 = vsyncadd [#allocation60], %s566
      %s568 = sshll.u32 [#allocation59], 4
      %s569 = int_to_ptr.vmem [resolvable:$true] %s568
      %574 = dma.hbm_to_vmem [thread:$0]  %s97, 256, %s569, [#allocation60], 128, 128, 8
    $region197: #{_lambda_.1} parent=1 // pred_fallthru
      _
    // Predicated region
    $region198: #{_lambda_.1} parent=1 // pred_check
      _
    $region199: #{_lambda_.1} parent=1 // pred_check_branch
      %576 = sbr.rel (0) target = $region201
    $region200: #{_lambda_.1} parent=1 // pred_region
      _
    $region201: #{_lambda_.1} parent=1 // pred_fallthru
      _
    // Predicated region
    $region202: #{_lambda_.1} parent=1 // pred_check
      _
    $region203: #{_lambda_.1} parent=1 // pred_check_branch
      %578 = sbr.rel (0) target = $region205
    $region204: #{_lambda_.1} parent=1 // pred_region
      _
    $region205: #{_lambda_.1} parent=1 // pred_fallthru
      _
    // Predicated region
    $region206: #{_lambda_.1} parent=1 // pred_check
      _
    $region207: #{_lambda_.1} parent=1 // pred_check_branch
      %580 = sbr.rel (0) target = $region209
    $region208: #{_lambda_.1} parent=1 // pred_region
      %s582 = ssub.s32 16, 16
      %583 = vsyncadd [#allocation60], %s582
      %s585 = sshll.u32 [#allocation61], 4
      %s586 = int_to_ptr.vmem [resolvable:$true] %s585
      %588 = dma.hbm_to_vmem [thread:$0]  %s103, 16, %s586, [#allocation60]
    $region209: #{_lambda_.1} parent=1 // pred_fallthru
      _
    // Predicated region
    $region210: #{_lambda_.1} parent=1 // pred_check
      _
    $region211: #{_lambda_.1} parent=1 // pred_check_branch
      %590 = sbr.rel (0) target = $region213
    $region212: #{_lambda_.1} parent=1 // pred_region
      %591 = dma.done [#allocation3], 16
    $region213: #{_lambda_.1} parent=1 // pred_fallthru
      _
    // Predicated region
    $region214: #{_lambda_.1} parent=1 // pred_check
      _
    $region215: #{_lambda_.1} parent=1 // pred_check_branch
      %593 = sbr.rel (0) target = $region217
    $region216: #{_lambda_.1} parent=1 // pred_region
      %594 = dma.done [#allocation6], 512
    $region217: #{_lambda_.1} parent=1 // pred_fallthru
      _
    // Predicated region
    $region218: #{_lambda_.1} parent=1 // pred_check
      _
    $region219: #{_lambda_.1} parent=1 // pred_check_branch
      %596 = sbr.rel (0) target = $region221
    $region220: #{_lambda_.1} parent=1 // pred_region
      %597 = dma.done [#allocation6], 16
    $region221: #{_lambda_.1} parent=1 // pred_fallthru
      _
    // Predicated region
    $region222: #{_lambda_.1} parent=1 // pred_check
      _
    $region223: #{_lambda_.1} parent=1 // pred_check_branch
      %599 = sbr.rel (0) target = $region225
    $region224: #{_lambda_.1} parent=1 // pred_region
      %600 = dma.done [#allocation9], 16
    $region225: #{_lambda_.1} parent=1 // pred_fallthru
      _
    // Predicated region
    $region226: #{_lambda_.1} parent=1 // pred_check
      _
    $region227: #{_lambda_.1} parent=1 // pred_check_branch
      %602 = sbr.rel (0) target = $region229
    $region228: #{_lambda_.1} parent=1 // pred_region
      %603 = dma.done [#allocation9], 512
    $region229: #{_lambda_.1} parent=1 // pred_fallthru
      _
    // Predicated region
    $region230: #{_lambda_.1} parent=1 // pred_check
      _
    $region231: #{_lambda_.1} parent=1 // pred_check_branch
      %605 = sbr.rel (0) target = $region233
    $region232: #{_lambda_.1} parent=1 // pred_region
      %606 = dma.done [#allocation12], 16
    $region233: #{_lambda_.1} parent=1 // pred_fallthru
      _
    // Predicated region
    $region234: #{_lambda_.1} parent=1 // pred_check
      _
    $region235: #{_lambda_.1} parent=1 // pred_check_branch
      %608 = sbr.rel (0) target = $region237
    $region236: #{_lambda_.1} parent=1 // pred_region
      %609 = dma.done [#allocation12], 16
    $region237: #{_lambda_.1} parent=1 // pred_fallthru
      _
    // Predicated region
    $region238: #{_lambda_.1} parent=1 // pred_check
      _
    $region239: #{_lambda_.1} parent=1 // pred_check_branch
      %611 = sbr.rel (0) target = $region241
    $region240: #{_lambda_.1} parent=1 // pred_region
      %612 = dma.done [#allocation15], 1536
    $region241: #{_lambda_.1} parent=1 // pred_fallthru
      _
    // Predicated region
    $region242: #{_lambda_.1} parent=1 // pred_check
      _
    $region243: #{_lambda_.1} parent=1 // pred_check_branch
      %614 = sbr.rel (0) target = $region245
    $region244: #{_lambda_.1} parent=1 // pred_region
      %615 = dma.done [#allocation15], 16
    $region245: #{_lambda_.1} parent=1 // pred_fallthru
      _
    // Predicated region
    $region246: #{_lambda_.1} parent=1 // pred_check
      _
    $region247: #{_lambda_.1} parent=1 // pred_check_branch
      %617 = sbr.rel (0) target = $region249
    $region248: #{_lambda_.1} parent=1 // pred_region
      %618 = dma.done [#allocation18], 512
    $region249: #{_lambda_.1} parent=1 // pred_fallthru
      _
    // Predicated region
    $region250: #{_lambda_.1} parent=1 // pred_check
      _
    $region251: #{_lambda_.1} parent=1 // pred_check_branch
      %620 = sbr.rel (0) target = $region253
    $region252: #{_lambda_.1} parent=1 // pred_region
      %621 = dma.done [#allocation18], 16
    $region253: #{_lambda_.1} parent=1 // pred_fallthru
      _
    // Predicated region
    $region254: #{_lambda_.1} parent=1 // pred_check
      _
    $region255: #{_lambda_.1} parent=1 // pred_check_branch
      %623 = sbr.rel (0) target = $region257
    $region256: #{_lambda_.1} parent=1 // pred_region
      %624 = dma.done [#allocation21], 1536
    $region257: #{_lambda_.1} parent=1 // pred_fallthru
      _
    // Predicated region
    $region258: #{_lambda_.1} parent=1 // pred_check
      _
    $region259: #{_lambda_.1} parent=1 // pred_check_branch
      %626 = sbr.rel (0) target = $region261
    $region260: #{_lambda_.1} parent=1 // pred_region
      %627 = dma.done [#allocation21], 16
    $region261: #{_lambda_.1} parent=1 // pred_fallthru
      _
    // Predicated region
    $region262: #{_lambda_.1} parent=1 // pred_check
      _
    $region263: #{_lambda_.1} parent=1 // pred_check_branch
      %629 = sbr.rel (0) target = $region265
    $region264: #{_lambda_.1} parent=1 // pred_region
      %630 = dma.done [#allocation24], 512
    $region265: #{_lambda_.1} parent=1 // pred_fallthru
      _
    // Predicated region
    $region266: #{_lambda_.1} parent=1 // pred_check
      _
    $region267: #{_lambda_.1} parent=1 // pred_check_branch
      %632 = sbr.rel (0) target = $region269
    $region268: #{_lambda_.1} parent=1 // pred_region
      %633 = dma.done [#allocation24], 16
    $region269: #{_lambda_.1} parent=1 // pred_fallthru
      _
    // Predicated region
    $region270: #{_lambda_.1} parent=1 // pred_check
      _
    $region271: #{_lambda_.1} parent=1 // pred_check_branch
      %635 = sbr.rel (0) target = $region273
    $region272: #{_lambda_.1} parent=1 // pred_region
      %636 = dma.done [#allocation27], 1536
    $region273: #{_lambda_.1} parent=1 // pred_fallthru
      _
    // Predicated region
    $region274: #{_lambda_.1} parent=1 // pred_check
      _
    $region275: #{_lambda_.1} parent=1 // pred_check_branch
      %638 = sbr.rel (0) target = $region277
    $region276: #{_lambda_.1} parent=1 // pred_region
      %639 = dma.done [#allocation27], 16
    $region277: #{_lambda_.1} parent=1 // pred_fallthru
      _
    // Predicated region
    $region278: #{_lambda_.1} parent=1 // pred_check
      _
    $region279: #{_lambda_.1} parent=1 // pred_check_branch
      %641 = sbr.rel (0) target = $region281
    $region280: #{_lambda_.1} parent=1 // pred_region
      %642 = dma.done [#allocation30], 1536
    $region281: #{_lambda_.1} parent=1 // pred_fallthru
      _
    // Predicated region
    $region282: #{_lambda_.1} parent=1 // pred_check
      _
    $region283: #{_lambda_.1} parent=1 // pred_check_branch
      %644 = sbr.rel (0) target = $region285
    $region284: #{_lambda_.1} parent=1 // pred_region
      %645 = dma.done [#allocation30], 16
    $region285: #{_lambda_.1} parent=1 // pred_fallthru
      _
    // Predicated region
    $region286: #{_lambda_.1} parent=1 // pred_check
      _
    $region287: #{_lambda_.1} parent=1 // pred_check_branch
      %647 = sbr.rel (0) target = $region289
    $region288: #{_lambda_.1} parent=1 // pred_region
      %648 = dma.done [#allocation33], 1536
    $region289: #{_lambda_.1} parent=1 // pred_fallthru
      _
    // Predicated region
    $region290: #{_lambda_.1} parent=1 // pred_check
      _
    $region291: #{_lambda_.1} parent=1 // pred_check_branch
      %650 = sbr.rel (0) target = $region293
    $region292: #{_lambda_.1} parent=1 // pred_region
      %651 = dma.done [#allocation33], 16
    $region293: #{_lambda_.1} parent=1 // pred_fallthru
      _
    // Predicated region
    $region294: #{_lambda_.1} parent=1 // pred_check
      _
    $region295: #{_lambda_.1} parent=1 // pred_check_branch
      %653 = sbr.rel (0) target = $region297
    $region296: #{_lambda_.1} parent=1 // pred_region
      %654 = dma.done [#allocation36], 1536
    $region297: #{_lambda_.1} parent=1 // pred_fallthru
      _
    // Predicated region
    $region298: #{_lambda_.1} parent=1 // pred_check
      _
    $region299: #{_lambda_.1} parent=1 // pred_check_branch
      %656 = sbr.rel (0) target = $region301
    $region300: #{_lambda_.1} parent=1 // pred_region
      %657 = dma.done [#allocation36], 16
    $region301: #{_lambda_.1} parent=1 // pred_fallthru
      _
    // Predicated region
    $region302: #{_lambda_.1} parent=1 // pred_check
      _
    $region303: #{_lambda_.1} parent=1 // pred_check_branch
      %659 = sbr.rel (0) target = $region305
    $region304: #{_lambda_.1} parent=1 // pred_region
      %660 = dma.done [#allocation39], 16
    $region305: #{_lambda_.1} parent=1 // pred_fallthru
      _
    // Predicated region
    $region306: #{_lambda_.1} parent=1 // pred_check
      _
    $region307: #{_lambda_.1} parent=1 // pred_check_branch
      %662 = sbr.rel (0) target = $region309
    $region308: #{_lambda_.1} parent=1 // pred_region
      %663 = dma.done [#allocation39], 1536
    $region309: #{_lambda_.1} parent=1 // pred_fallthru
      _
    // Predicated region
    $region310: #{_lambda_.1} parent=1 // pred_check
      _
    $region311: #{_lambda_.1} parent=1 // pred_check_branch
      %665 = sbr.rel (0) target = $region313
    $region312: #{_lambda_.1} parent=1 // pred_region
      %666 = dma.done [#allocation42], 16
    $region313: #{_lambda_.1} parent=1 // pred_fallthru
      _
    // Predicated region
    $region314: #{_lambda_.1} parent=1 // pred_check
      _
    $region315: #{_lambda_.1} parent=1 // pred_check_branch
      %668 = sbr.rel (0) target = $region317
    $region316: #{_lambda_.1} parent=1 // pred_region
      %669 = dma.done [#allocation42], 512
    $region317: #{_lambda_.1} parent=1 // pred_fallthru
      _
    // Predicated region
    $region318: #{_lambda_.1} parent=1 // pred_check
      _
    $region319: #{_lambda_.1} parent=1 // pred_check_branch
      %671 = sbr.rel (0) target = $region321
    $region320: #{_lambda_.1} parent=1 // pred_region
      %672 = dma.done [#allocation45], 16
    $region321: #{_lambda_.1} parent=1 // pred_fallthru
      _
    // Predicated region
    $region322: #{_lambda_.1} parent=1 // pred_check
      _
    $region323: #{_lambda_.1} parent=1 // pred_check_branch
      %674 = sbr.rel (0) target = $region325
    $region324: #{_lambda_.1} parent=1 // pred_region
      %675 = dma.done [#allocation45], 1536
    $region325: #{_lambda_.1} parent=1 // pred_fallthru
      _
    // Predicated region
    $region326: #{_lambda_.1} parent=1 // pred_check
      _
    $region327: #{_lambda_.1} parent=1 // pred_check_branch
      %677 = sbr.rel (0) target = $region329
    $region328: #{_lambda_.1} parent=1 // pred_region
      %678 = dma.done [#allocation48], 16
    $region329: #{_lambda_.1} parent=1 // pred_fallthru
      _
    // Predicated region
    $region330: #{_lambda_.1} parent=1 // pred_check
      _
    $region331: #{_lambda_.1} parent=1 // pred_check_branch
      %680 = sbr.rel (0) target = $region333
    $region332: #{_lambda_.1} parent=1 // pred_region
      %681 = dma.done [#allocation48], 512
    $region333: #{_lambda_.1} parent=1 // pred_fallthru
      _
    // Predicated region
    $region334: #{_lambda_.1} parent=1 // pred_check
      _
    $region335: #{_lambda_.1} parent=1 // pred_check_branch
      %683 = sbr.rel (0) target = $region337
    $region336: #{_lambda_.1} parent=1 // pred_region
      %684 = dma.done [#allocation51], 16
    $region337: #{_lambda_.1} parent=1 // pred_fallthru
      _
    // Predicated region
    $region338: #{_lambda_.1} parent=1 // pred_check
      _
    $region339: #{_lambda_.1} parent=1 // pred_check_branch
      %686 = sbr.rel (0) target = $region341
    $region340: #{_lambda_.1} parent=1 // pred_region
      %687 = dma.done [#allocation51], 16
    $region341: #{_lambda_.1} parent=1 // pred_fallthru
      _
    // Predicated region
    $region342: #{_lambda_.1} parent=1 // pred_check
      _
    $region343: #{_lambda_.1} parent=1 // pred_check_branch
      %689 = sbr.rel (0) target = $region345
    $region344: #{_lambda_.1} parent=1 // pred_region
      %690 = dma.done [#allocation54], 1536
    $region345: #{_lambda_.1} parent=1 // pred_fallthru
      _
    // Predicated region
    $region346: #{_lambda_.1} parent=1 // pred_check
      _
    $region347: #{_lambda_.1} parent=1 // pred_check_branch
      %692 = sbr.rel (0) target = $region349
    $region348: #{_lambda_.1} parent=1 // pred_region
      %693 = dma.done [#allocation54], 16
    $region349: #{_lambda_.1} parent=1 // pred_fallthru
      _
    // Predicated region
    $region350: #{_lambda_.1} parent=1 // pred_check
      _
    $region351: #{_lambda_.1} parent=1 // pred_check_branch
      %695 = sbr.rel (0) target = $region353
    $region352: #{_lambda_.1} parent=1 // pred_region
      %696 = dma.done [#allocation57], 512
    $region353: #{_lambda_.1} parent=1 // pred_fallthru
      _
    // Predicated region
    $region354: #{_lambda_.1} parent=1 // pred_check
      _
    $region355: #{_lambda_.1} parent=1 // pred_check_branch
      %698 = sbr.rel (0) target = $region357
    $region356: #{_lambda_.1} parent=1 // pred_region
      %699 = dma.done [#allocation57], 16
    $region357: #{_lambda_.1} parent=1 // pred_fallthru
      _
    // Predicated region
    $region358: #{_lambda_.1} parent=1 // pred_check
      _
    $region359: #{_lambda_.1} parent=1 // pred_check_branch
      %701 = sbr.rel (0) target = $region361
    $region360: #{_lambda_.1} parent=1 // pred_region
      %702 = dma.done [#allocation60], 256
    $region361: #{_lambda_.1} parent=1 // pred_fallthru
      _
    // Predicated region
    $region362: #{_lambda_.1} parent=1 // pred_check
      _
    $region363: #{_lambda_.1} parent=1 // pred_check_branch
      %704 = sbr.rel (0) target = $region365
    $region364: #{_lambda_.1} parent=1 // pred_region
      %705 = dma.done [#allocation60], 16
    $region365: #{_lambda_.1} parent=1 // pred_fallthru
      _
    %v706 = vld [vmem:[%s1] sm:$0xff]
    %v707 = vld [vmem:[%s1 + $0x8] sm:$0xff]
    %v708 = vld [vmem:[%s1 + $0x10] sm:$0xff]
    %v709 = vld [vmem:[%s1 + $0x18] sm:$0xff]
    %v710 = vld [vmem:[#allocation59] sm:$0xff]
    %v711 = vld [vmem:[#allocation59 + $0x8] sm:$0xf]
    %v712 = vld [vmem:[%s99] sm:$0x1]
    %vm717 = vcmask 1040384
    %v718 = vrot.slane %v706, 7
    %v719 = vrot.slane %v707, 7
    %v720 = vsel %vm717, %v718, %v719
    %v721 = vrot.slane %v708, 7
    %v722 = vrot.slane %v709, 7
    %v723 = vsel %vm717, %v721, %v722
    %v730 = vsel %vm717, 0.0, %v718
    %v731 = vsel %vm717, 0.0, %v721
    %v732 = vsel %vm717, %v719, 0.0
    %v733 = vsel %vm717, %v722, 0.0
    %vm738 = vcmask 1046528
    %v739 = vrot.slane %v730, 1
    %v740 = vrot.slane %v720, 1
    %v741 = vsel %vm738, %v739, %v740
    %v742 = vrot.slane %v732, 1
    %v743 = vsel %vm738, %v740, %v742
    %v744 = vrot.slane %v731, 1
    %v745 = vrot.slane %v723, 1
    %v746 = vsel %vm738, %v744, %v745
    %v747 = vrot.slane %v733, 1
    %v748 = vsel %vm738, %v745, %v747
    %749 = vrot.lane.b32.xlu0 %v741, 4
    %v750 = vpop.permute.xlu0 %749
    %751 = vrot.lane.b32.xlu0 %v743, 4
    %v752 = vpop.permute.xlu0 %751
    %753 = vrot.lane.b32.xlu0 %v746, 4
    %v754 = vpop.permute.xlu0 %753
    %755 = vrot.lane.b32.xlu0 %v748, 4
    %v756 = vpop.permute.xlu0 %755
    %vm761 = vcmask 1045504
    %v762 = vrot.slane %v730, 2
    %v763 = vrot.slane %v720, 2
    %v764 = vsel %vm761, %v762, %v763
    %v765 = vrot.slane %v732, 2
    %v766 = vsel %vm761, %v763, %v765
    %v767 = vrot.slane %v731, 2
    %v768 = vrot.slane %v723, 2
    %v769 = vsel %vm761, %v767, %v768
    %v770 = vrot.slane %v733, 2
    %v771 = vsel %vm761, %v768, %v770
    %772 = vrot.lane.b32.xlu0 %v764, 8
    %v773 = vpop.permute.xlu0 %772
    %774 = vrot.lane.b32.xlu0 %v766, 8
    %v775 = vpop.permute.xlu0 %774
    %776 = vrot.lane.b32.xlu0 %v769, 8
    %v777 = vpop.permute.xlu0 %776
    %778 = vrot.lane.b32.xlu0 %v771, 8
    %v779 = vpop.permute.xlu0 %778
    %vm784 = vcmask 31744
    %v785 = vsel %vm784, %v730, %v750
    %v786 = vsel %vm784, %v720, %v752
    %v787 = vsel %vm784, %v731, %v754
    %v788 = vsel %vm784, %v723, %v756
    %vm789 = vcmask 64512
    %v790 = vsel %vm789, %v785, %v773
    %v791 = vsel %vm789, %v786, %v775
    %v792 = vsel %vm789, %v787, %v777
    %v793 = vsel %vm789, %v788, %v779
    %vm794 = vcmask 97280
    %v796 = vsel %vm794, %v790, 0
    %v799 = vsel %vm794, %v791, 0
    %v802 = vsel %vm794, %v792, 0
    %v805 = vsel %vm794, %v793, 0
    %vm807 = vcmask 1043456
    %v809 = vsel %vm807, %v711, 0
    %811 = vmatprep.subr.mxu0 0.0
    %812 = vmatpush1.msra.mxu0 0.0
    %813 = vmatprep.subr.mxu0 0.0
    %814 = vmatpush1.msra.mxu0 0.0
    %815 = vmatprep.subr.mxu0 0.0
    %816 = vmatpush1.msra.mxu0 0.0
    %817 = vmatprep.subr.mxu0 0.0
    %818 = vmatpush1.msra.mxu0 0.0
    %819 = vmatprep.subr.mxu0 0.0
    %820 = vmatpush1.msra.mxu0 0.0
    %821 = vmatprep.subr.mxu0 0.0
    %822 = vmatpush1.msra.mxu0 0.0
    %823 = vmatprep.subr.mxu0 0.0
    %824 = vmatpush1.msra.mxu0 0.0
    %825 = vmatprep.subr.mxu0 0.0
    %826 = vmatpush1.msra.mxu0 0.0
    %827 = vmatprep.subr.mxu0 0.0
    %828 = vmatpush1.msra.mxu0 0.0
    %829 = vmatprep.subr.mxu0 0.0
    %830 = vmatpush1.msra.mxu0 0.0
    %831 = vmatprep.subr.mxu0 0.0
    %832 = vmatpush1.msra.mxu0 0.0
    %833 = vmatprep.subr.mxu0 0.0
    %834 = vmatpush1.msra.mxu0 0.0
    %835 = vmatprep.subr.mxu0 0.0
    %836 = vmatpush1.msra.mxu0 0.0
    %837 = vmatprep.subr.mxu0 0.0
    %838 = vmatpush1.msra.mxu0 0.0
    %839 = vmatprep.subr.mxu0 0.0
    %840 = vmatpush1.msra.mxu0 %v809
    %841 = vmatprep.subr.mxu0 0.0
    %842 = vmatpush1.msra.mxu0 %v710
    %843 = vmatprep.subr.mxu0 0.0
    %844 = vmatpush2.msra.mxu0 0.0
    %845 = vmatprep.subr.mxu0 0.0
    %846 = vmatpush2.msra.mxu0 0.0
    %847 = vmatprep.subr.mxu0 0.0
    %848 = vmatpush2.msra.mxu0 0.0
    %849 = vmatprep.subr.mxu0 0.0
    %850 = vmatpush2.msra.mxu0 0.0
    %851 = vmatprep.subr.mxu0 0.0
    %852 = vmatpush2.msra.mxu0 0.0
    %853 = vmatprep.subr.mxu0 0.0
    %854 = vmatpush2.msra.mxu0 0.0
    %855 = vmatprep.subr.mxu0 0.0
    %856 = vmatpush2.msra.mxu0 0.0
    %857 = vmatprep.subr.mxu0 0.0
    %858 = vmatpush2.msra.mxu0 0.0
    %859 = vmatprep.subr.mxu0 0.0
    %860 = vmatpush2.msra.mxu0 0.0
    %861 = vmatprep.subr.mxu0 0.0
    %862 = vmatpush2.msra.mxu0 0.0
    %863 = vmatprep.subr.mxu0 0.0
    %864 = vmatpush2.msra.mxu0 0.0
    %865 = vmatprep.subr.mxu0 0.0
    %866 = vmatpush2.msra.mxu0 0.0
    %867 = vmatprep.subr.mxu0 0.0
    %868 = vmatpush2.msra.mxu0 0.0
    %869 = vmatprep.subr.mxu0 0.0
    %870 = vmatpush2.msra.mxu0 0.0
    %871 = vmatprep.subr.mxu0 0.0
    %872 = vmatpush2.msra.mxu0 0.0
    %873 = vmatprep.subr.mxu0 0.0
    %874 = vmatpush2.msra.mxu0 0.0
    %875 = vmatprep.mubr.f32.mxu0 0.0
    %876 = vmatmul.mubr.f32.gmra.mxu0 %v796
    %v877 = vpop.f32.mrf.mxu0
    %v878 = vadd.f32 0.0, %v877
    %v879 = vpop.f32.mrf.mxu0
    %880 = vmatprep.mubr.f32.mxu0 0.0
    %881 = vmatmul.mubr.f32.gmra.mxu0 %v799
    %v882 = vpop.f32.mrf.mxu0
    %v883 = vadd.f32 0.0, %v882
    %v884 = vpop.f32.mrf.mxu0
    %885 = vmatprep.mubr.f32.mxu0 0.0
    %886 = vmatmul.mubr.f32.gmra.mxu0 %v802
    %v887 = vpop.f32.mrf.mxu0
    %v888 = vadd.f32 0.0, %v887
    %v889 = vpop.f32.mrf.mxu0
    %890 = vmatprep.mubr.f32.mxu0 0.0
    %891 = vmatmul.mubr.f32.gmra.mxu0 %v805
    %v892 = vpop.f32.mrf.mxu0
    %v893 = vadd.f32 0.0, %v892
    %v894 = vpop.f32.mrf.mxu0
    %895 = vdwg.mxu0
    %v897 = vlaneseq
    %v898 = vshrl.u32 %v897, 7
    %v899 = vsub.s32 0, %v898
    %v900 = vrot.slane %v712, %v899
    %v902 = vadd.f32 %v878, %v900
    %v903 = vadd.f32 %v883, %v900
    %v904 = vadd.f32 %v888, %v900
    %v905 = vadd.f32 %v893, %v900
    %v906 = vmax.f32 %v902, 0.0
    %v907 = vmax.f32 %v903, 0.0
    %v908 = vmax.f32 %v904, 0.0
    %v909 = vmax.f32 %v905, 0.0
    %v910 = vld [vmem:[%s57] sm:$0xff]
    %v911 = vld [vmem:[%s57 + $0x8] sm:$0xff]
    %v912 = vld [vmem:[%s57 + $0x10] sm:$0xff]
    %v913 = vld [vmem:[%s57 + $0x18] sm:$0xff]
    %v914 = vld [vmem:[%s57 + $0x20] sm:$0xff]
    %v915 = vld [vmem:[%s57 + $0x28] sm:$0xff]
    %v916 = vld [vmem:[%s57 + $0x30] sm:$0xff]
    %v917 = vld [vmem:[%s57 + $0x38] sm:$0xff]
    %v918 = vld [vmem:[%s57 + $0x40] sm:$0xff]
    %v919 = vld [vmem:[%s57 + $0x48] sm:$0xff]
    %v920 = vld [vmem:[%s57 + $0x50] sm:$0xff]
    %v921 = vld [vmem:[%s57 + $0x58] sm:$0xff]
    %v922 = vld [vmem:[%s57 + $0x60] sm:$0xff]
    %v923 = vld [vmem:[%s57 + $0x68] sm:$0xff]
    %v924 = vld [vmem:[%s57 + $0x70] sm:$0xff]
    %v925 = vld [vmem:[%s57 + $0x78] sm:$0xff]
    %v926 = vld [vmem:[#allocation38] sm:$0x1]
    %v931 = vrot.slane %v906, 7
    %v932 = vrot.slane %v907, 7
    %v933 = vsel %vm717, %v931, %v932
    %v934 = vrot.slane %v908, 7
    %v935 = vrot.slane %v909, 7
    %v936 = vsel %vm717, %v934, %v935
    %v943 = vsel %vm717, 0.0, %v931
    %v944 = vsel %vm717, 0.0, %v934
    %v945 = vsel %vm717, %v932, 0.0
    %v946 = vsel %vm717, %v935, 0.0
    %v951 = vrot.slane %v943, 1
    %v952 = vrot.slane %v933, 1
    %v953 = vsel %vm738, %v951, %v952
    %v954 = vrot.slane %v945, 1
    %v955 = vsel %vm738, %v952, %v954
    %v956 = vrot.slane %v944, 1
    %v957 = vrot.slane %v936, 1
    %v958 = vsel %vm738, %v956, %v957
    %v959 = vrot.slane %v946, 1
    %v960 = vsel %vm738, %v957, %v959
    %961 = vrot.lane.b32.xlu0 %v953, 32
    %v962 = vpop.permute.xlu0 %961
    %963 = vrot.lane.b32.xlu0 %v955, 32
    %v964 = vpop.permute.xlu0 %963
    %965 = vrot.lane.b32.xlu0 %v958, 32
    %v966 = vpop.permute.xlu0 %965
    %967 = vrot.lane.b32.xlu0 %v960, 32
    %v968 = vpop.permute.xlu0 %967
    %v973 = vrot.slane %v943, 2
    %v974 = vrot.slane %v933, 2
    %v975 = vsel %vm761, %v973, %v974
    %v976 = vrot.slane %v945, 2
    %v977 = vsel %vm761, %v974, %v976
    %v978 = vrot.slane %v944, 2
    %v979 = vrot.slane %v936, 2
    %v980 = vsel %vm761, %v978, %v979
    %v981 = vrot.slane %v946, 2
    %v982 = vsel %vm761, %v979, %v981
    %983 = vrot.lane.b32.xlu0 %v975, 64
    %v984 = vpop.permute.xlu0 %983
    %985 = vrot.lane.b32.xlu0 %v977, 64
    %v986 = vpop.permute.xlu0 %985
    %987 = vrot.lane.b32.xlu0 %v980, 64
    %v988 = vpop.permute.xlu0 %987
    %989 = vrot.lane.b32.xlu0 %v982, 64
    %v990 = vpop.permute.xlu0 %989
    %vm995 = vcmask 1044480
    %v996 = vrot.slane %v943, 3
    %v997 = vrot.slane %v933, 3
    %v998 = vsel %vm995, %v996, %v997
    %v999 = vrot.slane %v945, 3
    %v1000 = vsel %vm995, %v997, %v999
    %v1001 = vrot.slane %v944, 3
    %v1002 = vrot.slane %v936, 3
    %v1003 = vsel %vm995, %v1001, %v1002
    %v1004 = vrot.slane %v946, 3
    %v1005 = vsel %vm995, %v1002, %v1004
    %1006 = vrot.lane.b32.xlu0 %v998, 96
    %v1007 = vpop.permute.xlu0 %1006
    %1008 = vrot.lane.b32.xlu0 %v1000, 96
    %v1009 = vpop.permute.xlu0 %1008
    %1010 = vrot.lane.b32.xlu0 %v1003, 96
    %v1011 = vpop.permute.xlu0 %1010
    %1012 = vrot.lane.b32.xlu0 %v1005, 96
    %v1013 = vpop.permute.xlu0 %1012
    %vm1018 = vcmask 261120
    %v1019 = vsel %vm1018, %v943, %v962
    %v1020 = vsel %vm1018, %v933, %v964
    %v1021 = vsel %vm1018, %v944, %v966
    %v1022 = vsel %vm1018, %v936, %v968
    %vm1023 = vcmask 523264
    %v1024 = vsel %vm1023, %v1019, %v984
    %v1025 = vsel %vm1023, %v1020, %v986
    %v1026 = vsel %vm1023, %v1021, %v988
    %v1027 = vsel %vm1023, %v1022, %v990
    %vm1028 = vcmask 785408
    %v1029 = vsel %vm1028, %v1024, %v1007
    %v1030 = vsel %vm1028, %v1025, %v1009
    %v1031 = vsel %vm1028, %v1026, %v1011
    %v1032 = vsel %vm1028, %v1027, %v1013
    %1033 = vmatprep.subr.mxu0 0.0
    %1034 = vmatpush1.msra.mxu0 %v925
    %1035 = vmatprep.subr.mxu0 0.0
    %1036 = vmatpush1.msra.mxu0 %v924
    %1037 = vmatprep.subr.mxu0 0.0
    %1038 = vmatpush1.msra.mxu0 %v923
    %1039 = vmatprep.subr.mxu0 0.0
    %1040 = vmatpush1.msra.mxu0 %v922
    %1041 = vmatprep.subr.mxu0 0.0
    %1042 = vmatpush1.msra.mxu0 %v921
    %1043 = vmatprep.subr.mxu0 0.0
    %1044 = vmatpush1.msra.mxu0 %v920
    %1045 = vmatprep.subr.mxu0 0.0
    %1046 = vmatpush1.msra.mxu0 %v919
    %1047 = vmatprep.subr.mxu0 0.0
    %1048 = vmatpush1.msra.mxu0 %v918
    %1049 = vmatprep.subr.mxu0 0.0
    %1050 = vmatpush1.msra.mxu0 %v917
    %1051 = vmatprep.subr.mxu0 0.0
    %1052 = vmatpush1.msra.mxu0 %v916
    %1053 = vmatprep.subr.mxu0 0.0
    %1054 = vmatpush1.msra.mxu0 %v915
    %1055 = vmatprep.subr.mxu0 0.0
    %1056 = vmatpush1.msra.mxu0 %v914
    %1057 = vmatprep.subr.mxu0 0.0
    %1058 = vmatpush1.msra.mxu0 %v913
    %1059 = vmatprep.subr.mxu0 0.0
    %1060 = vmatpush1.msra.mxu0 %v912
    %1061 = vmatprep.subr.mxu0 0.0
    %1062 = vmatpush1.msra.mxu0 %v911
    %1063 = vmatprep.subr.mxu0 0.0
    %1064 = vmatpush1.msra.mxu0 %v910
    %1065 = vmatprep.subr.mxu0 0.0
    %1066 = vmatpush2.msra.mxu0 0.0
    %1067 = vmatprep.subr.mxu0 0.0
    %1068 = vmatpush2.msra.mxu0 0.0
    %1069 = vmatprep.subr.mxu0 0.0
    %1070 = vmatpush2.msra.mxu0 0.0
    %1071 = vmatprep.subr.mxu0 0.0
    %1072 = vmatpush2.msra.mxu0 0.0
    %1073 = vmatprep.subr.mxu0 0.0
    %1074 = vmatpush2.msra.mxu0 0.0
    %1075 = vmatprep.subr.mxu0 0.0
    %1076 = vmatpush2.msra.mxu0 0.0
    %1077 = vmatprep.subr.mxu0 0.0
    %1078 = vmatpush2.msra.mxu0 0.0
    %1079 = vmatprep.subr.mxu0 0.0
    %1080 = vmatpush2.msra.mxu0 0.0
    %1081 = vmatprep.subr.mxu0 0.0
    %1082 = vmatpush2.msra.mxu0 0.0
    %1083 = vmatprep.subr.mxu0 0.0
    %1084 = vmatpush2.msra.mxu0 0.0
    %1085 = vmatprep.subr.mxu0 0.0
    %1086 = vmatpush2.msra.mxu0 0.0
    %1087 = vmatprep.subr.mxu0 0.0
    %1088 = vmatpush2.msra.mxu0 0.0
    %1089 = vmatprep.subr.mxu0 0.0
    %1090 = vmatpush2.msra.mxu0 0.0
    %1091 = vmatprep.subr.mxu0 0.0
    %1092 = vmatpush2.msra.mxu0 0.0
    %1093 = vmatprep.subr.mxu0 0.0
    %1094 = vmatpush2.msra.mxu0 0.0
    %1095 = vmatprep.subr.mxu0 0.0
    %1096 = vmatpush2.msra.mxu0 0.0
    %1097 = vmatprep.mubr.f32.mxu0 0.0
    %1098 = vmatmul.mubr.f32.gmra.mxu0 %v1029
    %v1099 = vpop.f32.mrf.mxu0
    %v1100 = vadd.f32 0.0, %v1099
    %v1101 = vpop.f32.mrf.mxu0
    %1102 = vmatprep.mubr.f32.mxu0 0.0
    %1103 = vmatmul.mubr.f32.gmra.mxu0 %v1030
    %v1104 = vpop.f32.mrf.mxu0
    %v1105 = vadd.f32 0.0, %v1104
    %v1106 = vpop.f32.mrf.mxu0
    %1107 = vmatprep.mubr.f32.mxu0 0.0
    %1108 = vmatmul.mubr.f32.gmra.mxu0 %v1031
    %v1109 = vpop.f32.mrf.mxu0
    %v1110 = vadd.f32 0.0, %v1109
    %v1111 = vpop.f32.mrf.mxu0
    %1112 = vmatprep.mubr.f32.mxu0 0.0
    %1113 = vmatmul.mubr.f32.gmra.mxu0 %v1032
    %v1114 = vpop.f32.mrf.mxu0
    %v1115 = vadd.f32 0.0, %v1114
    %v1116 = vpop.f32.mrf.mxu0
    %1117 = vdwg.mxu0
    %v1119 = vlaneseq
    %v1120 = vshrl.u32 %v1119, 7
    %v1121 = vsub.s32 0, %v1120
    %v1122 = vrot.slane %v926, %v1121
    %v1124 = vadd.f32 %v1100, %v1122
    %v1125 = vadd.f32 %v1105, %v1122
    %v1126 = vadd.f32 %v1110, %v1122
    %v1127 = vadd.f32 %v1115, %v1122
    %v1132 = vcombine.high %v1124, %v1124
    %v1134 = vunpack.c.l.s4 1983009808
    %v1135 = vunpack.c.0.s8 %v1134
    %v1136 = vlaneseq
    %v1137 = vshrl.u32 %v1136, 7
    %v1138 = vsub.s32 %v1135, %v1137
    %v1139 = vrot.slane %v1124, %v1138
    %v1141 = vunpack.c.l.s4 1983009808
    %v1142 = vunpack.c.0.s8 %v1141
    %v1143 = vlaneseq
    %v1144 = vshrl.u32 %v1143, 7
    %v1145 = vsub.s32 %v1142, %v1144
    %v1146 = vrot.slane %v1132, %v1145
    %v1147 = vcombine.high %v1139, %v1139
    %v1148 = vcombine.high %v1146, %v1146
    %v1149 = vcombine.high %v1125, %v1125
    %v1151 = vunpack.c.l.s4 1983009808
    %v1152 = vunpack.c.0.s8 %v1151
    %v1153 = vlaneseq
    %v1154 = vshrl.u32 %v1153, 7
    %v1155 = vsub.s32 %v1152, %v1154
    %v1156 = vrot.slane %v1125, %v1155
    %v1158 = vunpack.c.l.s4 1983009808
    %v1159 = vunpack.c.0.s8 %v1158
    %v1160 = vlaneseq
    %v1161 = vshrl.u32 %v1160, 7
    %v1162 = vsub.s32 %v1159, %v1161
    %v1163 = vrot.slane %v1149, %v1162
    %v1164 = vcombine.high %v1156, %v1156
    %v1165 = vcombine.high %v1163, %v1163
    %v1166 = vcombine.high %v1126, %v1126
    %v1168 = vunpack.c.l.s4 1983009808
    %v1169 = vunpack.c.0.s8 %v1168
    %v1170 = vlaneseq
    %v1171 = vshrl.u32 %v1170, 7
    %v1172 = vsub.s32 %v1169, %v1171
    %v1173 = vrot.slane %v1126, %v1172
    %v1175 = vunpack.c.l.s4 1983009808
    %v1176 = vunpack.c.0.s8 %v1175
    %v1177 = vlaneseq
    %v1178 = vshrl.u32 %v1177, 7
    %v1179 = vsub.s32 %v1176, %v1178
    %v1180 = vrot.slane %v1166, %v1179
    %v1181 = vcombine.high %v1173, %v1173
    %v1182 = vcombine.high %v1180, %v1180
    %v1183 = vcombine.high %v1127, %v1127
    %v1185 = vunpack.c.l.s4 1983009808
    %v1186 = vunpack.c.0.s8 %v1185
    %v1187 = vlaneseq
    %v1188 = vshrl.u32 %v1187, 7
    %v1189 = vsub.s32 %v1186, %v1188
    %v1190 = vrot.slane %v1127, %v1189
    %v1192 = vunpack.c.l.s4 1983009808
    %v1193 = vunpack.c.0.s8 %v1192
    %v1194 = vlaneseq
    %v1195 = vshrl.u32 %v1194, 7
    %v1196 = vsub.s32 %v1193, %v1195
    %v1197 = vrot.slane %v1183, %v1196
    %v1198 = vcombine.high %v1190, %v1190
    %v1199 = vcombine.high %v1197, %v1197
    %v1216 = vld [vmem:[#allocation40] sm:$0xff]
    %v1217 = vld [vmem:[#allocation40 + $0x8] sm:$0xff]
    %v1218 = vld [vmem:[#allocation40 + $0x10] sm:$0xff]
    %v1219 = vld [vmem:[#allocation40 + $0x18] sm:$0xff]
    %v1220 = vld [vmem:[#allocation40 + $0x20] sm:$0xff]
    %v1221 = vld [vmem:[#allocation40 + $0x28] sm:$0xff]
    %v1222 = vld [vmem:[#allocation40 + $0x30] sm:$0xff]
    %v1223 = vld [vmem:[#allocation40 + $0x38] sm:$0xff]
    %v1224 = vld [vmem:[#allocation40 + $0x40] sm:$0xff]
    %v1225 = vld [vmem:[#allocation40 + $0x48] sm:$0xff]
    %v1226 = vld [vmem:[#allocation40 + $0x50] sm:$0xff]
    %v1227 = vld [vmem:[#allocation40 + $0x58] sm:$0xff]
    %v1228 = vld [vmem:[#allocation41] sm:$0x1]
    %v1229 = vmax.f32 %v1139, 0.0
    %v1230 = vmax.f32 %v1147, 0.0
    %v1231 = vmax.f32 %v1146, 0.0
    %v1232 = vmax.f32 %v1148, 0.0
    %v1233 = vmax.f32 %v1156, 0.0
    %v1234 = vmax.f32 %v1164, 0.0
    %v1235 = vmax.f32 %v1163, 0.0
    %v1236 = vmax.f32 %v1165, 0.0
    %v1237 = vmax.f32 %v1173, 0.0
    %v1238 = vmax.f32 %v1181, 0.0
    %v1239 = vmax.f32 %v1180, 0.0
    %v1240 = vmax.f32 %v1182, 0.0
    %v1241 = vmax.f32 %v1190, 0.0
    %v1242 = vmax.f32 %v1198, 0.0
    %v1243 = vmax.f32 %v1197, 0.0
    %v1244 = vmax.f32 %v1199, 0.0
    %v1261 = vlaneseq
    %v1262 = vshrl.u32 %v1261, 7
    %v1263 = vsub.s32 0, %v1262
    %v1264 = vrot.slane %v1229, %v1263
    %v1265 = vlaneseq
    %v1266 = vshrl.u32 %v1265, 7
    %v1267 = vsub.s32 0, %v1266
    %v1268 = vrot.slane %v1230, %v1267
    %v1269 = vlaneseq
    %v1270 = vshrl.u32 %v1269, 7
    %v1271 = vsub.s32 0, %v1270
    %v1272 = vrot.slane %v1231, %v1271
    %v1273 = vlaneseq
    %v1274 = vshrl.u32 %v1273, 7
    %v1275 = vsub.s32 0, %v1274
    %v1276 = vrot.slane %v1232, %v1275
    %v1277 = vlaneseq
    %v1278 = vshrl.u32 %v1277, 7
    %v1279 = vsub.s32 0, %v1278
    %v1280 = vrot.slane %v1233, %v1279
    %v1281 = vlaneseq
    %v1282 = vshrl.u32 %v1281, 7
    %v1283 = vsub.s32 0, %v1282
    %v1284 = vrot.slane %v1234, %v1283
    %v1285 = vlaneseq
    %v1286 = vshrl.u32 %v1285, 7
    %v1287 = vsub.s32 0, %v1286
    %v1288 = vrot.slane %v1235, %v1287
    %v1289 = vlaneseq
    %v1290 = vshrl.u32 %v1289, 7
    %v1291 = vsub.s32 0, %v1290
    %v1292 = vrot.slane %v1236, %v1291
    %v1293 = vlaneseq
    %v1294 = vshrl.u32 %v1293, 7
    %v1295 = vsub.s32 0, %v1294
    %v1296 = vrot.slane %v1237, %v1295
    %v1297 = vlaneseq
    %v1298 = vshrl.u32 %v1297, 7
    %v1299 = vsub.s32 0, %v1298
    %v1300 = vrot.slane %v1238, %v1299
    %v1301 = vlaneseq
    %v1302 = vshrl.u32 %v1301, 7
    %v1303 = vsub.s32 0, %v1302
    %v1304 = vrot.slane %v1239, %v1303
    %v1305 = vlaneseq
    %v1306 = vshrl.u32 %v1305, 7
    %v1307 = vsub.s32 0, %v1306
    %v1308 = vrot.slane %v1240, %v1307
    %v1309 = vlaneseq
    %v1310 = vshrl.u32 %v1309, 7
    %v1311 = vsub.s32 0, %v1310
    %v1312 = vrot.slane %v1241, %v1311
    %v1313 = vlaneseq
    %v1314 = vshrl.u32 %v1313, 7
    %v1315 = vsub.s32 0, %v1314
    %v1316 = vrot.slane %v1242, %v1315
    %v1317 = vlaneseq
    %v1318 = vshrl.u32 %v1317, 7
    %v1319 = vsub.s32 0, %v1318
    %v1320 = vrot.slane %v1243, %v1319
    %v1321 = vlaneseq
    %v1322 = vshrl.u32 %v1321, 7
    %v1323 = vsub.s32 0, %v1322
    %v1324 = vrot.slane %v1244, %v1323
    %vm1325 = vcmask 1044484
    %v1326 = vsel %vm1325, %v1268, %v1264
    %vm1327 = vcmask 1045509
    %v1328 = vsel %vm1327, %v1272, %v1326
    %vm1329 = vcmask 1046534
    %v1330 = vsel %vm1329, %v1276, %v1328
    %vm1331 = vcmask 1047559
    %v1332 = vsel %vm1331, %v1280, %v1330
    %vm1333 = vcmask 1041409
    %v1334 = vsel %vm1333, %v1288, %v1284
    %vm1335 = vcmask 1042434
    %v1336 = vsel %vm1335, %v1292, %v1334
    %v1337 = vsel %vm1325, %v1300, %v1296
    %v1338 = vsel %vm1327, %v1304, %v1337
    %v1339 = vsel %vm1329, %v1308, %v1338
    %v1340 = vsel %vm1331, %v1312, %v1339
    %v1341 = vsel %vm1333, %v1320, %v1316
    %v1342 = vsel %vm1335, %v1324, %v1341
    %vm1347 = vcmask 1042432
    %v1348 = vsel %vm1347, 0.0, %v1332
    %v1349 = vsel %vm1347, 0.0, %v1340
    %v1350 = vsel %vm1347, %v1336, 0.0
    %v1351 = vsel %vm1347, %v1342, 0.0
    %v1356 = vrot.slane %v1348, 3
    %v1357 = vrot.slane %v1350, 3
    %v1358 = vsel %vm995, %v1356, %v1357
    %v1359 = vrot.slane %v1349, 3
    %v1360 = vrot.slane %v1351, 3
    %v1361 = vsel %vm995, %v1359, %v1360
    %1362 = vrot.lane.b32.xlu0 %v1358, 32
    %v1363 = vpop.permute.xlu0 %1362
    %1364 = vrot.lane.b32.xlu0 %v1361, 32
    %v1365 = vpop.permute.xlu0 %1364
    %vm1368 = vcmask 1041408
    %v1369 = vrot.slane %v1348, 6
    %v1370 = vrot.slane %v1350, 6
    %v1371 = vsel %vm1368, %v1369, %v1370
    %v1372 = vrot.slane %v1349, 6
    %v1373 = vrot.slane %v1351, 6
    %v1374 = vsel %vm1368, %v1372, %v1373
    %1375 = vrot.lane.b32.xlu0 %v1371, 64
    %v1376 = vpop.permute.xlu0 %1375
    %1377 = vrot.lane.b32.xlu0 %v1374, 64
    %v1378 = vpop.permute.xlu0 %1377
    %v1381 = vsel %vm1018, %v1348, %v1363
    %v1382 = vsel %vm1018, %v1349, %v1365
    %v1383 = vsel %vm1023, %v1381, %v1376
    %v1384 = vsel %vm1023, %v1382, %v1378
    %v1386 = vsel %vm1028, %v1383, 0
    %v1389 = vsel %vm1028, %v1384, 0
    %1391 = vmatprep.subr.mxu0 0.0
    %1392 = vmatpush1.msra.mxu0 0.0
    %1393 = vmatprep.subr.mxu0 0.0
    %1394 = vmatpush1.msra.mxu0 0.0
    %1395 = vmatprep.subr.mxu0 0.0
    %1396 = vmatpush1.msra.mxu0 0.0
    %1397 = vmatprep.subr.mxu0 0.0
    %1398 = vmatpush1.msra.mxu0 0.0
    %1399 = vmatprep.subr.mxu0 0.0
    %1400 = vmatpush1.msra.mxu0 %v1227
    %1401 = vmatprep.subr.mxu0 0.0
    %1402 = vmatpush1.msra.mxu0 %v1226
    %1403 = vmatprep.subr.mxu0 0.0
    %1404 = vmatpush1.msra.mxu0 %v1225
    %1405 = vmatprep.subr.mxu0 0.0
    %1406 = vmatpush1.msra.mxu0 %v1224
    %1407 = vmatprep.subr.mxu0 0.0
    %1408 = vmatpush1.msra.mxu0 %v1223
    %1409 = vmatprep.subr.mxu0 0.0
    %1410 = vmatpush1.msra.mxu0 %v1222
    %1411 = vmatprep.subr.mxu0 0.0
    %1412 = vmatpush1.msra.mxu0 %v1221
    %1413 = vmatprep.subr.mxu0 0.0
    %1414 = vmatpush1.msra.mxu0 %v1220
    %1415 = vmatprep.subr.mxu0 0.0
    %1416 = vmatpush1.msra.mxu0 %v1219
    %1417 = vmatprep.subr.mxu0 0.0
    %1418 = vmatpush1.msra.mxu0 %v1218
    %1419 = vmatprep.subr.mxu0 0.0
    %1420 = vmatpush1.msra.mxu0 %v1217
    %1421 = vmatprep.subr.mxu0 0.0
    %1422 = vmatpush1.msra.mxu0 %v1216
    %1423 = vmatprep.subr.mxu0 0.0
    %1424 = vmatpush2.msra.mxu0 0.0
    %1425 = vmatprep.subr.mxu0 0.0
    %1426 = vmatpush2.msra.mxu0 0.0
    %1427 = vmatprep.subr.mxu0 0.0
    %1428 = vmatpush2.msra.mxu0 0.0
    %1429 = vmatprep.subr.mxu0 0.0
    %1430 = vmatpush2.msra.mxu0 0.0
    %1431 = vmatprep.subr.mxu0 0.0
    %1432 = vmatpush2.msra.mxu0 0.0
    %1433 = vmatprep.subr.mxu0 0.0
    %1434 = vmatpush2.msra.mxu0 0.0
    %1435 = vmatprep.subr.mxu0 0.0
    %1436 = vmatpush2.msra.mxu0 0.0
    %1437 = vmatprep.subr.mxu0 0.0
    %1438 = vmatpush2.msra.mxu0 0.0
    %1439 = vmatprep.subr.mxu0 0.0
    %1440 = vmatpush2.msra.mxu0 0.0
    %1441 = vmatprep.subr.mxu0 0.0
    %1442 = vmatpush2.msra.mxu0 0.0
    %1443 = vmatprep.subr.mxu0 0.0
    %1444 = vmatpush2.msra.mxu0 0.0
    %1445 = vmatprep.subr.mxu0 0.0
    %1446 = vmatpush2.msra.mxu0 0.0
    %1447 = vmatprep.subr.mxu0 0.0
    %1448 = vmatpush2.msra.mxu0 0.0
    %1449 = vmatprep.subr.mxu0 0.0
    %1450 = vmatpush2.msra.mxu0 0.0
    %1451 = vmatprep.subr.mxu0 0.0
    %1452 = vmatpush2.msra.mxu0 0.0
    %1453 = vmatprep.subr.mxu0 0.0
    %1454 = vmatpush2.msra.mxu0 0.0
    %1455 = vmatprep.mubr.f32.mxu0 0.0
    %1456 = vmatmul.mubr.f32.gmra.mxu0 %v1386
    %v1457 = vpop.f32.mrf.mxu0
    %v1458 = vadd.f32 0.0, %v1457
    %v1459 = vpop.f32.mrf.mxu0
    %1460 = vmatprep.mubr.f32.mxu0 0.0
    %1461 = vmatmul.mubr.f32.gmra.mxu0 %v1389
    %v1462 = vpop.f32.mrf.mxu0
    %v1463 = vadd.f32 0.0, %v1462
    %v1464 = vpop.f32.mrf.mxu0
    %1465 = vdwg.mxu0
    %v1467 = vlaneseq
    %v1468 = vshrl.u32 %v1467, 7
    %v1469 = vsub.s32 0, %v1468
    %v1470 = vrot.slane %v1228, %v1469
    %v1472 = vadd.f32 %v1458, %v1470
    %v1473 = vadd.f32 %v1463, %v1470
    %v1474 = vld [vmem:[#allocation43] sm:$0xff]
    %v1475 = vld [vmem:[#allocation43 + $0x8] sm:$0xff]
    %v1476 = vld [vmem:[#allocation43 + $0x10] sm:$0xff]
    %v1477 = vld [vmem:[#allocation43 + $0x18] sm:$0xff]
    %v1478 = vld [vmem:[#allocation44] sm:$0x1]
    %v1479 = vmax.f32 %v1472, 0.0
    %v1480 = vmax.f32 %v1473, 0.0
    %v1482 = vsel %vm1018, %v1479, 0
    %v1485 = vsel %vm1018, %v1480, 0
    %1487 = vmatprep.subr.mxu0 0.0
    %1488 = vmatpush1.msra.mxu0 0.0
    %1489 = vmatprep.subr.mxu0 0.0
    %1490 = vmatpush1.msra.mxu0 0.0
    %1491 = vmatprep.subr.mxu0 0.0
    %1492 = vmatpush1.msra.mxu0 0.0
    %1493 = vmatprep.subr.mxu0 0.0
    %1494 = vmatpush1.msra.mxu0 0.0
    %1495 = vmatprep.subr.mxu0 0.0
    %1496 = vmatpush1.msra.mxu0 0.0
    %1497 = vmatprep.subr.mxu0 0.0
    %1498 = vmatpush1.msra.mxu0 0.0
    %1499 = vmatprep.subr.mxu0 0.0
    %1500 = vmatpush1.msra.mxu0 0.0
    %1501 = vmatprep.subr.mxu0 0.0
    %1502 = vmatpush1.msra.mxu0 0.0
    %1503 = vmatprep.subr.mxu0 0.0
    %1504 = vmatpush1.msra.mxu0 0.0
    %1505 = vmatprep.subr.mxu0 0.0
    %1506 = vmatpush1.msra.mxu0 0.0
    %1507 = vmatprep.subr.mxu0 0.0
    %1508 = vmatpush1.msra.mxu0 0.0
    %1509 = vmatprep.subr.mxu0 0.0
    %1510 = vmatpush1.msra.mxu0 0.0
    %1511 = vmatprep.subr.mxu0 0.0
    %1512 = vmatpush1.msra.mxu0 %v1477
    %1513 = vmatprep.subr.mxu0 0.0
    %1514 = vmatpush1.msra.mxu0 %v1476
    %1515 = vmatprep.subr.mxu0 0.0
    %1516 = vmatpush1.msra.mxu0 %v1475
    %1517 = vmatprep.subr.mxu0 0.0
    %1518 = vmatpush1.msra.mxu0 %v1474
    %1519 = vmatprep.subr.mxu0 0.0
    %1520 = vmatpush2.msra.mxu0 0.0
    %1521 = vmatprep.subr.mxu0 0.0
    %1522 = vmatpush2.msra.mxu0 0.0
    %1523 = vmatprep.subr.mxu0 0.0
    %1524 = vmatpush2.msra.mxu0 0.0
    %1525 = vmatprep.subr.mxu0 0.0
    %1526 = vmatpush2.msra.mxu0 0.0
    %1527 = vmatprep.subr.mxu0 0.0
    %1528 = vmatpush2.msra.mxu0 0.0
    %1529 = vmatprep.subr.mxu0 0.0
    %1530 = vmatpush2.msra.mxu0 0.0
    %1531 = vmatprep.subr.mxu0 0.0
    %1532 = vmatpush2.msra.mxu0 0.0
    %1533 = vmatprep.subr.mxu0 0.0
    %1534 = vmatpush2.msra.mxu0 0.0
    %1535 = vmatprep.subr.mxu0 0.0
    %1536 = vmatpush2.msra.mxu0 0.0
    %1537 = vmatprep.subr.mxu0 0.0
    %1538 = vmatpush2.msra.mxu0 0.0
    %1539 = vmatprep.subr.mxu0 0.0
    %1540 = vmatpush2.msra.mxu0 0.0
    %1541 = vmatprep.subr.mxu0 0.0
    %1542 = vmatpush2.msra.mxu0 0.0
    %1543 = vmatprep.subr.mxu0 0.0
    %1544 = vmatpush2.msra.mxu0 0.0
    %1545 = vmatprep.subr.mxu0 0.0
    %1546 = vmatpush2.msra.mxu0 0.0
    %1547 = vmatprep.subr.mxu0 0.0
    %1548 = vmatpush2.msra.mxu0 0.0
    %1549 = vmatprep.subr.mxu0 0.0
    %1550 = vmatpush2.msra.mxu0 0.0
    %1551 = vmatprep.mubr.f32.mxu0 0.0
    %1552 = vmatmul.mubr.f32.gmra.mxu0 %v1482
    %v1553 = vpop.f32.mrf.mxu0
    %v1554 = vadd.f32 0.0, %v1553
    %v1555 = vpop.f32.mrf.mxu0
    %1556 = vmatprep.mubr.f32.mxu0 0.0
    %1557 = vmatmul.mubr.f32.gmra.mxu0 %v1485
    %v1558 = vpop.f32.mrf.mxu0
    %v1559 = vadd.f32 0.0, %v1558
    %v1560 = vpop.f32.mrf.mxu0
    %1561 = vdwg.mxu0
    %v1563 = vlaneseq
    %v1564 = vshrl.u32 %v1563, 7
    %v1565 = vsub.s32 0, %v1564
    %v1566 = vrot.slane %v1478, %v1565
    %v1568 = vadd.f32 %v1554, %v1566
    %v1569 = vadd.f32 %v1559, %v1566
    %v1572 = vcombine.high %v1568, %v1568
    %v1574 = vunpack.c.l.s4 1983009808
    %v1575 = vunpack.c.0.s8 %v1574
    %v1576 = vlaneseq
    %v1577 = vshrl.u32 %v1576, 7
    %v1578 = vsub.s32 %v1575, %v1577
    %v1579 = vrot.slane %v1568, %v1578
    %v1581 = vunpack.c.l.s4 1983009808
    %v1582 = vunpack.c.0.s8 %v1581
    %v1583 = vlaneseq
    %v1584 = vshrl.u32 %v1583, 7
    %v1585 = vsub.s32 %v1582, %v1584
    %v1586 = vrot.slane %v1572, %v1585
    %v1587 = vcombine.high %v1579, %v1579
    %v1588 = vcombine.high %v1586, %v1586
    %v1589 = vcombine.high %v1569, %v1569
    %v1591 = vunpack.c.l.s4 1983009808
    %v1592 = vunpack.c.0.s8 %v1591
    %v1593 = vlaneseq
    %v1594 = vshrl.u32 %v1593, 7
    %v1595 = vsub.s32 %v1592, %v1594
    %v1596 = vrot.slane %v1569, %v1595
    %v1598 = vunpack.c.l.s4 1983009808
    %v1599 = vunpack.c.0.s8 %v1598
    %v1600 = vlaneseq
    %v1601 = vshrl.u32 %v1600, 7
    %v1602 = vsub.s32 %v1599, %v1601
    %v1603 = vrot.slane %v1589, %v1602
    %v1604 = vcombine.high %v1596, %v1596
    %v1605 = vcombine.high %v1603, %v1603
    %v1606 = vrot.slane %v1579, 1
    %v1607 = vrot.slane %v1587, 1
    %v1608 = vrot.slane %v1586, 1
    %v1609 = vrot.slane %v1588, 1
    %v1610 = vrot.slane %v1596, 1
    %v1611 = vrot.slane %v1604, 1
    %v1612 = vrot.slane %v1603, 1
    %v1613 = vrot.slane %v1605, 1
    %v1630 = vadd.f32 %v1139, %v1579
    %v1631 = vadd.f32 %v1147, %v1606
    %v1632 = vadd.f32 %v1146, %v1587
    %v1633 = vadd.f32 %v1148, %v1607
    %v1634 = vadd.f32 %v1156, %v1586
    %v1635 = vadd.f32 %v1164, %v1608
    %v1636 = vadd.f32 %v1163, %v1588
    %v1637 = vadd.f32 %v1165, %v1609
    %v1638 = vadd.f32 %v1173, %v1596
    %v1639 = vadd.f32 %v1181, %v1610
    %v1640 = vadd.f32 %v1180, %v1604
    %v1641 = vadd.f32 %v1182, %v1611
    %v1642 = vadd.f32 %v1190, %v1603
    %v1643 = vadd.f32 %v1198, %v1612
    %v1644 = vadd.f32 %v1197, %v1605
    %v1645 = vadd.f32 %v1199, %v1613
    %v1646 = vld [vmem:[#allocation46] sm:$0xff]
    %v1647 = vld [vmem:[#allocation46 + $0x8] sm:$0xff]
    %v1648 = vld [vmem:[#allocation46 + $0x10] sm:$0xff]
    %v1649 = vld [vmem:[#allocation46 + $0x18] sm:$0xff]
    %v1650 = vld [vmem:[#allocation46 + $0x20] sm:$0xff]
    %v1651 = vld [vmem:[#allocation46 + $0x28] sm:$0xff]
    %v1652 = vld [vmem:[#allocation46 + $0x30] sm:$0xff]
    %v1653 = vld [vmem:[#allocation46 + $0x38] sm:$0xff]
    %v1654 = vld [vmem:[#allocation46 + $0x40] sm:$0xff]
    %v1655 = vld [vmem:[#allocation46 + $0x48] sm:$0xff]
    %v1656 = vld [vmem:[#allocation46 + $0x50] sm:$0xff]
    %v1657 = vld [vmem:[#allocation46 + $0x58] sm:$0xff]
    %v1658 = vld [vmem:[#allocation47] sm:$0x1]
    %v1659 = vmax.f32 %v1630, 0.0
    %v1660 = vmax.f32 %v1631, 0.0
    %v1661 = vmax.f32 %v1632, 0.0
    %v1662 = vmax.f32 %v1633, 0.0
    %v1663 = vmax.f32 %v1634, 0.0
    %v1664 = vmax.f32 %v1635, 0.0
    %v1665 = vmax.f32 %v1636, 0.0
    %v1666 = vmax.f32 %v1637, 0.0
    %v1667 = vmax.f32 %v1638, 0.0
    %v1668 = vmax.f32 %v1639, 0.0
    %v1669 = vmax.f32 %v1640, 0.0
    %v1670 = vmax.f32 %v1641, 0.0
    %v1671 = vmax.f32 %v1642, 0.0
    %v1672 = vmax.f32 %v1643, 0.0
    %v1673 = vmax.f32 %v1644, 0.0
    %v1674 = vmax.f32 %v1645, 0.0
    %v1691 = vlaneseq
    %v1692 = vshrl.u32 %v1691, 7
    %v1693 = vsub.s32 0, %v1692
    %v1694 = vrot.slane %v1659, %v1693
    %v1695 = vlaneseq
    %v1696 = vshrl.u32 %v1695, 7
    %v1697 = vsub.s32 0, %v1696
    %v1698 = vrot.slane %v1660, %v1697
    %v1699 = vlaneseq
    %v1700 = vshrl.u32 %v1699, 7
    %v1701 = vsub.s32 0, %v1700
    %v1702 = vrot.slane %v1661, %v1701
    %v1703 = vlaneseq
    %v1704 = vshrl.u32 %v1703, 7
    %v1705 = vsub.s32 0, %v1704
    %v1706 = vrot.slane %v1662, %v1705
    %v1707 = vlaneseq
    %v1708 = vshrl.u32 %v1707, 7
    %v1709 = vsub.s32 0, %v1708
    %v1710 = vrot.slane %v1663, %v1709
    %v1711 = vlaneseq
    %v1712 = vshrl.u32 %v1711, 7
    %v1713 = vsub.s32 0, %v1712
    %v1714 = vrot.slane %v1664, %v1713
    %v1715 = vlaneseq
    %v1716 = vshrl.u32 %v1715, 7
    %v1717 = vsub.s32 0, %v1716
    %v1718 = vrot.slane %v1665, %v1717
    %v1719 = vlaneseq
    %v1720 = vshrl.u32 %v1719, 7
    %v1721 = vsub.s32 0, %v1720
    %v1722 = vrot.slane %v1666, %v1721
    %v1723 = vlaneseq
    %v1724 = vshrl.u32 %v1723, 7
    %v1725 = vsub.s32 0, %v1724
    %v1726 = vrot.slane %v1667, %v1725
    %v1727 = vlaneseq
    %v1728 = vshrl.u32 %v1727, 7
    %v1729 = vsub.s32 0, %v1728
    %v1730 = vrot.slane %v1668, %v1729
    %v1731 = vlaneseq
    %v1732 = vshrl.u32 %v1731, 7
    %v1733 = vsub.s32 0, %v1732
    %v1734 = vrot.slane %v1669, %v1733
    %v1735 = vlaneseq
    %v1736 = vshrl.u32 %v1735, 7
    %v1737 = vsub.s32 0, %v1736
    %v1738 = vrot.slane %v1670, %v1737
    %v1739 = vlaneseq
    %v1740 = vshrl.u32 %v1739, 7
    %v1741 = vsub.s32 0, %v1740
    %v1742 = vrot.slane %v1671, %v1741
    %v1743 = vlaneseq
    %v1744 = vshrl.u32 %v1743, 7
    %v1745 = vsub.s32 0, %v1744
    %v1746 = vrot.slane %v1672, %v1745
    %v1747 = vlaneseq
    %v1748 = vshrl.u32 %v1747, 7
    %v1749 = vsub.s32 0, %v1748
    %v1750 = vrot.slane %v1673, %v1749
    %v1751 = vlaneseq
    %v1752 = vshrl.u32 %v1751, 7
    %v1753 = vsub.s32 0, %v1752
    %v1754 = vrot.slane %v1674, %v1753
    %v1755 = vsel %vm1335, %v1698, %v1694
    %vm1756 = vcmask 1043459
    %v1757 = vsel %vm1756, %v1702, %v1755
    %v1758 = vsel %vm1325, %v1706, %v1757
    %v1759 = vsel %vm1327, %v1710, %v1758
    %v1760 = vsel %vm1329, %v1714, %v1759
    %v1761 = vsel %vm1331, %v1718, %v1760
    %v1762 = vsel %vm1335, %v1730, %v1726
    %v1763 = vsel %vm1756, %v1734, %v1762
    %v1764 = vsel %vm1325, %v1738, %v1763
    %v1765 = vsel %vm1327, %v1742, %v1764
    %v1766 = vsel %vm1329, %v1746, %v1765
    %v1767 = vsel %vm1331, %v1750, %v1766
    %v1772 = vsel %vm717, 0.0, %v1761
    %v1773 = vsel %vm717, 0.0, %v1767
    %v1774 = vsel %vm717, %v1722, 0.0
    %v1775 = vsel %vm717, %v1754, 0.0
    %v1780 = vrot.slane %v1772, 1
    %v1781 = vrot.slane %v1774, 1
    %v1782 = vsel %vm738, %v1780, %v1781
    %v1783 = vrot.slane %v1773, 1
    %v1784 = vrot.slane %v1775, 1
    %v1785 = vsel %vm738, %v1783, %v1784
    %1786 = vrot.lane.b32.xlu0 %v1782, 32
    %v1787 = vpop.permute.xlu0 %1786
    %1788 = vrot.lane.b32.xlu0 %v1785, 32
    %v1789 = vpop.permute.xlu0 %1788
    %v1792 = vrot.slane %v1772, 2
    %v1793 = vrot.slane %v1774, 2
    %v1794 = vsel %vm761, %v1792, %v1793
    %v1795 = vrot.slane %v1773, 2
    %v1796 = vrot.slane %v1775, 2
    %v1797 = vsel %vm761, %v1795, %v1796
    %1798 = vrot.lane.b32.xlu0 %v1794, 64
    %v1799 = vpop.permute.xlu0 %1798
    %1800 = vrot.lane.b32.xlu0 %v1797, 64
    %v1801 = vpop.permute.xlu0 %1800
    %v1804 = vsel %vm1018, %v1772, %v1787
    %v1805 = vsel %vm1018, %v1773, %v1789
    %v1806 = vsel %vm1023, %v1804, %v1799
    %v1807 = vsel %vm1023, %v1805, %v1801
    %v1809 = vsel %vm1028, %v1806, 0
    %v1812 = vsel %vm1028, %v1807, 0
    %1814 = vmatprep.subr.mxu0 0.0
    %1815 = vmatpush1.msra.mxu0 0.0
    %1816 = vmatprep.subr.mxu0 0.0
    %1817 = vmatpush1.msra.mxu0 0.0
    %1818 = vmatprep.subr.mxu0 0.0
    %1819 = vmatpush1.msra.mxu0 0.0
    %1820 = vmatprep.subr.mxu0 0.0
    %1821 = vmatpush1.msra.mxu0 0.0
    %1822 = vmatprep.subr.mxu0 0.0
    %1823 = vmatpush1.msra.mxu0 %v1657
    %1824 = vmatprep.subr.mxu0 0.0
    %1825 = vmatpush1.msra.mxu0 %v1656
    %1826 = vmatprep.subr.mxu0 0.0
    %1827 = vmatpush1.msra.mxu0 %v1655
    %1828 = vmatprep.subr.mxu0 0.0
    %1829 = vmatpush1.msra.mxu0 %v1654
    %1830 = vmatprep.subr.mxu0 0.0
    %1831 = vmatpush1.msra.mxu0 %v1653
    %1832 = vmatprep.subr.mxu0 0.0
    %1833 = vmatpush1.msra.mxu0 %v1652
    %1834 = vmatprep.subr.mxu0 0.0
    %1835 = vmatpush1.msra.mxu0 %v1651
    %1836 = vmatprep.subr.mxu0 0.0
    %1837 = vmatpush1.msra.mxu0 %v1650
    %1838 = vmatprep.subr.mxu0 0.0
    %1839 = vmatpush1.msra.mxu0 %v1649
    %1840 = vmatprep.subr.mxu0 0.0
    %1841 = vmatpush1.msra.mxu0 %v1648
    %1842 = vmatprep.subr.mxu0 0.0
    %1843 = vmatpush1.msra.mxu0 %v1647
    %1844 = vmatprep.subr.mxu0 0.0
    %1845 = vmatpush1.msra.mxu0 %v1646
    %1846 = vmatprep.subr.mxu0 0.0
    %1847 = vmatpush2.msra.mxu0 0.0
    %1848 = vmatprep.subr.mxu0 0.0
    %1849 = vmatpush2.msra.mxu0 0.0
    %1850 = vmatprep.subr.mxu0 0.0
    %1851 = vmatpush2.msra.mxu0 0.0
    %1852 = vmatprep.subr.mxu0 0.0
    %1853 = vmatpush2.msra.mxu0 0.0
    %1854 = vmatprep.subr.mxu0 0.0
    %1855 = vmatpush2.msra.mxu0 0.0
    %1856 = vmatprep.subr.mxu0 0.0
    %1857 = vmatpush2.msra.mxu0 0.0
    %1858 = vmatprep.subr.mxu0 0.0
    %1859 = vmatpush2.msra.mxu0 0.0
    %1860 = vmatprep.subr.mxu0 0.0
    %1861 = vmatpush2.msra.mxu0 0.0
    %1862 = vmatprep.subr.mxu0 0.0
    %1863 = vmatpush2.msra.mxu0 0.0
    %1864 = vmatprep.subr.mxu0 0.0
    %1865 = vmatpush2.msra.mxu0 0.0
    %1866 = vmatprep.subr.mxu0 0.0
    %1867 = vmatpush2.msra.mxu0 0.0
    %1868 = vmatprep.subr.mxu0 0.0
    %1869 = vmatpush2.msra.mxu0 0.0
    %1870 = vmatprep.subr.mxu0 0.0
    %1871 = vmatpush2.msra.mxu0 0.0
    %1872 = vmatprep.subr.mxu0 0.0
    %1873 = vmatpush2.msra.mxu0 0.0
    %1874 = vmatprep.subr.mxu0 0.0
    %1875 = vmatpush2.msra.mxu0 0.0
    %1876 = vmatprep.subr.mxu0 0.0
    %1877 = vmatpush2.msra.mxu0 0.0
    %1878 = vmatprep.mubr.f32.mxu0 0.0
    %1879 = vmatmul.mubr.f32.gmra.mxu0 %v1809
    %v1880 = vpop.f32.mrf.mxu0
    %v1881 = vadd.f32 0.0, %v1880
    %v1882 = vpop.f32.mrf.mxu0
    %1883 = vmatprep.mubr.f32.mxu0 0.0
    %1884 = vmatmul.mubr.f32.gmra.mxu0 %v1812
    %v1885 = vpop.f32.mrf.mxu0
    %v1886 = vadd.f32 0.0, %v1885
    %v1887 = vpop.f32.mrf.mxu0
    %1888 = vdwg.mxu0
    %v1890 = vlaneseq
    %v1891 = vshrl.u32 %v1890, 7
    %v1892 = vsub.s32 0, %v1891
    %v1893 = vrot.slane %v1658, %v1892
    %v1895 = vadd.f32 %v1881, %v1893
    %v1896 = vadd.f32 %v1886, %v1893
    %v1897 = vld [vmem:[#allocation49] sm:$0xff]
    %v1898 = vld [vmem:[#allocation49 + $0x8] sm:$0xff]
    %v1899 = vld [vmem:[#allocation49 + $0x10] sm:$0xff]
    %v1900 = vld [vmem:[#allocation49 + $0x18] sm:$0xff]
    %v1901 = vld [vmem:[#allocation50] sm:$0x1]
    %v1902 = vmax.f32 %v1895, 0.0
    %v1903 = vmax.f32 %v1896, 0.0
    %v1905 = vsel %vm1018, %v1902, 0
    %v1908 = vsel %vm1018, %v1903, 0
    %1910 = vmatprep.subr.mxu0 0.0
    %1911 = vmatpush1.msra.mxu0 0.0
    %1912 = vmatprep.subr.mxu0 0.0
    %1913 = vmatpush1.msra.mxu0 0.0
    %1914 = vmatprep.subr.mxu0 0.0
    %1915 = vmatpush1.msra.mxu0 0.0
    %1916 = vmatprep.subr.mxu0 0.0
    %1917 = vmatpush1.msra.mxu0 0.0
    %1918 = vmatprep.subr.mxu0 0.0
    %1919 = vmatpush1.msra.mxu0 0.0
    %1920 = vmatprep.subr.mxu0 0.0
    %1921 = vmatpush1.msra.mxu0 0.0
    %1922 = vmatprep.subr.mxu0 0.0
    %1923 = vmatpush1.msra.mxu0 0.0
    %1924 = vmatprep.subr.mxu0 0.0
    %1925 = vmatpush1.msra.mxu0 0.0
    %1926 = vmatprep.subr.mxu0 0.0
    %1927 = vmatpush1.msra.mxu0 0.0
    %1928 = vmatprep.subr.mxu0 0.0
    %1929 = vmatpush1.msra.mxu0 0.0
    %1930 = vmatprep.subr.mxu0 0.0
    %1931 = vmatpush1.msra.mxu0 0.0
    %1932 = vmatprep.subr.mxu0 0.0
    %1933 = vmatpush1.msra.mxu0 0.0
    %1934 = vmatprep.subr.mxu0 0.0
    %1935 = vmatpush1.msra.mxu0 %v1900
    %1936 = vmatprep.subr.mxu0 0.0
    %1937 = vmatpush1.msra.mxu0 %v1899
    %1938 = vmatprep.subr.mxu0 0.0
    %1939 = vmatpush1.msra.mxu0 %v1898
    %1940 = vmatprep.subr.mxu0 0.0
    %1941 = vmatpush1.msra.mxu0 %v1897
    %1942 = vmatprep.subr.mxu0 0.0
    %1943 = vmatpush2.msra.mxu0 0.0
    %1944 = vmatprep.subr.mxu0 0.0
    %1945 = vmatpush2.msra.mxu0 0.0
    %1946 = vmatprep.subr.mxu0 0.0
    %1947 = vmatpush2.msra.mxu0 0.0
    %1948 = vmatprep.subr.mxu0 0.0
    %1949 = vmatpush2.msra.mxu0 0.0
    %1950 = vmatprep.subr.mxu0 0.0
    %1951 = vmatpush2.msra.mxu0 0.0
    %1952 = vmatprep.subr.mxu0 0.0
    %1953 = vmatpush2.msra.mxu0 0.0
    %1954 = vmatprep.subr.mxu0 0.0
    %1955 = vmatpush2.msra.mxu0 0.0
    %1956 = vmatprep.subr.mxu0 0.0
    %1957 = vmatpush2.msra.mxu0 0.0
    %1958 = vmatprep.subr.mxu0 0.0
    %1959 = vmatpush2.msra.mxu0 0.0
    %1960 = vmatprep.subr.mxu0 0.0
    %1961 = vmatpush2.msra.mxu0 0.0
    %1962 = vmatprep.subr.mxu0 0.0
    %1963 = vmatpush2.msra.mxu0 0.0
    %1964 = vmatprep.subr.mxu0 0.0
    %1965 = vmatpush2.msra.mxu0 0.0
    %1966 = vmatprep.subr.mxu0 0.0
    %1967 = vmatpush2.msra.mxu0 0.0
    %1968 = vmatprep.subr.mxu0 0.0
    %1969 = vmatpush2.msra.mxu0 0.0
    %1970 = vmatprep.subr.mxu0 0.0
    %1971 = vmatpush2.msra.mxu0 0.0
    %1972 = vmatprep.subr.mxu0 0.0
    %1973 = vmatpush2.msra.mxu0 0.0
    %1974 = vmatprep.mubr.f32.mxu0 0.0
    %1975 = vmatmul.mubr.f32.gmra.mxu0 %v1905
    %v1976 = vpop.f32.mrf.mxu0
    %v1977 = vadd.f32 0.0, %v1976
    %v1978 = vpop.f32.mrf.mxu0
    %1979 = vmatprep.mubr.f32.mxu0 0.0
    %1980 = vmatmul.mubr.f32.gmra.mxu0 %v1908
    %v1981 = vpop.f32.mrf.mxu0
    %v1982 = vadd.f32 0.0, %v1981
    %v1983 = vpop.f32.mrf.mxu0
    %1984 = vdwg.mxu0
    %v1986 = vlaneseq
    %v1987 = vshrl.u32 %v1986, 7
    %v1988 = vsub.s32 0, %v1987
    %v1989 = vrot.slane %v1901, %v1988
    %v1991 = vadd.f32 %v1977, %v1989
    %v1992 = vadd.f32 %v1982, %v1989
    %v1995 = vcombine.high %v1991, %v1991
    %v1997 = vunpack.c.l.s4 1983009808
    %v1998 = vunpack.c.0.s8 %v1997
    %v1999 = vlaneseq
    %v2000 = vshrl.u32 %v1999, 7
    %v2001 = vsub.s32 %v1998, %v2000
    %v2002 = vrot.slane %v1991, %v2001
    %v2004 = vunpack.c.l.s4 1983009808
    %v2005 = vunpack.c.0.s8 %v2004
    %v2006 = vlaneseq
    %v2007 = vshrl.u32 %v2006, 7
    %v2008 = vsub.s32 %v2005, %v2007
    %v2009 = vrot.slane %v1995, %v2008
    %v2010 = vcombine.high %v2002, %v2002
    %v2011 = vcombine.high %v2009, %v2009
    %v2012 = vcombine.high %v1992, %v1992
    %v2014 = vunpack.c.l.s4 1983009808
    %v2015 = vunpack.c.0.s8 %v2014
    %v2016 = vlaneseq
    %v2017 = vshrl.u32 %v2016, 7
    %v2018 = vsub.s32 %v2015, %v2017
    %v2019 = vrot.slane %v1992, %v2018
    %v2021 = vunpack.c.l.s4 1983009808
    %v2022 = vunpack.c.0.s8 %v2021
    %v2023 = vlaneseq
    %v2024 = vshrl.u32 %v2023, 7
    %v2025 = vsub.s32 %v2022, %v2024
    %v2026 = vrot.slane %v2012, %v2025
    %v2027 = vcombine.high %v2019, %v2019
    %v2028 = vcombine.high %v2026, %v2026
    %v2029 = vrot.slane %v2002, 1
    %v2030 = vrot.slane %v2010, 1
    %v2031 = vrot.slane %v2009, 1
    %v2032 = vrot.slane %v2011, 1
    %v2033 = vrot.slane %v2019, 1
    %v2034 = vrot.slane %v2027, 1
    %v2035 = vrot.slane %v2026, 1
    %v2036 = vrot.slane %v2028, 1
    %v2053 = vadd.f32 %v1630, %v2002
    %v2054 = vadd.f32 %v1631, %v2029
    %v2055 = vadd.f32 %v1632, %v2010
    %v2056 = vadd.f32 %v1633, %v2030
    %v2057 = vadd.f32 %v1634, %v2009
    %v2058 = vadd.f32 %v1635, %v2031
    %v2059 = vadd.f32 %v1636, %v2011
    %v2060 = vadd.f32 %v1637, %v2032
    %v2061 = vadd.f32 %v1638, %v2019
    %v2062 = vadd.f32 %v1639, %v2033
    %v2063 = vadd.f32 %v1640, %v2027
    %v2064 = vadd.f32 %v1641, %v2034
    %v2065 = vadd.f32 %v1642, %v2026
    %v2066 = vadd.f32 %v1643, %v2035
    %v2067 = vadd.f32 %v1644, %v2028
    %v2068 = vadd.f32 %v1645, %v2036
    %v2069 = vld [vmem:[%s77] sm:$0xff]
    %v2070 = vld [vmem:[%s77 + $0x8] sm:$0xff]
    %v2071 = vld [vmem:[%s77 + $0x10] sm:$0xff]
    %v2072 = vld [vmem:[%s77 + $0x18] sm:$0xff]
    %v2073 = vld [vmem:[%s77 + $0x20] sm:$0xff]
    %v2074 = vld [vmem:[%s77 + $0x28] sm:$0xff]
    %v2075 = vld [vmem:[%s77 + $0x30] sm:$0xff]
    %v2076 = vld [vmem:[%s77 + $0x38] sm:$0xff]
    %v2077 = vld [vmem:[%s77 + $0x40] sm:$0xff]
    %v2078 = vld [vmem:[%s77 + $0x48] sm:$0xff]
    %v2079 = vld [vmem:[%s77 + $0x50] sm:$0xff]
    %v2080 = vld [vmem:[%s77 + $0x58] sm:$0xff]
    %v2081 = vld [vmem:[%s77 + $0x60] sm:$0xff]
    %v2082 = vld [vmem:[%s77 + $0x68] sm:$0xff]
    %v2083 = vld [vmem:[%s77 + $0x70] sm:$0xff]
    %v2084 = vld [vmem:[%s77 + $0x78] sm:$0xff]
    %v2085 = vld [vmem:[#allocation52] sm:$0x1]
    %v2102 = vlaneseq
    %v2103 = vshrl.u32 %v2102, 7
    %v2104 = vsub.s32 0, %v2103
    %v2105 = vrot.slane %v2053, %v2104
    %v2106 = vlaneseq
    %v2107 = vshrl.u32 %v2106, 7
    %v2108 = vsub.s32 0, %v2107
    %v2109 = vrot.slane %v2054, %v2108
    %v2110 = vlaneseq
    %v2111 = vshrl.u32 %v2110, 7
    %v2112 = vsub.s32 0, %v2111
    %v2113 = vrot.slane %v2055, %v2112
    %v2114 = vlaneseq
    %v2115 = vshrl.u32 %v2114, 7
    %v2116 = vsub.s32 0, %v2115
    %v2117 = vrot.slane %v2056, %v2116
    %v2118 = vlaneseq
    %v2119 = vshrl.u32 %v2118, 7
    %v2120 = vsub.s32 0, %v2119
    %v2121 = vrot.slane %v2057, %v2120
    %v2122 = vlaneseq
    %v2123 = vshrl.u32 %v2122, 7
    %v2124 = vsub.s32 0, %v2123
    %v2125 = vrot.slane %v2058, %v2124
    %v2126 = vlaneseq
    %v2127 = vshrl.u32 %v2126, 7
    %v2128 = vsub.s32 0, %v2127
    %v2129 = vrot.slane %v2059, %v2128
    %v2130 = vlaneseq
    %v2131 = vshrl.u32 %v2130, 7
    %v2132 = vsub.s32 0, %v2131
    %v2133 = vrot.slane %v2060, %v2132
    %v2134 = vlaneseq
    %v2135 = vshrl.u32 %v2134, 7
    %v2136 = vsub.s32 0, %v2135
    %v2137 = vrot.slane %v2061, %v2136
    %v2138 = vlaneseq
    %v2139 = vshrl.u32 %v2138, 7
    %v2140 = vsub.s32 0, %v2139
    %v2141 = vrot.slane %v2062, %v2140
    %v2142 = vlaneseq
    %v2143 = vshrl.u32 %v2142, 7
    %v2144 = vsub.s32 0, %v2143
    %v2145 = vrot.slane %v2063, %v2144
    %v2146 = vlaneseq
    %v2147 = vshrl.u32 %v2146, 7
    %v2148 = vsub.s32 0, %v2147
    %v2149 = vrot.slane %v2064, %v2148
    %v2150 = vlaneseq
    %v2151 = vshrl.u32 %v2150, 7
    %v2152 = vsub.s32 0, %v2151
    %v2153 = vrot.slane %v2065, %v2152
    %v2154 = vlaneseq
    %v2155 = vshrl.u32 %v2154, 7
    %v2156 = vsub.s32 0, %v2155
    %v2157 = vrot.slane %v2066, %v2156
    %v2158 = vlaneseq
    %v2159 = vshrl.u32 %v2158, 7
    %v2160 = vsub.s32 0, %v2159
    %v2161 = vrot.slane %v2067, %v2160
    %v2162 = vlaneseq
    %v2163 = vshrl.u32 %v2162, 7
    %v2164 = vsub.s32 0, %v2163
    %v2165 = vrot.slane %v2068, %v2164
    %v2166 = vsel %vm1335, %v2109, %v2105
    %v2167 = vsel %vm1756, %v2113, %v2166
    %v2168 = vsel %vm1325, %v2117, %v2167
    %v2169 = vsel %vm1327, %v2121, %v2168
    %v2170 = vsel %vm1329, %v2125, %v2169
    %v2171 = vsel %vm1331, %v2129, %v2170
    %v2172 = vsel %vm1335, %v2141, %v2137
    %v2173 = vsel %vm1756, %v2145, %v2172
    %v2174 = vsel %vm1325, %v2149, %v2173
    %v2175 = vsel %vm1327, %v2153, %v2174
    %v2176 = vsel %vm1329, %v2157, %v2175
    %v2177 = vsel %vm1331, %v2161, %v2176
    %v2182 = vsel %vm717, 0.0, %v2171
    %v2183 = vsel %vm717, 0.0, %v2177
    %v2184 = vsel %vm717, %v2133, 0.0
    %v2185 = vsel %vm717, %v2165, 0.0
    %v2190 = vrot.slane %v2182, 1
    %v2191 = vrot.slane %v2184, 1
    %v2192 = vsel %vm738, %v2190, %v2191
    %v2193 = vrot.slane %v2183, 1
    %v2194 = vrot.slane %v2185, 1
    %v2195 = vsel %vm738, %v2193, %v2194
    %2196 = vrot.lane.b32.xlu0 %v2192, 32
    %v2197 = vpop.permute.xlu0 %2196
    %2198 = vrot.lane.b32.xlu0 %v2195, 32
    %v2199 = vpop.permute.xlu0 %2198
    %v2202 = vrot.slane %v2182, 2
    %v2203 = vrot.slane %v2184, 2
    %v2204 = vsel %vm761, %v2202, %v2203
    %v2205 = vrot.slane %v2183, 2
    %v2206 = vrot.slane %v2185, 2
    %v2207 = vsel %vm761, %v2205, %v2206
    %2208 = vrot.lane.b32.xlu0 %v2204, 64
    %v2209 = vpop.permute.xlu0 %2208
    %2210 = vrot.lane.b32.xlu0 %v2207, 64
    %v2211 = vpop.permute.xlu0 %2210
    %v2214 = vrot.slane %v2182, 3
    %v2215 = vrot.slane %v2184, 3
    %v2216 = vsel %vm995, %v2214, %v2215
    %v2217 = vrot.slane %v2183, 3
    %v2218 = vrot.slane %v2185, 3
    %v2219 = vsel %vm995, %v2217, %v2218
    %2220 = vrot.lane.b32.xlu0 %v2216, 96
    %v2221 = vpop.permute.xlu0 %2220
    %2222 = vrot.lane.b32.xlu0 %v2219, 96
    %v2223 = vpop.permute.xlu0 %2222
    %v2226 = vsel %vm1018, %v2182, %v2197
    %v2227 = vsel %vm1018, %v2183, %v2199
    %v2228 = vsel %vm1023, %v2226, %v2209
    %v2229 = vsel %vm1023, %v2227, %v2211
    %v2230 = vsel %vm1028, %v2228, %v2221
    %v2231 = vsel %vm1028, %v2229, %v2223
    %2232 = vmatprep.subr.mxu0 0.0
    %2233 = vmatpush1.msra.mxu0 %v2084
    %2234 = vmatprep.subr.mxu0 0.0
    %2235 = vmatpush1.msra.mxu0 %v2083
    %2236 = vmatprep.subr.mxu0 0.0
    %2237 = vmatpush1.msra.mxu0 %v2082
    %2238 = vmatprep.subr.mxu0 0.0
    %2239 = vmatpush1.msra.mxu0 %v2081
    %2240 = vmatprep.subr.mxu0 0.0
    %2241 = vmatpush1.msra.mxu0 %v2080
    %2242 = vmatprep.subr.mxu0 0.0
    %2243 = vmatpush1.msra.mxu0 %v2079
    %2244 = vmatprep.subr.mxu0 0.0
    %2245 = vmatpush1.msra.mxu0 %v2078
    %2246 = vmatprep.subr.mxu0 0.0
    %2247 = vmatpush1.msra.mxu0 %v2077
    %2248 = vmatprep.subr.mxu0 0.0
    %2249 = vmatpush1.msra.mxu0 %v2076
    %2250 = vmatprep.subr.mxu0 0.0
    %2251 = vmatpush1.msra.mxu0 %v2075
    %2252 = vmatprep.subr.mxu0 0.0
    %2253 = vmatpush1.msra.mxu0 %v2074
    %2254 = vmatprep.subr.mxu0 0.0
    %2255 = vmatpush1.msra.mxu0 %v2073
    %2256 = vmatprep.subr.mxu0 0.0
    %2257 = vmatpush1.msra.mxu0 %v2072
    %2258 = vmatprep.subr.mxu0 0.0
    %2259 = vmatpush1.msra.mxu0 %v2071
    %2260 = vmatprep.subr.mxu0 0.0
    %2261 = vmatpush1.msra.mxu0 %v2070
    %2262 = vmatprep.subr.mxu0 0.0
    %2263 = vmatpush1.msra.mxu0 %v2069
    %2264 = vmatprep.subr.mxu0 0.0
    %2265 = vmatpush2.msra.mxu0 0.0
    %2266 = vmatprep.subr.mxu0 0.0
    %2267 = vmatpush2.msra.mxu0 0.0
    %2268 = vmatprep.subr.mxu0 0.0
    %2269 = vmatpush2.msra.mxu0 0.0
    %2270 = vmatprep.subr.mxu0 0.0
    %2271 = vmatpush2.msra.mxu0 0.0
    %2272 = vmatprep.subr.mxu0 0.0
    %2273 = vmatpush2.msra.mxu0 0.0
    %2274 = vmatprep.subr.mxu0 0.0
    %2275 = vmatpush2.msra.mxu0 0.0
    %2276 = vmatprep.subr.mxu0 0.0
    %2277 = vmatpush2.msra.mxu0 0.0
    %2278 = vmatprep.subr.mxu0 0.0
    %2279 = vmatpush2.msra.mxu0 0.0
    %2280 = vmatprep.subr.mxu0 0.0
    %2281 = vmatpush2.msra.mxu0 0.0
    %2282 = vmatprep.subr.mxu0 0.0
    %2283 = vmatpush2.msra.mxu0 0.0
    %2284 = vmatprep.subr.mxu0 0.0
    %2285 = vmatpush2.msra.mxu0 0.0
    %2286 = vmatprep.subr.mxu0 0.0
    %2287 = vmatpush2.msra.mxu0 0.0
    %2288 = vmatprep.subr.mxu0 0.0
    %2289 = vmatpush2.msra.mxu0 0.0
    %2290 = vmatprep.subr.mxu0 0.0
    %2291 = vmatpush2.msra.mxu0 0.0
    %2292 = vmatprep.subr.mxu0 0.0
    %2293 = vmatpush2.msra.mxu0 0.0
    %2294 = vmatprep.subr.mxu0 0.0
    %2295 = vmatpush2.msra.mxu0 0.0
    %2296 = vmatprep.mubr.f32.mxu0 0.0
    %2297 = vmatmul.mubr.f32.gmra.mxu0 %v2230
    %v2298 = vpop.f32.mrf.mxu0
    %v2299 = vadd.f32 0.0, %v2298
    %v2300 = vpop.f32.mrf.mxu0
    %2301 = vmatprep.mubr.f32.mxu0 0.0
    %2302 = vmatmul.mubr.f32.gmra.mxu0 %v2231
    %v2303 = vpop.f32.mrf.mxu0
    %v2304 = vadd.f32 0.0, %v2303
    %v2305 = vpop.f32.mrf.mxu0
    %2306 = vdwg.mxu0
    %v2308 = vlaneseq
    %v2309 = vshrl.u32 %v2308, 7
    %v2310 = vsub.s32 0, %v2309
    %v2311 = vrot.slane %v2085, %v2310
    %v2313 = vadd.f32 %v2299, %v2311
    %v2314 = vadd.f32 %v2304, %v2311
    %v2317 = vcombine.high %v2313, %v2313
    %v2319 = vunpack.c.l.s4 1983009808
    %v2320 = vunpack.c.0.s8 %v2319
    %v2321 = vlaneseq
    %v2322 = vshrl.u32 %v2321, 7
    %v2323 = vsub.s32 %v2320, %v2322
    %v2324 = vrot.slane %v2313, %v2323
    %v2326 = vunpack.c.l.s4 1983009808
    %v2327 = vunpack.c.0.s8 %v2326
    %v2328 = vlaneseq
    %v2329 = vshrl.u32 %v2328, 7
    %v2330 = vsub.s32 %v2327, %v2329
    %v2331 = vrot.slane %v2317, %v2330
    %v2332 = vcombine.high %v2324, %v2324
    %v2333 = vcombine.high %v2331, %v2331
    %v2334 = vcombine.high %v2314, %v2314
    %v2336 = vunpack.c.l.s4 1983009808
    %v2337 = vunpack.c.0.s8 %v2336
    %v2338 = vlaneseq
    %v2339 = vshrl.u32 %v2338, 7
    %v2340 = vsub.s32 %v2337, %v2339
    %v2341 = vrot.slane %v2314, %v2340
    %v2343 = vunpack.c.l.s4 1983009808
    %v2344 = vunpack.c.0.s8 %v2343
    %v2345 = vlaneseq
    %v2346 = vshrl.u32 %v2345, 7
    %v2347 = vsub.s32 %v2344, %v2346
    %v2348 = vrot.slane %v2334, %v2347
    %v2349 = vcombine.high %v2341, %v2341
    %v2350 = vcombine.high %v2348, %v2348
    %v2359 = vld [vmem:[#allocation53] sm:$0xff]
    %v2360 = vld [vmem:[#allocation53 + $0x8] sm:$0xff]
    %v2361 = vld [vmem:[#allocation53 + $0x10] sm:$0xff]
    %v2362 = vld [vmem:[#allocation53 + $0x18] sm:$0xff]
    %v2363 = vld [vmem:[#allocation53 + $0x20] sm:$0xff]
    %v2364 = vld [vmem:[#allocation53 + $0x28] sm:$0xff]
    %v2365 = vld [vmem:[#allocation53 + $0x30] sm:$0xff]
    %v2366 = vld [vmem:[#allocation53 + $0x38] sm:$0xff]
    %v2367 = vld [vmem:[#allocation53 + $0x40] sm:$0xff]
    %v2368 = vld [vmem:[#allocation53 + $0x48] sm:$0xff]
    %v2369 = vld [vmem:[#allocation53 + $0x50] sm:$0xff]
    %v2370 = vld [vmem:[#allocation53 + $0x58] sm:$0xff]
    %v2371 = vld [vmem:[#allocation55] sm:$0x1]
    %v2372 = vmax.f32 %v2324, 0.0
    %v2373 = vmax.f32 %v2332, 0.0
    %v2374 = vmax.f32 %v2331, 0.0
    %v2375 = vmax.f32 %v2333, 0.0
    %v2376 = vmax.f32 %v2341, 0.0
    %v2377 = vmax.f32 %v2349, 0.0
    %v2378 = vmax.f32 %v2348, 0.0
    %v2379 = vmax.f32 %v2350, 0.0
    %v2388 = vlaneseq
    %v2389 = vshrl.u32 %v2388, 7
    %v2390 = vsub.s32 0, %v2389
    %v2391 = vrot.slane %v2372, %v2390
    %v2392 = vlaneseq
    %v2393 = vshrl.u32 %v2392, 7
    %v2394 = vsub.s32 0, %v2393
    %v2395 = vrot.slane %v2373, %v2394
    %v2396 = vlaneseq
    %v2397 = vshrl.u32 %v2396, 7
    %v2398 = vsub.s32 0, %v2397
    %v2399 = vrot.slane %v2374, %v2398
    %v2400 = vlaneseq
    %v2401 = vshrl.u32 %v2400, 7
    %v2402 = vsub.s32 0, %v2401
    %v2403 = vrot.slane %v2375, %v2402
    %v2404 = vlaneseq
    %v2405 = vshrl.u32 %v2404, 7
    %v2406 = vsub.s32 0, %v2405
    %v2407 = vrot.slane %v2376, %v2406
    %v2408 = vlaneseq
    %v2409 = vshrl.u32 %v2408, 7
    %v2410 = vsub.s32 0, %v2409
    %v2411 = vrot.slane %v2377, %v2410
    %v2412 = vlaneseq
    %v2413 = vshrl.u32 %v2412, 7
    %v2414 = vsub.s32 0, %v2413
    %v2415 = vrot.slane %v2378, %v2414
    %v2416 = vlaneseq
    %v2417 = vshrl.u32 %v2416, 7
    %v2418 = vsub.s32 0, %v2417
    %v2419 = vrot.slane %v2379, %v2418
    %v2420 = vsel %vm1325, %v2395, %v2391
    %v2421 = vsel %vm1327, %v2399, %v2420
    %v2422 = vsel %vm1329, %v2403, %v2421
    %v2423 = vsel %vm1325, %v2411, %v2407
    %v2424 = vsel %vm1327, %v2415, %v2423
    %v2425 = vsel %vm1329, %v2419, %v2424
    %v2428 = vsel %vm1347, 0.0, %v2422
    %v2429 = vsel %vm1347, 0.0, %v2425
    %v2430 = vsel %vm738, %v2428, 0.0
    %v2431 = vsel %vm738, %v2429, 0.0
    %v2434 = vrot.slane %v2430, 3
    %v2435 = vrot.slane %v2431, 3
    %2436 = vrot.lane.b32.xlu0 %v2434, 32
    %v2437 = vpop.permute.xlu0 %2436
    %2438 = vrot.lane.b32.xlu0 %v2435, 32
    %v2439 = vpop.permute.xlu0 %2438
    %v2443 = vrot.slane %v2430, 6
    %v2444 = vrot.slane 0.0, 6
    %v2445 = vsel %vm1368, %v2443, %v2444
    %v2446 = vrot.slane %v2431, 6
    %v2447 = vsel %vm1368, %v2446, %v2444
    %2448 = vrot.lane.b32.xlu0 %v2445, 64
    %v2449 = vpop.permute.xlu0 %2448
    %2450 = vrot.lane.b32.xlu0 %v2447, 64
    %v2451 = vpop.permute.xlu0 %2450
    %v2454 = vsel %vm1018, %v2430, %v2437
    %v2455 = vsel %vm1018, %v2431, %v2439
    %v2456 = vsel %vm1023, %v2454, %v2449
    %v2457 = vsel %vm1023, %v2455, %v2451
    %v2460 = vcombine.low %v2456, %v2457
    %v2461 = vsel %vm1028, %v2460, 0
    %2463 = vmatprep.subr.mxu0 0.0
    %2464 = vmatpush1.msra.mxu0 0.0
    %2465 = vmatprep.subr.mxu0 0.0
    %2466 = vmatpush1.msra.mxu0 0.0
    %2467 = vmatprep.subr.mxu0 0.0
    %2468 = vmatpush1.msra.mxu0 0.0
    %2469 = vmatprep.subr.mxu0 0.0
    %2470 = vmatpush1.msra.mxu0 0.0
    %2471 = vmatprep.subr.mxu0 0.0
    %2472 = vmatpush1.msra.mxu0 %v2370
    %2473 = vmatprep.subr.mxu0 0.0
    %2474 = vmatpush1.msra.mxu0 %v2369
    %2475 = vmatprep.subr.mxu0 0.0
    %2476 = vmatpush1.msra.mxu0 %v2368
    %2477 = vmatprep.subr.mxu0 0.0
    %2478 = vmatpush1.msra.mxu0 %v2367
    %2479 = vmatprep.subr.mxu0 0.0
    %2480 = vmatpush1.msra.mxu0 %v2366
    %2481 = vmatprep.subr.mxu0 0.0
    %2482 = vmatpush1.msra.mxu0 %v2365
    %2483 = vmatprep.subr.mxu0 0.0
    %2484 = vmatpush1.msra.mxu0 %v2364
    %2485 = vmatprep.subr.mxu0 0.0
    %2486 = vmatpush1.msra.mxu0 %v2363
    %2487 = vmatprep.subr.mxu0 0.0
    %2488 = vmatpush1.msra.mxu0 %v2362
    %2489 = vmatprep.subr.mxu0 0.0
    %2490 = vmatpush1.msra.mxu0 %v2361
    %2491 = vmatprep.subr.mxu0 0.0
    %2492 = vmatpush1.msra.mxu0 %v2360
    %2493 = vmatprep.subr.mxu0 0.0
    %2494 = vmatpush1.msra.mxu0 %v2359
    %2495 = vmatprep.subr.mxu0 0.0
    %2496 = vmatpush2.msra.mxu0 0.0
    %2497 = vmatprep.subr.mxu0 0.0
    %2498 = vmatpush2.msra.mxu0 0.0
    %2499 = vmatprep.subr.mxu0 0.0
    %2500 = vmatpush2.msra.mxu0 0.0
    %2501 = vmatprep.subr.mxu0 0.0
    %2502 = vmatpush2.msra.mxu0 0.0
    %2503 = vmatprep.subr.mxu0 0.0
    %2504 = vmatpush2.msra.mxu0 0.0
    %2505 = vmatprep.subr.mxu0 0.0
    %2506 = vmatpush2.msra.mxu0 0.0
    %2507 = vmatprep.subr.mxu0 0.0
    %2508 = vmatpush2.msra.mxu0 0.0
    %2509 = vmatprep.subr.mxu0 0.0
    %2510 = vmatpush2.msra.mxu0 0.0
    %2511 = vmatprep.subr.mxu0 0.0
    %2512 = vmatpush2.msra.mxu0 0.0
    %2513 = vmatprep.subr.mxu0 0.0
    %2514 = vmatpush2.msra.mxu0 0.0
    %2515 = vmatprep.subr.mxu0 0.0
    %2516 = vmatpush2.msra.mxu0 0.0
    %2517 = vmatprep.subr.mxu0 0.0
    %2518 = vmatpush2.msra.mxu0 0.0
    %2519 = vmatprep.subr.mxu0 0.0
    %2520 = vmatpush2.msra.mxu0 0.0
    %2521 = vmatprep.subr.mxu0 0.0
    %2522 = vmatpush2.msra.mxu0 0.0
    %2523 = vmatprep.subr.mxu0 0.0
    %2524 = vmatpush2.msra.mxu0 0.0
    %2525 = vmatprep.subr.mxu0 0.0
    %2526 = vmatpush2.msra.mxu0 0.0
    %2527 = vmatprep.mubr.f32.mxu0 0.0
    %2528 = vmatmul.mubr.f32.gmra.mxu0 %v2461
    %v2529 = vpop.f32.mrf.mxu0
    %v2530 = vadd.f32 0.0, %v2529
    %v2531 = vpop.f32.mrf.mxu0
    %2532 = vdwg.mxu0
    %v2534 = vcombine.high %v2530, %v2530
    %v2537 = vlaneseq
    %v2538 = vshrl.u32 %v2537, 7
    %v2539 = vsub.s32 0, %v2538
    %v2540 = vrot.slane %v2371, %v2539
    %v2542 = vadd.f32 %v2530, %v2540
    %v2543 = vadd.f32 %v2534, %v2540
    %v2544 = vld [vmem:[#allocation56] sm:$0xff]
    %v2545 = vld [vmem:[#allocation56 + $0x8] sm:$0xff]
    %v2546 = vld [vmem:[#allocation56 + $0x10] sm:$0xff]
    %v2547 = vld [vmem:[#allocation56 + $0x18] sm:$0xff]
    %v2548 = vld [vmem:[#allocation58] sm:$0x1]
    %v2549 = vmax.f32 %v2542, 0.0
    %v2550 = vmax.f32 %v2543, 0.0
    %v2553 = vcombine.low %v2549, %v2550
    %v2554 = vsel %vm1018, %v2553, 0
    %2556 = vmatprep.subr.mxu0 0.0
    %2557 = vmatpush1.msra.mxu0 0.0
    %2558 = vmatprep.subr.mxu0 0.0
    %2559 = vmatpush1.msra.mxu0 0.0
    %2560 = vmatprep.subr.mxu0 0.0
    %2561 = vmatpush1.msra.mxu0 0.0
    %2562 = vmatprep.subr.mxu0 0.0
    %2563 = vmatpush1.msra.mxu0 0.0
    %2564 = vmatprep.subr.mxu0 0.0
    %2565 = vmatpush1.msra.mxu0 0.0
    %2566 = vmatprep.subr.mxu0 0.0
    %2567 = vmatpush1.msra.mxu0 0.0
    %2568 = vmatprep.subr.mxu0 0.0
    %2569 = vmatpush1.msra.mxu0 0.0
    %2570 = vmatprep.subr.mxu0 0.0
    %2571 = vmatpush1.msra.mxu0 0.0
    %2572 = vmatprep.subr.mxu0 0.0
    %2573 = vmatpush1.msra.mxu0 0.0
    %2574 = vmatprep.subr.mxu0 0.0
    %2575 = vmatpush1.msra.mxu0 0.0
    %2576 = vmatprep.subr.mxu0 0.0
    %2577 = vmatpush1.msra.mxu0 0.0
    %2578 = vmatprep.subr.mxu0 0.0
    %2579 = vmatpush1.msra.mxu0 0.0
    %2580 = vmatprep.subr.mxu0 0.0
    %2581 = vmatpush1.msra.mxu0 %v2547
    %2582 = vmatprep.subr.mxu0 0.0
    %2583 = vmatpush1.msra.mxu0 %v2546
    %2584 = vmatprep.subr.mxu0 0.0
    %2585 = vmatpush1.msra.mxu0 %v2545
    %2586 = vmatprep.subr.mxu0 0.0
    %2587 = vmatpush1.msra.mxu0 %v2544
    %2588 = vmatprep.subr.mxu0 0.0
    %2589 = vmatpush2.msra.mxu0 0.0
    %2590 = vmatprep.subr.mxu0 0.0
    %2591 = vmatpush2.msra.mxu0 0.0
    %2592 = vmatprep.subr.mxu0 0.0
    %2593 = vmatpush2.msra.mxu0 0.0
    %2594 = vmatprep.subr.mxu0 0.0
    %2595 = vmatpush2.msra.mxu0 0.0
    %2596 = vmatprep.subr.mxu0 0.0
    %2597 = vmatpush2.msra.mxu0 0.0
    %2598 = vmatprep.subr.mxu0 0.0
    %2599 = vmatpush2.msra.mxu0 0.0
    %2600 = vmatprep.subr.mxu0 0.0
    %2601 = vmatpush2.msra.mxu0 0.0
    %2602 = vmatprep.subr.mxu0 0.0
    %2603 = vmatpush2.msra.mxu0 0.0
    %2604 = vmatprep.subr.mxu0 0.0
    %2605 = vmatpush2.msra.mxu0 0.0
    %2606 = vmatprep.subr.mxu0 0.0
    %2607 = vmatpush2.msra.mxu0 0.0
    %2608 = vmatprep.subr.mxu0 0.0
    %2609 = vmatpush2.msra.mxu0 0.0
    %2610 = vmatprep.subr.mxu0 0.0
    %2611 = vmatpush2.msra.mxu0 0.0
    %2612 = vmatprep.subr.mxu0 0.0
    %2613 = vmatpush2.msra.mxu0 0.0
    %2614 = vmatprep.subr.mxu0 0.0
    %2615 = vmatpush2.msra.mxu0 0.0
    %2616 = vmatprep.subr.mxu0 0.0
    %2617 = vmatpush2.msra.mxu0 0.0
    %2618 = vmatprep.subr.mxu0 0.0
    %2619 = vmatpush2.msra.mxu0 0.0
    %2620 = vmatprep.mubr.f32.mxu0 0.0
    %2621 = vmatmul.mubr.f32.gmra.mxu0 %v2554
    %v2622 = vpop.f32.mrf.mxu0
    %v2623 = vadd.f32 0.0, %v2622
    %v2624 = vpop.f32.mrf.mxu0
    %2625 = vdwg.mxu0
    %v2627 = vcombine.high %v2623, %v2623
    %v2630 = vlaneseq
    %v2631 = vshrl.u32 %v2630, 7
    %v2632 = vsub.s32 0, %v2631
    %v2633 = vrot.slane %v2548, %v2632
    %v2635 = vadd.f32 %v2623, %v2633
    %v2636 = vadd.f32 %v2627, %v2633
    %v2640 = vunpack.c.l.s4 1983009808
    %v2641 = vunpack.c.0.s8 %v2640
    %v2642 = vlaneseq
    %v2643 = vshrl.u32 %v2642, 7
    %v2644 = vsub.s32 %v2641, %v2643
    %v2645 = vrot.slane %v2635, %v2644
    %v2646 = vcombine.high %v2645, %v2645
    %v2648 = vunpack.c.l.s4 1983009808
    %v2649 = vunpack.c.0.s8 %v2648
    %v2650 = vlaneseq
    %v2651 = vshrl.u32 %v2650, 7
    %v2652 = vsub.s32 %v2649, %v2651
    %v2653 = vrot.slane %v2636, %v2652
    %v2654 = vcombine.high %v2653, %v2653
    %v2655 = vrot.slane %v2645, 1
    %v2656 = vrot.slane %v2646, 1
    %v2657 = vrot.slane %v2653, 1
    %v2658 = vrot.slane %v2654, 1
    %v2667 = vadd.f32 %v2324, %v2645
    %v2668 = vadd.f32 %v2332, %v2655
    %v2669 = vadd.f32 %v2331, %v2646
    %v2670 = vadd.f32 %v2333, %v2656
    %v2671 = vadd.f32 %v2341, %v2653
    %v2672 = vadd.f32 %v2349, %v2657
    %v2673 = vadd.f32 %v2348, %v2654
    %v2674 = vadd.f32 %v2350, %v2658
    %v2675 = vld [vmem:[%s89] sm:$0xff]
    %v2676 = vld [vmem:[%s89 + $0x8] sm:$0xff]
    %v2677 = vld [vmem:[%s89 + $0x10] sm:$0xff]
    %v2678 = vld [vmem:[%s89 + $0x18] sm:$0xff]
    %v2679 = vld [vmem:[%s89 + $0x20] sm:$0xff]
    %v2680 = vld [vmem:[%s89 + $0x28] sm:$0xff]
    %v2681 = vld [vmem:[%s89 + $0x30] sm:$0xff]
    %v2682 = vld [vmem:[%s89 + $0x38] sm:$0xff]
    %v2683 = vld [vmem:[%s89 + $0x40] sm:$0xff]
    %v2684 = vld [vmem:[%s89 + $0x48] sm:$0xff]
    %v2685 = vld [vmem:[%s89 + $0x50] sm:$0xff]
    %v2686 = vld [vmem:[%s89 + $0x58] sm:$0xff]
    %v2687 = vld [vmem:[%s91] sm:$0x1]
    %v2688 = vmax.f32 %v2667, 0.0
    %v2689 = vmax.f32 %v2668, 0.0
    %v2690 = vmax.f32 %v2669, 0.0
    %v2691 = vmax.f32 %v2670, 0.0
    %v2692 = vmax.f32 %v2671, 0.0
    %v2693 = vmax.f32 %v2672, 0.0
    %v2694 = vmax.f32 %v2673, 0.0
    %v2695 = vmax.f32 %v2674, 0.0
    %v2704 = vlaneseq
    %v2705 = vshrl.u32 %v2704, 7
    %v2706 = vsub.s32 0, %v2705
    %v2707 = vrot.slane %v2688, %v2706
    %v2708 = vlaneseq
    %v2709 = vshrl.u32 %v2708, 7
    %v2710 = vsub.s32 0, %v2709
    %v2711 = vrot.slane %v2689, %v2710
    %v2712 = vlaneseq
    %v2713 = vshrl.u32 %v2712, 7
    %v2714 = vsub.s32 0, %v2713
    %v2715 = vrot.slane %v2690, %v2714
    %v2716 = vlaneseq
    %v2717 = vshrl.u32 %v2716, 7
    %v2718 = vsub.s32 0, %v2717
    %v2719 = vrot.slane %v2691, %v2718
    %v2720 = vlaneseq
    %v2721 = vshrl.u32 %v2720, 7
    %v2722 = vsub.s32 0, %v2721
    %v2723 = vrot.slane %v2692, %v2722
    %v2724 = vlaneseq
    %v2725 = vshrl.u32 %v2724, 7
    %v2726 = vsub.s32 0, %v2725
    %v2727 = vrot.slane %v2693, %v2726
    %v2728 = vlaneseq
    %v2729 = vshrl.u32 %v2728, 7
    %v2730 = vsub.s32 0, %v2729
    %v2731 = vrot.slane %v2694, %v2730
    %v2732 = vlaneseq
    %v2733 = vshrl.u32 %v2732, 7
    %v2734 = vsub.s32 0, %v2733
    %v2735 = vrot.slane %v2695, %v2734
    %v2736 = vsel %vm1335, %v2711, %v2707
    %v2737 = vsel %vm1756, %v2715, %v2736
    %v2738 = vsel %vm1325, %v2719, %v2737
    %v2739 = vsel %vm1335, %v2727, %v2723
    %v2740 = vsel %vm1756, %v2731, %v2739
    %v2741 = vsel %vm1325, %v2735, %v2740
    %v2744 = vsel %vm717, 0.0, %v2738
    %v2745 = vsel %vm717, 0.0, %v2741
    %v2746 = vsel %vm995, %v2744, 0.0
    %v2747 = vsel %vm995, %v2745, 0.0
    %v2750 = vrot.slane %v2746, 1
    %v2751 = vrot.slane %v2747, 1
    %2752 = vrot.lane.b32.xlu0 %v2750, 32
    %v2753 = vpop.permute.xlu0 %2752
    %2754 = vrot.lane.b32.xlu0 %v2751, 32
    %v2755 = vpop.permute.xlu0 %2754
    %v2758 = vrot.slane %v2746, 2
    %v2759 = vrot.slane %v2747, 2
    %2760 = vrot.lane.b32.xlu0 %v2758, 64
    %v2761 = vpop.permute.xlu0 %2760
    %2762 = vrot.lane.b32.xlu0 %v2759, 64
    %v2763 = vpop.permute.xlu0 %2762
    %v2766 = vsel %vm1018, %v2746, %v2753
    %v2767 = vsel %vm1018, %v2747, %v2755
    %v2768 = vsel %vm1023, %v2766, %v2761
    %v2769 = vsel %vm1023, %v2767, %v2763
    %v2772 = vcombine.low %v2768, %v2769
    %v2773 = vsel %vm1028, %v2772, 0
    %2775 = vmatprep.subr.mxu0 0.0
    %2776 = vmatpush1.msra.mxu0 0.0
    %2777 = vmatprep.subr.mxu0 0.0
    %2778 = vmatpush1.msra.mxu0 0.0
    %2779 = vmatprep.subr.mxu0 0.0
    %2780 = vmatpush1.msra.mxu0 0.0
    %2781 = vmatprep.subr.mxu0 0.0
    %2782 = vmatpush1.msra.mxu0 0.0
    %2783 = vmatprep.subr.mxu0 0.0
    %2784 = vmatpush1.msra.mxu0 %v2686
    %2785 = vmatprep.subr.mxu0 0.0
    %2786 = vmatpush1.msra.mxu0 %v2685
    %2787 = vmatprep.subr.mxu0 0.0
    %2788 = vmatpush1.msra.mxu0 %v2684
    %2789 = vmatprep.subr.mxu0 0.0
    %2790 = vmatpush1.msra.mxu0 %v2683
    %2791 = vmatprep.subr.mxu0 0.0
    %2792 = vmatpush1.msra.mxu0 %v2682
    %2793 = vmatprep.subr.mxu0 0.0
    %2794 = vmatpush1.msra.mxu0 %v2681
    %2795 = vmatprep.subr.mxu0 0.0
    %2796 = vmatpush1.msra.mxu0 %v2680
    %2797 = vmatprep.subr.mxu0 0.0
    %2798 = vmatpush1.msra.mxu0 %v2679
    %2799 = vmatprep.subr.mxu0 0.0
    %2800 = vmatpush1.msra.mxu0 %v2678
    %2801 = vmatprep.subr.mxu0 0.0
    %2802 = vmatpush1.msra.mxu0 %v2677
    %2803 = vmatprep.subr.mxu0 0.0
    %2804 = vmatpush1.msra.mxu0 %v2676
    %2805 = vmatprep.subr.mxu0 0.0
    %2806 = vmatpush1.msra.mxu0 %v2675
    %2807 = vmatprep.subr.mxu0 0.0
    %2808 = vmatpush2.msra.mxu0 0.0
    %2809 = vmatprep.subr.mxu0 0.0
    %2810 = vmatpush2.msra.mxu0 0.0
    %2811 = vmatprep.subr.mxu0 0.0
    %2812 = vmatpush2.msra.mxu0 0.0
    %2813 = vmatprep.subr.mxu0 0.0
    %2814 = vmatpush2.msra.mxu0 0.0
    %2815 = vmatprep.subr.mxu0 0.0
    %2816 = vmatpush2.msra.mxu0 0.0
    %2817 = vmatprep.subr.mxu0 0.0
    %2818 = vmatpush2.msra.mxu0 0.0
    %2819 = vmatprep.subr.mxu0 0.0
    %2820 = vmatpush2.msra.mxu0 0.0
    %2821 = vmatprep.subr.mxu0 0.0
    %2822 = vmatpush2.msra.mxu0 0.0
    %2823 = vmatprep.subr.mxu0 0.0
    %2824 = vmatpush2.msra.mxu0 0.0
    %2825 = vmatprep.subr.mxu0 0.0
    %2826 = vmatpush2.msra.mxu0 0.0
    %2827 = vmatprep.subr.mxu0 0.0
    %2828 = vmatpush2.msra.mxu0 0.0
    %2829 = vmatprep.subr.mxu0 0.0
    %2830 = vmatpush2.msra.mxu0 0.0
    %2831 = vmatprep.subr.mxu0 0.0
    %2832 = vmatpush2.msra.mxu0 0.0
    %2833 = vmatprep.subr.mxu0 0.0
    %2834 = vmatpush2.msra.mxu0 0.0
    %2835 = vmatprep.subr.mxu0 0.0
    %2836 = vmatpush2.msra.mxu0 0.0
    %2837 = vmatprep.subr.mxu0 0.0
    %2838 = vmatpush2.msra.mxu0 0.0
    %2839 = vmatprep.mubr.f32.mxu0 0.0
    %2840 = vmatmul.mubr.f32.gmra.mxu0 %v2773
    %v2841 = vpop.f32.mrf.mxu0
    %v2842 = vadd.f32 0.0, %v2841
    %v2843 = vpop.f32.mrf.mxu0
    %2844 = vdwg.mxu0
    %v2846 = vcombine.high %v2842, %v2842
    %v2849 = vlaneseq
    %v2850 = vshrl.u32 %v2849, 7
    %v2851 = vsub.s32 0, %v2850
    %v2852 = vrot.slane %v2687, %v2851
    %v2854 = vadd.f32 %v2842, %v2852
    %v2855 = vadd.f32 %v2846, %v2852
    %v2856 = vld [vmem:[%s93] sm:$0xff]
    %v2857 = vld [vmem:[%s93 + $0x8] sm:$0xff]
    %v2858 = vld [vmem:[%s93 + $0x10] sm:$0xff]
    %v2859 = vld [vmem:[%s93 + $0x18] sm:$0xff]
    %v2860 = vld [vmem:[%s95] sm:$0x1]
    %v2861 = vmax.f32 %v2854, 0.0
    %v2862 = vmax.f32 %v2855, 0.0
    %v2865 = vcombine.low %v2861, %v2862
    %v2866 = vsel %vm1018, %v2865, 0
    %2868 = vmatprep.subr.mxu0 0.0
    %2869 = vmatpush1.msra.mxu0 0.0
    %2870 = vmatprep.subr.mxu0 0.0
    %2871 = vmatpush1.msra.mxu0 0.0
    %2872 = vmatprep.subr.mxu0 0.0
    %2873 = vmatpush1.msra.mxu0 0.0
    %2874 = vmatprep.subr.mxu0 0.0
    %2875 = vmatpush1.msra.mxu0 0.0
    %2876 = vmatprep.subr.mxu0 0.0
    %2877 = vmatpush1.msra.mxu0 0.0
    %2878 = vmatprep.subr.mxu0 0.0
    %2879 = vmatpush1.msra.mxu0 0.0
    %2880 = vmatprep.subr.mxu0 0.0
    %2881 = vmatpush1.msra.mxu0 0.0
    %2882 = vmatprep.subr.mxu0 0.0
    %2883 = vmatpush1.msra.mxu0 0.0
    %2884 = vmatprep.subr.mxu0 0.0
    %2885 = vmatpush1.msra.mxu0 0.0
    %2886 = vmatprep.subr.mxu0 0.0
    %2887 = vmatpush1.msra.mxu0 0.0
    %2888 = vmatprep.subr.mxu0 0.0
    %2889 = vmatpush1.msra.mxu0 0.0
    %2890 = vmatprep.subr.mxu0 0.0
    %2891 = vmatpush1.msra.mxu0 0.0
    %2892 = vmatprep.subr.mxu0 0.0
    %2893 = vmatpush1.msra.mxu0 %v2859
    %2894 = vmatprep.subr.mxu0 0.0
    %2895 = vmatpush1.msra.mxu0 %v2858
    %2896 = vmatprep.subr.mxu0 0.0
    %2897 = vmatpush1.msra.mxu0 %v2857
    %2898 = vmatprep.subr.mxu0 0.0
    %2899 = vmatpush1.msra.mxu0 %v2856
    %2900 = vmatprep.subr.mxu0 0.0
    %2901 = vmatpush2.msra.mxu0 0.0
    %2902 = vmatprep.subr.mxu0 0.0
    %2903 = vmatpush2.msra.mxu0 0.0
    %2904 = vmatprep.subr.mxu0 0.0
    %2905 = vmatpush2.msra.mxu0 0.0
    %2906 = vmatprep.subr.mxu0 0.0
    %2907 = vmatpush2.msra.mxu0 0.0
    %2908 = vmatprep.subr.mxu0 0.0
    %2909 = vmatpush2.msra.mxu0 0.0
    %2910 = vmatprep.subr.mxu0 0.0
    %2911 = vmatpush2.msra.mxu0 0.0
    %2912 = vmatprep.subr.mxu0 0.0
    %2913 = vmatpush2.msra.mxu0 0.0
    %2914 = vmatprep.subr.mxu0 0.0
    %2915 = vmatpush2.msra.mxu0 0.0
    %2916 = vmatprep.subr.mxu0 0.0
    %2917 = vmatpush2.msra.mxu0 0.0
    %2918 = vmatprep.subr.mxu0 0.0
    %2919 = vmatpush2.msra.mxu0 0.0
    %2920 = vmatprep.subr.mxu0 0.0
    %2921 = vmatpush2.msra.mxu0 0.0
    %2922 = vmatprep.subr.mxu0 0.0
    %2923 = vmatpush2.msra.mxu0 0.0
    %2924 = vmatprep.subr.mxu0 0.0
    %2925 = vmatpush2.msra.mxu0 0.0
    %2926 = vmatprep.subr.mxu0 0.0
    %2927 = vmatpush2.msra.mxu0 0.0
    %2928 = vmatprep.subr.mxu0 0.0
    %2929 = vmatpush2.msra.mxu0 0.0
    %2930 = vmatprep.subr.mxu0 0.0
    %2931 = vmatpush2.msra.mxu0 0.0
    %2932 = vmatprep.mubr.f32.mxu0 0.0
    %2933 = vmatmul.mubr.f32.gmra.mxu0 %v2866
    %v2934 = vpop.f32.mrf.mxu0
    %v2935 = vadd.f32 0.0, %v2934
    %v2936 = vpop.f32.mrf.mxu0
    %2937 = vdwg.mxu0
    %v2939 = vcombine.high %v2935, %v2935
    %v2942 = vlaneseq
    %v2943 = vshrl.u32 %v2942, 7
    %v2944 = vsub.s32 0, %v2943
    %v2945 = vrot.slane %v2860, %v2944
    %v2947 = vadd.f32 %v2935, %v2945
    %v2948 = vadd.f32 %v2939, %v2945
    %v2952 = vunpack.c.l.s4 1983009808
    %v2953 = vunpack.c.0.s8 %v2952
    %v2954 = vlaneseq
    %v2955 = vshrl.u32 %v2954, 7
    %v2956 = vsub.s32 %v2953, %v2955
    %v2957 = vrot.slane %v2947, %v2956
    %v2958 = vcombine.high %v2957, %v2957
    %v2960 = vunpack.c.l.s4 1983009808
    %v2961 = vunpack.c.0.s8 %v2960
    %v2962 = vlaneseq
    %v2963 = vshrl.u32 %v2962, 7
    %v2964 = vsub.s32 %v2961, %v2963
    %v2965 = vrot.slane %v2948, %v2964
    %v2966 = vcombine.high %v2965, %v2965
    %v2967 = vrot.slane %v2957, 1
    %v2968 = vrot.slane %v2958, 1
    %v2969 = vrot.slane %v2965, 1
    %v2970 = vrot.slane %v2966, 1
    %v2979 = vadd.f32 %v2667, %v2957
    %v2980 = vadd.f32 %v2668, %v2967
    %v2981 = vadd.f32 %v2669, %v2958
    %v2982 = vadd.f32 %v2670, %v2968
    %v2983 = vadd.f32 %v2671, %v2965
    %v2984 = vadd.f32 %v2672, %v2969
    %v2985 = vadd.f32 %v2673, %v2966
    %v2986 = vadd.f32 %v2674, %v2970
    %v2987 = vld [vmem:[%s101] sm:$0xff]
    %v2988 = vld [vmem:[%s101 + $0x8] sm:$0xff]
    %v2989 = vld [vmem:[%s101 + $0x10] sm:$0xff]
    %v2990 = vld [vmem:[%s101 + $0x18] sm:$0xff]
    %v2991 = vld [vmem:[%s101 + $0x20] sm:$0xff]
    %v2992 = vld [vmem:[%s101 + $0x28] sm:$0xff]
    %v2993 = vld [vmem:[%s101 + $0x30] sm:$0xff]
    %v2994 = vld [vmem:[%s101 + $0x38] sm:$0xff]
    %v2995 = vld [vmem:[%s101 + $0x40] sm:$0xff]
    %v2996 = vld [vmem:[%s101 + $0x48] sm:$0xff]
    %v2997 = vld [vmem:[%s101 + $0x50] sm:$0xff]
    %v2998 = vld [vmem:[%s101 + $0x58] sm:$0xff]
    %v2999 = vld [vmem:[#allocation61] sm:$0x1]
    %v3008 = vlaneseq
    %v3009 = vshrl.u32 %v3008, 7
    %v3010 = vsub.s32 0, %v3009
    %v3011 = vrot.slane %v2979, %v3010
    %v3012 = vlaneseq
    %v3013 = vshrl.u32 %v3012, 7
    %v3014 = vsub.s32 0, %v3013
    %v3015 = vrot.slane %v2980, %v3014
    %v3016 = vlaneseq
    %v3017 = vshrl.u32 %v3016, 7
    %v3018 = vsub.s32 0, %v3017
    %v3019 = vrot.slane %v2981, %v3018
    %v3020 = vlaneseq
    %v3021 = vshrl.u32 %v3020, 7
    %v3022 = vsub.s32 0, %v3021
    %v3023 = vrot.slane %v2982, %v3022
    %v3024 = vlaneseq
    %v3025 = vshrl.u32 %v3024, 7
    %v3026 = vsub.s32 0, %v3025
    %v3027 = vrot.slane %v2983, %v3026
    %v3028 = vlaneseq
    %v3029 = vshrl.u32 %v3028, 7
    %v3030 = vsub.s32 0, %v3029
    %v3031 = vrot.slane %v2984, %v3030
    %v3032 = vlaneseq
    %v3033 = vshrl.u32 %v3032, 7
    %v3034 = vsub.s32 0, %v3033
    %v3035 = vrot.slane %v2985, %v3034
    %v3036 = vlaneseq
    %v3037 = vshrl.u32 %v3036, 7
    %v3038 = vsub.s32 0, %v3037
    %v3039 = vrot.slane %v2986, %v3038
    %v3040 = vsel %vm1335, %v3015, %v3011
    %v3041 = vsel %vm1756, %v3019, %v3040
    %v3042 = vsel %vm1325, %v3023, %v3041
    %v3043 = vsel %vm1335, %v3031, %v3027
    %v3044 = vsel %vm1756, %v3035, %v3043
    %v3045 = vsel %vm1325, %v3039, %v3044
    %v3048 = vsel %vm717, 0.0, %v3042
    %v3049 = vsel %vm717, 0.0, %v3045
    %v3050 = vsel %vm995, %v3048, 0.0
    %v3051 = vsel %vm995, %v3049, 0.0
    %v3054 = vrot.slane %v3050, 1
    %v3055 = vrot.slane %v3051, 1
    %3056 = vrot.lane.b32.xlu0 %v3054, 32
    %v3057 = vpop.permute.xlu0 %3056
    %3058 = vrot.lane.b32.xlu0 %v3055, 32
    %v3059 = vpop.permute.xlu0 %3058
    %v3062 = vrot.slane %v3050, 2
    %v3063 = vrot.slane %v3051, 2
    %3064 = vrot.lane.b32.xlu0 %v3062, 64
    %v3065 = vpop.permute.xlu0 %3064
    %3066 = vrot.lane.b32.xlu0 %v3063, 64
    %v3067 = vpop.permute.xlu0 %3066
    %v3070 = vsel %vm1018, %v3050, %v3057
    %v3071 = vsel %vm1018, %v3051, %v3059
    %v3072 = vsel %vm1023, %v3070, %v3065
    %v3073 = vsel %vm1023, %v3071, %v3067
    %v3076 = vcombine.low %v3072, %v3073
    %v3077 = vsel %vm1028, %v3076, 0
    %3079 = vmatprep.subr.mxu0 0.0
    %3080 = vmatpush1.msra.mxu0 0.0
    %3081 = vmatprep.subr.mxu0 0.0
    %3082 = vmatpush1.msra.mxu0 0.0
    %3083 = vmatprep.subr.mxu0 0.0
    %3084 = vmatpush1.msra.mxu0 0.0
    %3085 = vmatprep.subr.mxu0 0.0
    %3086 = vmatpush1.msra.mxu0 0.0
    %3087 = vmatprep.subr.mxu0 0.0
    %3088 = vmatpush1.msra.mxu0 %v2998
    %3089 = vmatprep.subr.mxu0 0.0
    %3090 = vmatpush1.msra.mxu0 %v2997
    %3091 = vmatprep.subr.mxu0 0.0
    %3092 = vmatpush1.msra.mxu0 %v2996
    %3093 = vmatprep.subr.mxu0 0.0
    %3094 = vmatpush1.msra.mxu0 %v2995
    %3095 = vmatprep.subr.mxu0 0.0
    %3096 = vmatpush1.msra.mxu0 %v2994
    %3097 = vmatprep.subr.mxu0 0.0
    %3098 = vmatpush1.msra.mxu0 %v2993
    %3099 = vmatprep.subr.mxu0 0.0
    %3100 = vmatpush1.msra.mxu0 %v2992
    %3101 = vmatprep.subr.mxu0 0.0
    %3102 = vmatpush1.msra.mxu0 %v2991
    %3103 = vmatprep.subr.mxu0 0.0
    %3104 = vmatpush1.msra.mxu0 %v2990
    %3105 = vmatprep.subr.mxu0 0.0
    %3106 = vmatpush1.msra.mxu0 %v2989
    %3107 = vmatprep.subr.mxu0 0.0
    %3108 = vmatpush1.msra.mxu0 %v2988
    %3109 = vmatprep.subr.mxu0 0.0
    %3110 = vmatpush1.msra.mxu0 %v2987
    %3111 = vmatprep.subr.mxu0 0.0
    %3112 = vmatpush2.msra.mxu0 0.0
    %3113 = vmatprep.subr.mxu0 0.0
    %3114 = vmatpush2.msra.mxu0 0.0
    %3115 = vmatprep.subr.mxu0 0.0
    %3116 = vmatpush2.msra.mxu0 0.0
    %3117 = vmatprep.subr.mxu0 0.0
    %3118 = vmatpush2.msra.mxu0 0.0
    %3119 = vmatprep.subr.mxu0 0.0
    %3120 = vmatpush2.msra.mxu0 0.0
    %3121 = vmatprep.subr.mxu0 0.0
    %3122 = vmatpush2.msra.mxu0 0.0
    %3123 = vmatprep.subr.mxu0 0.0
    %3124 = vmatpush2.msra.mxu0 0.0
    %3125 = vmatprep.subr.mxu0 0.0
    %3126 = vmatpush2.msra.mxu0 0.0
    %3127 = vmatprep.subr.mxu0 0.0
    %3128 = vmatpush2.msra.mxu0 0.0
    %3129 = vmatprep.subr.mxu0 0.0
    %3130 = vmatpush2.msra.mxu0 0.0
    %3131 = vmatprep.subr.mxu0 0.0
    %3132 = vmatpush2.msra.mxu0 0.0
    %3133 = vmatprep.subr.mxu0 0.0
    %3134 = vmatpush2.msra.mxu0 0.0
    %3135 = vmatprep.subr.mxu0 0.0
    %3136 = vmatpush2.msra.mxu0 0.0
    %3137 = vmatprep.subr.mxu0 0.0
    %3138 = vmatpush2.msra.mxu0 0.0
    %3139 = vmatprep.subr.mxu0 0.0
    %3140 = vmatpush2.msra.mxu0 0.0
    %3141 = vmatprep.subr.mxu0 0.0
    %3142 = vmatpush2.msra.mxu0 0.0
    %3143 = vmatprep.mubr.f32.mxu0 0.0
    %3144 = vmatmul.mubr.f32.gmra.mxu0 %v3077
    %v3145 = vpop.f32.mrf.mxu0
    %v3146 = vadd.f32 0.0, %v3145
    %v3147 = vpop.f32.mrf.mxu0
    %3148 = vdwg.mxu0
    %v3150 = vcombine.high %v3146, %v3146
    %v3153 = vlaneseq
    %v3154 = vshrl.u32 %v3153, 7
    %v3155 = vsub.s32 0, %v3154
    %v3156 = vrot.slane %v2999, %v3155
    %v3158 = vadd.f32 %v3146, %v3156
    %v3159 = vadd.f32 %v3150, %v3156
    %v3160 = vld [vmem:[%s3] sm:$0xff]
    %v3161 = vld [vmem:[%s3 + $0x8] sm:$0xff]
    %v3162 = vld [vmem:[%s3 + $0x10] sm:$0xff]
    %v3163 = vld [vmem:[%s3 + $0x18] sm:$0xff]
    %v3164 = vld [vmem:[%s3 + $0x20] sm:$0xff]
    %v3165 = vld [vmem:[%s3 + $0x28] sm:$0xff]
    %v3166 = vld [vmem:[%s3 + $0x30] sm:$0xff]
    %v3167 = vld [vmem:[%s3 + $0x38] sm:$0xff]
    %3168 = vxpose.xlu0.b32.start [1/16] %v3160, 128
    %3169 = vxpose.xlu0.b32.cont [2/16] %v3161, 128
    %3170 = vxpose.xlu0.b32.cont [3/16] %v3162, 128
    %3171 = vxpose.xlu0.b32.cont [4/16] %v3163, 128
    %3172 = vxpose.xlu0.b32.cont [5/16] %v3164, 128
    %3173 = vxpose.xlu0.b32.cont [6/16] %v3165, 128
    %3174 = vxpose.xlu0.b32.cont [7/16] %v3166, 128
    %3175 = vxpose.xlu0.b32.cont [8/16] %v3167, 128
    %3176 = vxpose.xlu0.b32.cont [9/16] 0.0, 128
    %3177 = vxpose.xlu0.b32.cont [10/16] 0.0, 128
    %3178 = vxpose.xlu0.b32.cont [11/16] 0.0, 128
    %3179 = vxpose.xlu0.b32.cont [12/16] 0.0, 128
    %3180 = vxpose.xlu0.b32.cont [13/16] 0.0, 128
    %3181 = vxpose.xlu0.b32.cont [14/16] 0.0, 128
    %3182 = vxpose.xlu0.b32.cont [15/16] 0.0, 128
    %3183 = vxpose.xlu0.b32.end [16/16] 0.0, 128
    %v3184 = vpop.trf.xlu0
    %v3185 = vpop.trf.xlu0
    %v3186 = vpop.trf.xlu0
    %v3187 = vpop.trf.xlu0
    %v3188 = vpop.trf.xlu0
    %v3189 = vpop.trf.xlu0
    %v3190 = vpop.trf.xlu0
    %v3191 = vpop.trf.xlu0
    %v3192 = vpop.trf.xlu0
    %v3193 = vpop.trf.xlu0
    %v3194 = vpop.trf.xlu0
    %v3195 = vpop.trf.xlu0
    %v3196 = vpop.trf.xlu0
    %v3197 = vpop.trf.xlu0
    %v3198 = vpop.trf.xlu0
    %v3199 = vpop.trf.xlu0
    %v3202 = vcombine.low %v3158, %v3159
    %v3203 = vsel %vm1018, %v3202, 0
    %3205 = vmatprep.subr.mxu0 0.0
    %3206 = vmatpush1.msra.mxu0 0.0
    %3207 = vmatprep.subr.mxu0 0.0
    %3208 = vmatpush1.msra.mxu0 0.0
    %3209 = vmatprep.subr.mxu0 0.0
    %3210 = vmatpush1.msra.mxu0 0.0
    %3211 = vmatprep.subr.mxu0 0.0
    %3212 = vmatpush1.msra.mxu0 0.0
    %3213 = vmatprep.subr.mxu0 0.0
    %3214 = vmatpush1.msra.mxu0 0.0
    %3215 = vmatprep.subr.mxu0 0.0
    %3216 = vmatpush1.msra.mxu0 0.0
    %3217 = vmatprep.subr.mxu0 0.0
    %3218 = vmatpush1.msra.mxu0 0.0
    %3219 = vmatprep.subr.mxu0 0.0
    %3220 = vmatpush1.msra.mxu0 0.0
    %3221 = vmatprep.subr.mxu0 0.0
    %3222 = vmatpush1.msra.mxu0 0.0
    %3223 = vmatprep.subr.mxu0 0.0
    %3224 = vmatpush1.msra.mxu0 0.0
    %3225 = vmatprep.subr.mxu0 0.0
    %3226 = vmatpush1.msra.mxu0 0.0
    %3227 = vmatprep.subr.mxu0 0.0
    %3228 = vmatpush1.msra.mxu0 0.0
    %3229 = vmatprep.subr.mxu0 0.0
    %3230 = vmatpush1.msra.mxu0 %v3187
    %3231 = vmatprep.subr.mxu0 0.0
    %3232 = vmatpush1.msra.mxu0 %v3186
    %3233 = vmatprep.subr.mxu0 0.0
    %3234 = vmatpush1.msra.mxu0 %v3185
    %3235 = vmatprep.subr.mxu0 0.0
    %3236 = vmatpush1.msra.mxu0 %v3184
    %3237 = vmatprep.subr.mxu0 0.0
    %3238 = vmatpush2.msra.mxu0 0.0
    %3239 = vmatprep.subr.mxu0 0.0
    %3240 = vmatpush2.msra.mxu0 0.0
    %3241 = vmatprep.subr.mxu0 0.0
    %3242 = vmatpush2.msra.mxu0 0.0
    %3243 = vmatprep.subr.mxu0 0.0
    %3244 = vmatpush2.msra.mxu0 0.0
    %3245 = vmatprep.subr.mxu0 0.0
    %3246 = vmatpush2.msra.mxu0 0.0
    %3247 = vmatprep.subr.mxu0 0.0
    %3248 = vmatpush2.msra.mxu0 0.0
    %3249 = vmatprep.subr.mxu0 0.0
    %3250 = vmatpush2.msra.mxu0 0.0
    %3251 = vmatprep.subr.mxu0 0.0
    %3252 = vmatpush2.msra.mxu0 0.0
    %3253 = vmatprep.subr.mxu0 0.0
    %3254 = vmatpush2.msra.mxu0 0.0
    %3255 = vmatprep.subr.mxu0 0.0
    %3256 = vmatpush2.msra.mxu0 0.0
    %3257 = vmatprep.subr.mxu0 0.0
    %3258 = vmatpush2.msra.mxu0 0.0
    %3259 = vmatprep.subr.mxu0 0.0
    %3260 = vmatpush2.msra.mxu0 0.0
    %3261 = vmatprep.subr.mxu0 0.0
    %3262 = vmatpush2.msra.mxu0 0.0
    %3263 = vmatprep.subr.mxu0 0.0
    %3264 = vmatpush2.msra.mxu0 0.0
    %3265 = vmatprep.subr.mxu0 0.0
    %3266 = vmatpush2.msra.mxu0 0.0
    %3267 = vmatprep.subr.mxu0 0.0
    %3268 = vmatpush2.msra.mxu0 0.0
    %3269 = vmatprep.mubr.f32.mxu0 0.0
    %3270 = vmatmul.mubr.f32.gmra.mxu0 %v3203
    %v3271 = vpop.f32.mrf.mxu0
    %v3272 = vadd.f32 0.0, %v3271
    %v3273 = vpop.f32.mrf.mxu0
    %3274 = vdwg.mxu0
    %v3275 = vmul.f32 %v3184, %v3184
    %v3276 = vmul.f32 %v3185, %v3185
    %v3277 = vmul.f32 %v3186, %v3186
    %v3278 = vmul.f32 %v3187, %v3187
    %v3279 = vsel %vm1023, %v3275, 0.0
    %v3280 = vsel %vm1023, %v3276, 0.0
    %v3281 = vadd.f32 %v3279, %v3280
    %v3282 = vsel %vm1023, %v3277, 0.0
    %v3283 = vadd.f32 %v3281, %v3282
    %v3284 = vsel %vm1023, %v3278, 0.0
    %v3285 = vadd.f32 %v3283, %v3284
    %v3286 = vrot.slane %v3285, 4
    %v3287 = vadd.f32 %v3285, %v3286
    %v3288 = vrot.slane %v3287, 2
    %v3289 = vadd.f32 %v3287, %v3288
    %v3290 = vrot.slane %v3289, 1
    %v3291 = vadd.f32 %v3289, %v3290
    %v3292 = vmul.f32 %v3272, 2.0
    %v3293 = vsub.f32 %v3291, %v3292
    %v3294 = vlaneseq
    %v3295 = vand.u32 %v3294, 127
    %v3296 = vsel %vm1023, %v3293, inf
    %3297 = vmin.xlane.f32.xlu0 %v3296
    %v3298 = vpop.xlane.xlu0 %3297
    %vm3299 = vcmp.le.f32.partialorder %v3293, %v3298
    %v3300 = vsel %vm3299, %v3295, 1073741824
    %v3301 = vsel %vm1023, %v3300, 2147483647
    %v3302 = vand.u32 %v3301, 65535
    %v3303 = vshra.s32 %v3301, 16
    %v3304 = vcvt.s32.f32 %v3302
    %v3305 = vcvt.s32.f32 %v3303
    %3306 = vmin.xlane.f32.xlu0 %v3305
    %v3307 = vpop.xlane.xlu0 %3306
    %vm3308 = vcmp.eq.f32.partialorder %v3305, %v3307
    %v3309 = vsel %vm3308, %v3304, inf
    %3310 = vmin.xlane.f32.xlu0 %v3309
    %v3311 = vpop.xlane.xlu0 %3310
    %v3312 = vcvt.f32.s32 %v3311
    %v3313 = vcvt.f32.s32 %v3307
    %v3314 = vshll.u32 %v3313, 16
    %v3315 = vadd.s32 %v3314, %v3312
    %vm3316 = vcmp.eq.s32.totalorder %v3295, %v3315
    %v3317 = vsel %vm3316, 1, 0
    %v3318 = vcvt.s32.f32 %v3317
    %v3320 = vsel %vm1023, %v3318, 0
    %3322 = vmatprep.subr.mxu0 0.0
    %3323 = vmatpush1.msra.mxu0 0.0
    %3324 = vmatprep.subr.mxu0 0.0
    %3325 = vmatpush1.msra.mxu0 0.0
    %3326 = vmatprep.subr.mxu0 0.0
    %3327 = vmatpush1.msra.mxu0 0.0
    %3328 = vmatprep.subr.mxu0 0.0
    %3329 = vmatpush1.msra.mxu0 0.0
    %3330 = vmatprep.subr.mxu0 0.0
    %3331 = vmatpush1.msra.mxu0 0.0
    %3332 = vmatprep.subr.mxu0 0.0
    %3333 = vmatpush1.msra.mxu0 0.0
    %3334 = vmatprep.subr.mxu0 0.0
    %3335 = vmatpush1.msra.mxu0 0.0
    %3336 = vmatprep.subr.mxu0 0.0
    %3337 = vmatpush1.msra.mxu0 0.0
    %3338 = vmatprep.subr.mxu0 0.0
    %3339 = vmatpush1.msra.mxu0 %v3167
    %3340 = vmatprep.subr.mxu0 0.0
    %3341 = vmatpush1.msra.mxu0 %v3166
    %3342 = vmatprep.subr.mxu0 0.0
    %3343 = vmatpush1.msra.mxu0 %v3165
    %3344 = vmatprep.subr.mxu0 0.0
    %3345 = vmatpush1.msra.mxu0 %v3164
    %3346 = vmatprep.subr.mxu0 0.0
    %3347 = vmatpush1.msra.mxu0 %v3163
    %3348 = vmatprep.subr.mxu0 0.0
    %3349 = vmatpush1.msra.mxu0 %v3162
    %3350 = vmatprep.subr.mxu0 0.0
    %3351 = vmatpush1.msra.mxu0 %v3161
    %3352 = vmatprep.subr.mxu0 0.0
    %3353 = vmatpush1.msra.mxu0 %v3160
    %3354 = vmatprep.subr.mxu0 0.0
    %3355 = vmatpush2.msra.mxu0 0.0
    %3356 = vmatprep.subr.mxu0 0.0
    %3357 = vmatpush2.msra.mxu0 0.0
    %3358 = vmatprep.subr.mxu0 0.0
    %3359 = vmatpush2.msra.mxu0 0.0
    %3360 = vmatprep.subr.mxu0 0.0
    %3361 = vmatpush2.msra.mxu0 0.0
    %3362 = vmatprep.subr.mxu0 0.0
    %3363 = vmatpush2.msra.mxu0 0.0
    %3364 = vmatprep.subr.mxu0 0.0
    %3365 = vmatpush2.msra.mxu0 0.0
    %3366 = vmatprep.subr.mxu0 0.0
    %3367 = vmatpush2.msra.mxu0 0.0
    %3368 = vmatprep.subr.mxu0 0.0
    %3369 = vmatpush2.msra.mxu0 0.0
    %3370 = vmatprep.subr.mxu0 0.0
    %3371 = vmatpush2.msra.mxu0 0.0
    %3372 = vmatprep.subr.mxu0 0.0
    %3373 = vmatpush2.msra.mxu0 0.0
    %3374 = vmatprep.subr.mxu0 0.0
    %3375 = vmatpush2.msra.mxu0 0.0
    %3376 = vmatprep.subr.mxu0 0.0
    %3377 = vmatpush2.msra.mxu0 0.0
    %3378 = vmatprep.subr.mxu0 0.0
    %3379 = vmatpush2.msra.mxu0 0.0
    %3380 = vmatprep.subr.mxu0 0.0
    %3381 = vmatpush2.msra.mxu0 0.0
    %3382 = vmatprep.subr.mxu0 0.0
    %3383 = vmatpush2.msra.mxu0 0.0
    %3384 = vmatprep.subr.mxu0 0.0
    %3385 = vmatpush2.msra.mxu0 0.0
    %3386 = vmatprep.mubr.f32.mxu0 0.0
    %3387 = vmatmul.mubr.f32.gmra.mxu0 %v3320
    %v3388 = vpop.f32.mrf.mxu0
    %v3389 = vadd.f32 0.0, %v3388
    %v3390 = vpop.f32.mrf.mxu0
    %3391 = vdwg.mxu0
    %vm3392 = vcmask 7168
    %3393 = vst.msk [vmem:[%s107] sm:$0xff] %vm3392, %v3315
    %v3395 = vsub.f32 %v3389, %v3202
    %v3396 = vmul.f32 %v3395, %v3395
    %v3397 = vsel %vm1018, %v3396, 0.0
    %3398 = vadd.xlane.f32.xlu0 %v3397
    %v3399 = vpop.xlane.xlu0 %3398
    %v3400 = vrot.slane %v3399, 4
    %v3401 = vadd.f32 %v3399, %v3400
    %v3402 = vrot.slane %v3401, 2
    %v3403 = vadd.f32 %v3401, %v3402
    %v3404 = vrot.slane %v3403, 1
    %v3405 = vadd.f32 %v3403, %v3404
    %v3406 = vrcp.pop 256.0
    %v3407 = vmul.f32 %v3405, %v3406
    %vm3408 = vcmask 0
    %3409 = vst.msk [vmem:[#allocation62] sm:$0x1] %vm3408, %v3407
    %v3411 = vcombine.high %v3389, %v3389
    %vm3413 = vcmask 257024
    %3414 = vst.msk [vmem:[#allocation63] sm:$0xf] %vm3413, %v3389
    %3415 = vst.msk [vmem:[#allocation63 + $0x4] sm:$0xf] %vm3413, %v3411
    %v3416 = vld [vmem:[#allocation29] sm:$0xff]
    %v3417 = vld [vmem:[#allocation29 + $0x8] sm:$0xff]
    %v3418 = vld [vmem:[#allocation29 + $0x10] sm:$0xff]
    %v3419 = vld [vmem:[#allocation29 + $0x18] sm:$0xff]
    %v3420 = vld [vmem:[#allocation29 + $0x20] sm:$0xff]
    %v3421 = vld [vmem:[#allocation29 + $0x28] sm:$0xff]
    %v3422 = vld [vmem:[#allocation29 + $0x30] sm:$0xff]
    %v3423 = vld [vmem:[#allocation29 + $0x38] sm:$0xff]
    %v3424 = vld [vmem:[#allocation29 + $0x40] sm:$0xff]
    %v3425 = vld [vmem:[#allocation29 + $0x48] sm:$0xff]
    %v3426 = vld [vmem:[#allocation29 + $0x50] sm:$0xff]
    %v3427 = vld [vmem:[#allocation29 + $0x58] sm:$0xff]
    %v3428 = vld [vmem:[#allocation31] sm:$0x1]
    %v3429 = vrot.slane %v3389, 7
    %v3430 = vrot.slane %v3411, 7
    %v3433 = vsel %vm717, 0.0, %v3429
    %v3434 = vsel %vm717, 0.0, %v3430
    %v3435 = vsel %vm995, %v3433, 0.0
    %v3436 = vsel %vm995, %v3434, 0.0
    %v3439 = vrot.slane %v3435, 1
    %v3440 = vrot.slane %v3436, 1
    %3441 = vrot.lane.b32.xlu0 %v3439, 32
    %v3442 = vpop.permute.xlu0 %3441
    %3443 = vrot.lane.b32.xlu0 %v3440, 32
    %v3444 = vpop.permute.xlu0 %3443
    %v3447 = vrot.slane %v3435, 2
    %v3448 = vrot.slane %v3436, 2
    %3449 = vrot.lane.b32.xlu0 %v3447, 64
    %v3450 = vpop.permute.xlu0 %3449
    %3451 = vrot.lane.b32.xlu0 %v3448, 64
    %v3452 = vpop.permute.xlu0 %3451
    %v3455 = vsel %vm1018, %v3435, %v3442
    %v3456 = vsel %vm1018, %v3436, %v3444
    %v3457 = vsel %vm1023, %v3455, %v3450
    %v3458 = vsel %vm1023, %v3456, %v3452
    %v3461 = vcombine.low %v3457, %v3458
    %v3462 = vsel %vm1028, %v3461, 0
    %3464 = vmatprep.subr.mxu0 0.0
    %3465 = vmatpush1.msra.mxu0 0.0
    %3466 = vmatprep.subr.mxu0 0.0
    %3467 = vmatpush1.msra.mxu0 0.0
    %3468 = vmatprep.subr.mxu0 0.0
    %3469 = vmatpush1.msra.mxu0 0.0
    %3470 = vmatprep.subr.mxu0 0.0
    %3471 = vmatpush1.msra.mxu0 0.0
    %3472 = vmatprep.subr.mxu0 0.0
    %3473 = vmatpush1.msra.mxu0 %v3427
    %3474 = vmatprep.subr.mxu0 0.0
    %3475 = vmatpush1.msra.mxu0 %v3426
    %3476 = vmatprep.subr.mxu0 0.0
    %3477 = vmatpush1.msra.mxu0 %v3425
    %3478 = vmatprep.subr.mxu0 0.0
    %3479 = vmatpush1.msra.mxu0 %v3424
    %3480 = vmatprep.subr.mxu0 0.0
    %3481 = vmatpush1.msra.mxu0 %v3423
    %3482 = vmatprep.subr.mxu0 0.0
    %3483 = vmatpush1.msra.mxu0 %v3422
    %3484 = vmatprep.subr.mxu0 0.0
    %3485 = vmatpush1.msra.mxu0 %v3421
    %3486 = vmatprep.subr.mxu0 0.0
    %3487 = vmatpush1.msra.mxu0 %v3420
    %3488 = vmatprep.subr.mxu0 0.0
    %3489 = vmatpush1.msra.mxu0 %v3419
    %3490 = vmatprep.subr.mxu0 0.0
    %3491 = vmatpush1.msra.mxu0 %v3418
    %3492 = vmatprep.subr.mxu0 0.0
    %3493 = vmatpush1.msra.mxu0 %v3417
    %3494 = vmatprep.subr.mxu0 0.0
    %3495 = vmatpush1.msra.mxu0 %v3416
    %3496 = vmatprep.subr.mxu0 0.0
    %3497 = vmatpush2.msra.mxu0 0.0
    %3498 = vmatprep.subr.mxu0 0.0
    %3499 = vmatpush2.msra.mxu0 0.0
    %3500 = vmatprep.subr.mxu0 0.0
    %3501 = vmatpush2.msra.mxu0 0.0
    %3502 = vmatprep.subr.mxu0 0.0
    %3503 = vmatpush2.msra.mxu0 0.0
    %3504 = vmatprep.subr.mxu0 0.0
    %3505 = vmatpush2.msra.mxu0 0.0
    %3506 = vmatprep.subr.mxu0 0.0
    %3507 = vmatpush2.msra.mxu0 0.0
    %3508 = vmatprep.subr.mxu0 0.0
    %3509 = vmatpush2.msra.mxu0 0.0
    %3510 = vmatprep.subr.mxu0 0.0
    %3511 = vmatpush2.msra.mxu0 0.0
    %3512 = vmatprep.subr.mxu0 0.0
    %3513 = vmatpush2.msra.mxu0 0.0
    %3514 = vmatprep.subr.mxu0 0.0
    %3515 = vmatpush2.msra.mxu0 0.0
    %3516 = vmatprep.subr.mxu0 0.0
    %3517 = vmatpush2.msra.mxu0 0.0
    %3518 = vmatprep.subr.mxu0 0.0
    %3519 = vmatpush2.msra.mxu0 0.0
    %3520 = vmatprep.subr.mxu0 0.0
    %3521 = vmatpush2.msra.mxu0 0.0
    %3522 = vmatprep.subr.mxu0 0.0
    %3523 = vmatpush2.msra.mxu0 0.0
    %3524 = vmatprep.subr.mxu0 0.0
    %3525 = vmatpush2.msra.mxu0 0.0
    %3526 = vmatprep.subr.mxu0 0.0
    %3527 = vmatpush2.msra.mxu0 0.0
    %3528 = vmatprep.mubr.f32.mxu0 0.0
    %3529 = vmatmul.mubr.f32.gmra.mxu0 %v3462
    %v3530 = vpop.f32.mrf.mxu0
    %v3531 = vadd.f32 0.0, %v3530
    %v3532 = vpop.f32.mrf.mxu0
    %3533 = vdwg.mxu0
    %v3535 = vcombine.high %v3531, %v3531
    %v3538 = vlaneseq
    %v3539 = vshrl.u32 %v3538, 7
    %v3540 = vsub.s32 0, %v3539
    %v3541 = vrot.slane %v3428, %v3540
    %v3543 = vadd.f32 %v3531, %v3541
    %v3544 = vadd.f32 %v3535, %v3541
    %v3545 = vmax.f32 %v3543, 0.0
    %v3546 = vmax.f32 %v3544, 0.0
    %v3547 = vld [vmem:[%s5] sm:$0xff]
    %v3548 = vld [vmem:[%s5 + $0x8] sm:$0xff]
    %v3549 = vld [vmem:[%s5 + $0x10] sm:$0xff]
    %v3550 = vld [vmem:[%s5 + $0x18] sm:$0xff]
    %v3551 = vld [vmem:[%s5 + $0x20] sm:$0xff]
    %v3552 = vld [vmem:[%s5 + $0x28] sm:$0xff]
    %v3553 = vld [vmem:[%s5 + $0x30] sm:$0xff]
    %v3554 = vld [vmem:[%s5 + $0x38] sm:$0xff]
    %v3555 = vld [vmem:[%s5 + $0x40] sm:$0xff]
    %v3556 = vld [vmem:[%s5 + $0x48] sm:$0xff]
    %v3557 = vld [vmem:[%s5 + $0x50] sm:$0xff]
    %v3558 = vld [vmem:[%s5 + $0x58] sm:$0xff]
    %v3559 = vld [vmem:[#allocation2] sm:$0x1]
    %v3560 = vmax.f32 %v3545, 0.0
    %v3561 = vmax.f32 %v3546, 0.0
    %v3564 = vrot.slane %v3560, 5
    %v3565 = vrot.slane %v3561, 5
    %v3568 = vsel %vm1347, 0.0, %v3564
    %v3569 = vsel %vm1347, 0.0, %v3565
    %v3570 = vsel %vm738, %v3568, 0.0
    %v3571 = vsel %vm738, %v3569, 0.0
    %v3574 = vrot.slane %v3570, 3
    %v3575 = vrot.slane %v3571, 3
    %3576 = vrot.lane.b32.xlu0 %v3574, 32
    %v3577 = vpop.permute.xlu0 %3576
    %3578 = vrot.lane.b32.xlu0 %v3575, 32
    %v3579 = vpop.permute.xlu0 %3578
    %v3582 = vrot.slane %v3570, 6
    %v3583 = vsel %vm1368, %v3582, %v2444
    %v3584 = vrot.slane %v3571, 6
    %v3585 = vsel %vm1368, %v3584, %v2444
    %3586 = vrot.lane.b32.xlu0 %v3583, 64
    %v3587 = vpop.permute.xlu0 %3586
    %3588 = vrot.lane.b32.xlu0 %v3585, 64
    %v3589 = vpop.permute.xlu0 %3588
    %v3592 = vsel %vm1018, %v3570, %v3577
    %v3593 = vsel %vm1018, %v3571, %v3579
    %v3594 = vsel %vm1023, %v3592, %v3587
    %v3595 = vsel %vm1023, %v3593, %v3589
    %v3598 = vcombine.low %v3594, %v3595
    %v3599 = vsel %vm1028, %v3598, 0
    %3601 = vmatprep.subr.mxu0 0.0
    %3602 = vmatpush1.msra.mxu0 0.0
    %3603 = vmatprep.subr.mxu0 0.0
    %3604 = vmatpush1.msra.mxu0 0.0
    %3605 = vmatprep.subr.mxu0 0.0
    %3606 = vmatpush1.msra.mxu0 0.0
    %3607 = vmatprep.subr.mxu0 0.0
    %3608 = vmatpush1.msra.mxu0 0.0
    %3609 = vmatprep.subr.mxu0 0.0
    %3610 = vmatpush1.msra.mxu0 %v3558
    %3611 = vmatprep.subr.mxu0 0.0
    %3612 = vmatpush1.msra.mxu0 %v3557
    %3613 = vmatprep.subr.mxu0 0.0
    %3614 = vmatpush1.msra.mxu0 %v3556
    %3615 = vmatprep.subr.mxu0 0.0
    %3616 = vmatpush1.msra.mxu0 %v3555
    %3617 = vmatprep.subr.mxu0 0.0
    %3618 = vmatpush1.msra.mxu0 %v3554
    %3619 = vmatprep.subr.mxu0 0.0
    %3620 = vmatpush1.msra.mxu0 %v3553
    %3621 = vmatprep.subr.mxu0 0.0
    %3622 = vmatpush1.msra.mxu0 %v3552
    %3623 = vmatprep.subr.mxu0 0.0
    %3624 = vmatpush1.msra.mxu0 %v3551
    %3625 = vmatprep.subr.mxu0 0.0
    %3626 = vmatpush1.msra.mxu0 %v3550
    %3627 = vmatprep.subr.mxu0 0.0
    %3628 = vmatpush1.msra.mxu0 %v3549
    %3629 = vmatprep.subr.mxu0 0.0
    %3630 = vmatpush1.msra.mxu0 %v3548
    %3631 = vmatprep.subr.mxu0 0.0
    %3632 = vmatpush1.msra.mxu0 %v3547
    %3633 = vmatprep.subr.mxu0 0.0
    %3634 = vmatpush2.msra.mxu0 0.0
    %3635 = vmatprep.subr.mxu0 0.0
    %3636 = vmatpush2.msra.mxu0 0.0
    %3637 = vmatprep.subr.mxu0 0.0
    %3638 = vmatpush2.msra.mxu0 0.0
    %3639 = vmatprep.subr.mxu0 0.0
    %3640 = vmatpush2.msra.mxu0 0.0
    %3641 = vmatprep.subr.mxu0 0.0
    %3642 = vmatpush2.msra.mxu0 0.0
    %3643 = vmatprep.subr.mxu0 0.0
    %3644 = vmatpush2.msra.mxu0 0.0
    %3645 = vmatprep.subr.mxu0 0.0
    %3646 = vmatpush2.msra.mxu0 0.0
    %3647 = vmatprep.subr.mxu0 0.0
    %3648 = vmatpush2.msra.mxu0 0.0
    %3649 = vmatprep.subr.mxu0 0.0
    %3650 = vmatpush2.msra.mxu0 0.0
    %3651 = vmatprep.subr.mxu0 0.0
    %3652 = vmatpush2.msra.mxu0 0.0
    %3653 = vmatprep.subr.mxu0 0.0
    %3654 = vmatpush2.msra.mxu0 0.0
    %3655 = vmatprep.subr.mxu0 0.0
    %3656 = vmatpush2.msra.mxu0 0.0
    %3657 = vmatprep.subr.mxu0 0.0
    %3658 = vmatpush2.msra.mxu0 0.0
    %3659 = vmatprep.subr.mxu0 0.0
    %3660 = vmatpush2.msra.mxu0 0.0
    %3661 = vmatprep.subr.mxu0 0.0
    %3662 = vmatpush2.msra.mxu0 0.0
    %3663 = vmatprep.subr.mxu0 0.0
    %3664 = vmatpush2.msra.mxu0 0.0
    %3665 = vmatprep.mubr.f32.mxu0 0.0
    %3666 = vmatmul.mubr.f32.gmra.mxu0 %v3599
    %v3667 = vpop.f32.mrf.mxu0
    %v3668 = vadd.f32 0.0, %v3667
    %v3669 = vpop.f32.mrf.mxu0
    %3670 = vdwg.mxu0
    %v3672 = vcombine.high %v3668, %v3668
    %v3675 = vlaneseq
    %v3676 = vshrl.u32 %v3675, 7
    %v3677 = vsub.s32 0, %v3676
    %v3678 = vrot.slane %v3559, %v3677
    %v3680 = vadd.f32 %v3668, %v3678
    %v3681 = vadd.f32 %v3672, %v3678
    %v3682 = vld [vmem:[#allocation5] sm:$0xff]
    %v3683 = vld [vmem:[#allocation5 + $0x8] sm:$0xff]
    %v3684 = vld [vmem:[#allocation5 + $0x10] sm:$0xff]
    %v3685 = vld [vmem:[#allocation5 + $0x18] sm:$0xff]
    %v3686 = vld [vmem:[#allocation7] sm:$0x1]
    %v3687 = vmax.f32 %v3680, 0.0
    %v3688 = vmax.f32 %v3681, 0.0
    %v3691 = vcombine.low %v3687, %v3688
    %v3692 = vsel %vm1018, %v3691, 0
    %3694 = vmatprep.subr.mxu0 0.0
    %3695 = vmatpush1.msra.mxu0 0.0
    %3696 = vmatprep.subr.mxu0 0.0
    %3697 = vmatpush1.msra.mxu0 0.0
    %3698 = vmatprep.subr.mxu0 0.0
    %3699 = vmatpush1.msra.mxu0 0.0
    %3700 = vmatprep.subr.mxu0 0.0
    %3701 = vmatpush1.msra.mxu0 0.0
    %3702 = vmatprep.subr.mxu0 0.0
    %3703 = vmatpush1.msra.mxu0 0.0
    %3704 = vmatprep.subr.mxu0 0.0
    %3705 = vmatpush1.msra.mxu0 0.0
    %3706 = vmatprep.subr.mxu0 0.0
    %3707 = vmatpush1.msra.mxu0 0.0
    %3708 = vmatprep.subr.mxu0 0.0
    %3709 = vmatpush1.msra.mxu0 0.0
    %3710 = vmatprep.subr.mxu0 0.0
    %3711 = vmatpush1.msra.mxu0 0.0
    %3712 = vmatprep.subr.mxu0 0.0
    %3713 = vmatpush1.msra.mxu0 0.0
    %3714 = vmatprep.subr.mxu0 0.0
    %3715 = vmatpush1.msra.mxu0 0.0
    %3716 = vmatprep.subr.mxu0 0.0
    %3717 = vmatpush1.msra.mxu0 0.0
    %3718 = vmatprep.subr.mxu0 0.0
    %3719 = vmatpush1.msra.mxu0 %v3685
    %3720 = vmatprep.subr.mxu0 0.0
    %3721 = vmatpush1.msra.mxu0 %v3684
    %3722 = vmatprep.subr.mxu0 0.0
    %3723 = vmatpush1.msra.mxu0 %v3683
    %3724 = vmatprep.subr.mxu0 0.0
    %3725 = vmatpush1.msra.mxu0 %v3682
    %3726 = vmatprep.subr.mxu0 0.0
    %3727 = vmatpush2.msra.mxu0 0.0
    %3728 = vmatprep.subr.mxu0 0.0
    %3729 = vmatpush2.msra.mxu0 0.0
    %3730 = vmatprep.subr.mxu0 0.0
    %3731 = vmatpush2.msra.mxu0 0.0
    %3732 = vmatprep.subr.mxu0 0.0
    %3733 = vmatpush2.msra.mxu0 0.0
    %3734 = vmatprep.subr.mxu0 0.0
    %3735 = vmatpush2.msra.mxu0 0.0
    %3736 = vmatprep.subr.mxu0 0.0
    %3737 = vmatpush2.msra.mxu0 0.0
    %3738 = vmatprep.subr.mxu0 0.0
    %3739 = vmatpush2.msra.mxu0 0.0
    %3740 = vmatprep.subr.mxu0 0.0
    %3741 = vmatpush2.msra.mxu0 0.0
    %3742 = vmatprep.subr.mxu0 0.0
    %3743 = vmatpush2.msra.mxu0 0.0
    %3744 = vmatprep.subr.mxu0 0.0
    %3745 = vmatpush2.msra.mxu0 0.0
    %3746 = vmatprep.subr.mxu0 0.0
    %3747 = vmatpush2.msra.mxu0 0.0
    %3748 = vmatprep.subr.mxu0 0.0
    %3749 = vmatpush2.msra.mxu0 0.0
    %3750 = vmatprep.subr.mxu0 0.0
    %3751 = vmatpush2.msra.mxu0 0.0
    %3752 = vmatprep.subr.mxu0 0.0
    %3753 = vmatpush2.msra.mxu0 0.0
    %3754 = vmatprep.subr.mxu0 0.0
    %3755 = vmatpush2.msra.mxu0 0.0
    %3756 = vmatprep.subr.mxu0 0.0
    %3757 = vmatpush2.msra.mxu0 0.0
    %3758 = vmatprep.mubr.f32.mxu0 0.0
    %3759 = vmatmul.mubr.f32.gmra.mxu0 %v3692
    %v3760 = vpop.f32.mrf.mxu0
    %v3761 = vadd.f32 0.0, %v3760
    %v3762 = vpop.f32.mrf.mxu0
    %3763 = vdwg.mxu0
    %v3765 = vcombine.high %v3761, %v3761
    %v3768 = vlaneseq
    %v3769 = vshrl.u32 %v3768, 7
    %v3770 = vsub.s32 0, %v3769
    %v3771 = vrot.slane %v3686, %v3770
    %v3773 = vadd.f32 %v3761, %v3771
    %v3774 = vadd.f32 %v3765, %v3771
    %v3775 = vadd.f32 %v3545, %v3773
    %v3776 = vadd.f32 %v3546, %v3774
    %v3777 = vld [vmem:[%s13] sm:$0xff]
    %v3778 = vld [vmem:[%s13 + $0x8] sm:$0xff]
    %v3779 = vld [vmem:[%s13 + $0x10] sm:$0xff]
    %v3780 = vld [vmem:[%s13 + $0x18] sm:$0xff]
    %v3781 = vld [vmem:[%s13 + $0x20] sm:$0xff]
    %v3782 = vld [vmem:[%s13 + $0x28] sm:$0xff]
    %v3783 = vld [vmem:[%s13 + $0x30] sm:$0xff]
    %v3784 = vld [vmem:[%s13 + $0x38] sm:$0xff]
    %v3785 = vld [vmem:[%s13 + $0x40] sm:$0xff]
    %v3786 = vld [vmem:[%s13 + $0x48] sm:$0xff]
    %v3787 = vld [vmem:[%s13 + $0x50] sm:$0xff]
    %v3788 = vld [vmem:[%s13 + $0x58] sm:$0xff]
    %v3789 = vld [vmem:[#allocation8] sm:$0x1]
    %v3790 = vmax.f32 %v3775, 0.0
    %v3791 = vmax.f32 %v3776, 0.0
    %v3794 = vrot.slane %v3790, 7
    %v3795 = vrot.slane %v3791, 7
    %v3798 = vsel %vm717, 0.0, %v3794
    %v3799 = vsel %vm717, 0.0, %v3795
    %v3800 = vsel %vm995, %v3798, 0.0
    %v3801 = vsel %vm995, %v3799, 0.0
    %v3804 = vrot.slane %v3800, 1
    %v3805 = vrot.slane %v3801, 1
    %3806 = vrot.lane.b32.xlu0 %v3804, 32
    %v3807 = vpop.permute.xlu0 %3806
    %3808 = vrot.lane.b32.xlu0 %v3805, 32
    %v3809 = vpop.permute.xlu0 %3808
    %v3812 = vrot.slane %v3800, 2
    %v3813 = vrot.slane %v3801, 2
    %3814 = vrot.lane.b32.xlu0 %v3812, 64
    %v3815 = vpop.permute.xlu0 %3814
    %3816 = vrot.lane.b32.xlu0 %v3813, 64
    %v3817 = vpop.permute.xlu0 %3816
    %v3820 = vsel %vm1018, %v3800, %v3807
    %v3821 = vsel %vm1018, %v3801, %v3809
    %v3822 = vsel %vm1023, %v3820, %v3815
    %v3823 = vsel %vm1023, %v3821, %v3817
    %v3826 = vcombine.low %v3822, %v3823
    %v3827 = vsel %vm1028, %v3826, 0
    %3829 = vmatprep.subr.mxu0 0.0
    %3830 = vmatpush1.msra.mxu0 0.0
    %3831 = vmatprep.subr.mxu0 0.0
    %3832 = vmatpush1.msra.mxu0 0.0
    %3833 = vmatprep.subr.mxu0 0.0
    %3834 = vmatpush1.msra.mxu0 0.0
    %3835 = vmatprep.subr.mxu0 0.0
    %3836 = vmatpush1.msra.mxu0 0.0
    %3837 = vmatprep.subr.mxu0 0.0
    %3838 = vmatpush1.msra.mxu0 %v3788
    %3839 = vmatprep.subr.mxu0 0.0
    %3840 = vmatpush1.msra.mxu0 %v3787
    %3841 = vmatprep.subr.mxu0 0.0
    %3842 = vmatpush1.msra.mxu0 %v3786
    %3843 = vmatprep.subr.mxu0 0.0
    %3844 = vmatpush1.msra.mxu0 %v3785
    %3845 = vmatprep.subr.mxu0 0.0
    %3846 = vmatpush1.msra.mxu0 %v3784
    %3847 = vmatprep.subr.mxu0 0.0
    %3848 = vmatpush1.msra.mxu0 %v3783
    %3849 = vmatprep.subr.mxu0 0.0
    %3850 = vmatpush1.msra.mxu0 %v3782
    %3851 = vmatprep.subr.mxu0 0.0
    %3852 = vmatpush1.msra.mxu0 %v3781
    %3853 = vmatprep.subr.mxu0 0.0
    %3854 = vmatpush1.msra.mxu0 %v3780
    %3855 = vmatprep.subr.mxu0 0.0
    %3856 = vmatpush1.msra.mxu0 %v3779
    %3857 = vmatprep.subr.mxu0 0.0
    %3858 = vmatpush1.msra.mxu0 %v3778
    %3859 = vmatprep.subr.mxu0 0.0
    %3860 = vmatpush1.msra.mxu0 %v3777
    %3861 = vmatprep.subr.mxu0 0.0
    %3862 = vmatpush2.msra.mxu0 0.0
    %3863 = vmatprep.subr.mxu0 0.0
    %3864 = vmatpush2.msra.mxu0 0.0
    %3865 = vmatprep.subr.mxu0 0.0
    %3866 = vmatpush2.msra.mxu0 0.0
    %3867 = vmatprep.subr.mxu0 0.0
    %3868 = vmatpush2.msra.mxu0 0.0
    %3869 = vmatprep.subr.mxu0 0.0
    %3870 = vmatpush2.msra.mxu0 0.0
    %3871 = vmatprep.subr.mxu0 0.0
    %3872 = vmatpush2.msra.mxu0 0.0
    %3873 = vmatprep.subr.mxu0 0.0
    %3874 = vmatpush2.msra.mxu0 0.0
    %3875 = vmatprep.subr.mxu0 0.0
    %3876 = vmatpush2.msra.mxu0 0.0
    %3877 = vmatprep.subr.mxu0 0.0
    %3878 = vmatpush2.msra.mxu0 0.0
    %3879 = vmatprep.subr.mxu0 0.0
    %3880 = vmatpush2.msra.mxu0 0.0
    %3881 = vmatprep.subr.mxu0 0.0
    %3882 = vmatpush2.msra.mxu0 0.0
    %3883 = vmatprep.subr.mxu0 0.0
    %3884 = vmatpush2.msra.mxu0 0.0
    %3885 = vmatprep.subr.mxu0 0.0
    %3886 = vmatpush2.msra.mxu0 0.0
    %3887 = vmatprep.subr.mxu0 0.0
    %3888 = vmatpush2.msra.mxu0 0.0
    %3889 = vmatprep.subr.mxu0 0.0
    %3890 = vmatpush2.msra.mxu0 0.0
    %3891 = vmatprep.subr.mxu0 0.0
    %3892 = vmatpush2.msra.mxu0 0.0
    %3893 = vmatprep.mubr.f32.mxu0 0.0
    %3894 = vmatmul.mubr.f32.gmra.mxu0 %v3827
    %v3895 = vpop.f32.mrf.mxu0
    %v3896 = vadd.f32 0.0, %v3895
    %v3897 = vpop.f32.mrf.mxu0
    %3898 = vdwg.mxu0
    %v3900 = vcombine.high %v3896, %v3896
    %v3903 = vlaneseq
    %v3904 = vshrl.u32 %v3903, 7
    %v3905 = vsub.s32 0, %v3904
    %v3906 = vrot.slane %v3789, %v3905
    %v3908 = vadd.f32 %v3896, %v3906
    %v3909 = vadd.f32 %v3900, %v3906
    %v3910 = vld [vmem:[#allocation10] sm:$0xff]
    %v3911 = vld [vmem:[#allocation10 + $0x8] sm:$0xff]
    %v3912 = vld [vmem:[#allocation10 + $0x10] sm:$0xff]
    %v3913 = vld [vmem:[#allocation10 + $0x18] sm:$0xff]
    %v3914 = vld [vmem:[#allocation11] sm:$0x1]
    %v3915 = vmax.f32 %v3908, 0.0
    %v3916 = vmax.f32 %v3909, 0.0
    %v3919 = vcombine.low %v3915, %v3916
    %v3920 = vsel %vm1018, %v3919, 0
    %3922 = vmatprep.subr.mxu0 0.0
    %3923 = vmatpush1.msra.mxu0 0.0
    %3924 = vmatprep.subr.mxu0 0.0
    %3925 = vmatpush1.msra.mxu0 0.0
    %3926 = vmatprep.subr.mxu0 0.0
    %3927 = vmatpush1.msra.mxu0 0.0
    %3928 = vmatprep.subr.mxu0 0.0
    %3929 = vmatpush1.msra.mxu0 0.0
    %3930 = vmatprep.subr.mxu0 0.0
    %3931 = vmatpush1.msra.mxu0 0.0
    %3932 = vmatprep.subr.mxu0 0.0
    %3933 = vmatpush1.msra.mxu0 0.0
    %3934 = vmatprep.subr.mxu0 0.0
    %3935 = vmatpush1.msra.mxu0 0.0
    %3936 = vmatprep.subr.mxu0 0.0
    %3937 = vmatpush1.msra.mxu0 0.0
    %3938 = vmatprep.subr.mxu0 0.0
    %3939 = vmatpush1.msra.mxu0 0.0
    %3940 = vmatprep.subr.mxu0 0.0
    %3941 = vmatpush1.msra.mxu0 0.0
    %3942 = vmatprep.subr.mxu0 0.0
    %3943 = vmatpush1.msra.mxu0 0.0
    %3944 = vmatprep.subr.mxu0 0.0
    %3945 = vmatpush1.msra.mxu0 0.0
    %3946 = vmatprep.subr.mxu0 0.0
    %3947 = vmatpush1.msra.mxu0 %v3913
    %3948 = vmatprep.subr.mxu0 0.0
    %3949 = vmatpush1.msra.mxu0 %v3912
    %3950 = vmatprep.subr.mxu0 0.0
    %3951 = vmatpush1.msra.mxu0 %v3911
    %3952 = vmatprep.subr.mxu0 0.0
    %3953 = vmatpush1.msra.mxu0 %v3910
    %3954 = vmatprep.subr.mxu0 0.0
    %3955 = vmatpush2.msra.mxu0 0.0
    %3956 = vmatprep.subr.mxu0 0.0
    %3957 = vmatpush2.msra.mxu0 0.0
    %3958 = vmatprep.subr.mxu0 0.0
    %3959 = vmatpush2.msra.mxu0 0.0
    %3960 = vmatprep.subr.mxu0 0.0
    %3961 = vmatpush2.msra.mxu0 0.0
    %3962 = vmatprep.subr.mxu0 0.0
    %3963 = vmatpush2.msra.mxu0 0.0
    %3964 = vmatprep.subr.mxu0 0.0
    %3965 = vmatpush2.msra.mxu0 0.0
    %3966 = vmatprep.subr.mxu0 0.0
    %3967 = vmatpush2.msra.mxu0 0.0
    %3968 = vmatprep.subr.mxu0 0.0
    %3969 = vmatpush2.msra.mxu0 0.0
    %3970 = vmatprep.subr.mxu0 0.0
    %3971 = vmatpush2.msra.mxu0 0.0
    %3972 = vmatprep.subr.mxu0 0.0
    %3973 = vmatpush2.msra.mxu0 0.0
    %3974 = vmatprep.subr.mxu0 0.0
    %3975 = vmatpush2.msra.mxu0 0.0
    %3976 = vmatprep.subr.mxu0 0.0
    %3977 = vmatpush2.msra.mxu0 0.0
    %3978 = vmatprep.subr.mxu0 0.0
    %3979 = vmatpush2.msra.mxu0 0.0
    %3980 = vmatprep.subr.mxu0 0.0
    %3981 = vmatpush2.msra.mxu0 0.0
    %3982 = vmatprep.subr.mxu0 0.0
    %3983 = vmatpush2.msra.mxu0 0.0
    %3984 = vmatprep.subr.mxu0 0.0
    %3985 = vmatpush2.msra.mxu0 0.0
    %3986 = vmatprep.mubr.f32.mxu0 0.0
    %3987 = vmatmul.mubr.f32.gmra.mxu0 %v3920
    %v3988 = vpop.f32.mrf.mxu0
    %v3989 = vadd.f32 0.0, %v3988
    %v3990 = vpop.f32.mrf.mxu0
    %3991 = vdwg.mxu0
    %v3993 = vcombine.high %v3989, %v3989
    %v3996 = vlaneseq
    %v3997 = vshrl.u32 %v3996, 7
    %v3998 = vsub.s32 0, %v3997
    %v3999 = vrot.slane %v3914, %v3998
    %v4001 = vadd.f32 %v3989, %v3999
    %v4002 = vadd.f32 %v3993, %v3999
    %v4003 = vadd.f32 %v3775, %v4001
    %v4004 = vadd.f32 %v3776, %v4002
    %v4008 = vunpack.c.l.s4 1966171168
    %v4009 = vunpack.c.0.s8 %v4008
    %v4010 = vlaneseq
    %v4011 = vshrl.u32 %v4010, 7
    %v4012 = vsub.s32 %v4009, %v4011
    %v4013 = vrot.slane %v4003, %v4012
    %v4014 = vcombine.high %v4013, %v4013
    %v4016 = vunpack.c.l.s4 1966171168
    %v4017 = vunpack.c.0.s8 %v4016
    %v4018 = vlaneseq
    %v4019 = vshrl.u32 %v4018, 7
    %v4020 = vsub.s32 %v4017, %v4019
    %v4021 = vrot.slane %v4013, %v4020
    %v4023 = vunpack.c.l.s4 1966171168
    %v4024 = vunpack.c.0.s8 %v4023
    %v4025 = vlaneseq
    %v4026 = vshrl.u32 %v4025, 7
    %v4027 = vsub.s32 %v4024, %v4026
    %v4028 = vrot.slane %v4014, %v4027
    %v4029 = vcombine.high %v4021, %v4021
    %v4030 = vcombine.high %v4028, %v4028
    %v4032 = vunpack.c.l.s4 1966171168
    %v4033 = vunpack.c.0.s8 %v4032
    %v4034 = vlaneseq
    %v4035 = vshrl.u32 %v4034, 7
    %v4036 = vsub.s32 %v4033, %v4035
    %v4037 = vrot.slane %v4004, %v4036
    %v4038 = vcombine.high %v4037, %v4037
    %v4040 = vunpack.c.l.s4 1966171168
    %v4041 = vunpack.c.0.s8 %v4040
    %v4042 = vlaneseq
    %v4043 = vshrl.u32 %v4042, 7
    %v4044 = vsub.s32 %v4041, %v4043
    %v4045 = vrot.slane %v4037, %v4044
    %v4047 = vunpack.c.l.s4 1966171168
    %v4048 = vunpack.c.0.s8 %v4047
    %v4049 = vlaneseq
    %v4050 = vshrl.u32 %v4049, 7
    %v4051 = vsub.s32 %v4048, %v4050
    %v4052 = vrot.slane %v4038, %v4051
    %v4053 = vcombine.high %v4045, %v4045
    %v4054 = vcombine.high %v4052, %v4052
    %v4063 = vlaneseq
    %v4064 = vshrl.u32 %v4063, 7
    %v4065 = vsub.s32 0, %v4064
    %v4066 = vrot.slane %v4021, %v4065
    %v4067 = vlaneseq
    %v4068 = vshrl.u32 %v4067, 7
    %v4069 = vsub.s32 0, %v4068
    %v4070 = vrot.slane %v4028, %v4069
    %v4071 = vlaneseq
    %v4072 = vshrl.u32 %v4071, 7
    %v4073 = vsub.s32 0, %v4072
    %v4074 = vrot.slane %v4029, %v4073
    %v4075 = vlaneseq
    %v4076 = vshrl.u32 %v4075, 7
    %v4077 = vsub.s32 0, %v4076
    %v4078 = vrot.slane %v4030, %v4077
    %v4079 = vlaneseq
    %v4080 = vshrl.u32 %v4079, 7
    %v4081 = vsub.s32 0, %v4080
    %v4082 = vrot.slane %v4045, %v4081
    %v4083 = vlaneseq
    %v4084 = vshrl.u32 %v4083, 7
    %v4085 = vsub.s32 0, %v4084
    %v4086 = vrot.slane %v4052, %v4085
    %v4087 = vlaneseq
    %v4088 = vshrl.u32 %v4087, 7
    %v4089 = vsub.s32 0, %v4088
    %v4090 = vrot.slane %v4053, %v4089
    %v4091 = vlaneseq
    %v4092 = vshrl.u32 %v4091, 7
    %v4093 = vsub.s32 0, %v4092
    %v4094 = vrot.slane %v4054, %v4093
    %v4103 = vsel %vm717, %v4021, %v4066
    %v4104 = vsel %vm717, %v4028, %v4070
    %v4105 = vsel %vm717, %v4029, %v4074
    %v4106 = vsel %vm717, %v4030, %v4078
    %v4107 = vsel %vm717, %v4045, %v4082
    %v4108 = vsel %vm717, %v4052, %v4086
    %v4109 = vsel %vm717, %v4053, %v4090
    %v4110 = vsel %vm717, %v4054, %v4094
    %v4111 = vld [vmem:[%s21] sm:$0xff]
    %v4112 = vld [vmem:[%s21 + $0x8] sm:$0xff]
    %v4113 = vld [vmem:[%s21 + $0x10] sm:$0xff]
    %v4114 = vld [vmem:[%s21 + $0x18] sm:$0xff]
    %v4115 = vld [vmem:[%s21 + $0x20] sm:$0xff]
    %v4116 = vld [vmem:[%s21 + $0x28] sm:$0xff]
    %v4117 = vld [vmem:[%s21 + $0x30] sm:$0xff]
    %v4118 = vld [vmem:[%s21 + $0x38] sm:$0xff]
    %v4119 = vld [vmem:[%s21 + $0x40] sm:$0xff]
    %v4120 = vld [vmem:[%s21 + $0x48] sm:$0xff]
    %v4121 = vld [vmem:[%s21 + $0x50] sm:$0xff]
    %v4122 = vld [vmem:[%s21 + $0x58] sm:$0xff]
    %v4123 = vld [vmem:[#allocation13] sm:$0x1]
    %v4132 = vcombine.low %v4103, %v4104
    %v4133 = vcombine.low %v4105, %v4106
    %v4135 = vunpack.c.l.s4 1983009808
    %v4136 = vunpack.c.0.s8 %v4135
    %v4137 = vlaneseq
    %v4138 = vshrl.u32 %v4137, 7
    %v4139 = vsub.s32 %v4136, %v4138
    %v4140 = vrot.slane %v4132, %v4139
    %v4142 = vunpack.c.l.s4 1983009808
    %v4143 = vunpack.c.0.s8 %v4142
    %v4144 = vlaneseq
    %v4145 = vshrl.u32 %v4144, 7
    %v4146 = vsub.s32 %v4143, %v4145
    %v4147 = vrot.slane %v4133, %v4146
    %v4148 = vcombine.low %v4140, %v4147
    %v4149 = vcombine.low %v4107, %v4108
    %v4150 = vcombine.low %v4109, %v4110
    %v4152 = vunpack.c.l.s4 1983009808
    %v4153 = vunpack.c.0.s8 %v4152
    %v4154 = vlaneseq
    %v4155 = vshrl.u32 %v4154, 7
    %v4156 = vsub.s32 %v4153, %v4155
    %v4157 = vrot.slane %v4149, %v4156
    %v4159 = vunpack.c.l.s4 1983009808
    %v4160 = vunpack.c.0.s8 %v4159
    %v4161 = vlaneseq
    %v4162 = vshrl.u32 %v4161, 7
    %v4163 = vsub.s32 %v4160, %v4162
    %v4164 = vrot.slane %v4150, %v4163
    %v4165 = vcombine.low %v4157, %v4164
    %v4166 = vrot.slane %v4148, 7
    %v4167 = vrot.slane %v4165, 7
    %v4170 = vsel %vm717, 0.0, %v4166
    %v4171 = vsel %vm717, 0.0, %v4167
    %v4172 = vsel %vm717, %v4166, 0.0
    %v4173 = vsel %vm717, %v4167, 0.0
    %v4178 = vrot.slane %v4170, 1
    %v4179 = vrot.slane %v4172, 1
    %v4180 = vsel %vm738, %v4178, %v4179
    %v4181 = vrot.slane %v4171, 1
    %v4182 = vrot.slane %v4173, 1
    %v4183 = vsel %vm738, %v4181, %v4182
    %4184 = vrot.lane.b32.xlu0 %v4180, 32
    %v4185 = vpop.permute.xlu0 %4184
    %4186 = vrot.lane.b32.xlu0 %v4183, 32
    %v4187 = vpop.permute.xlu0 %4186
    %v4190 = vrot.slane %v4170, 2
    %v4191 = vrot.slane %v4172, 2
    %v4192 = vsel %vm761, %v4190, %v4191
    %v4193 = vrot.slane %v4171, 2
    %v4194 = vrot.slane %v4173, 2
    %v4195 = vsel %vm761, %v4193, %v4194
    %4196 = vrot.lane.b32.xlu0 %v4192, 64
    %v4197 = vpop.permute.xlu0 %4196
    %4198 = vrot.lane.b32.xlu0 %v4195, 64
    %v4199 = vpop.permute.xlu0 %4198
    %v4202 = vsel %vm1018, %v4170, %v4185
    %v4203 = vsel %vm1018, %v4171, %v4187
    %v4204 = vsel %vm1023, %v4202, %v4197
    %v4205 = vsel %vm1023, %v4203, %v4199
    %v4207 = vsel %vm1028, %v4204, 0
    %v4210 = vsel %vm1028, %v4205, 0
    %4212 = vmatprep.subr.mxu0 0.0
    %4213 = vmatpush1.msra.mxu0 0.0
    %4214 = vmatprep.subr.mxu0 0.0
    %4215 = vmatpush1.msra.mxu0 0.0
    %4216 = vmatprep.subr.mxu0 0.0
    %4217 = vmatpush1.msra.mxu0 0.0
    %4218 = vmatprep.subr.mxu0 0.0
    %4219 = vmatpush1.msra.mxu0 0.0
    %4220 = vmatprep.subr.mxu0 0.0
    %4221 = vmatpush1.msra.mxu0 %v4122
    %4222 = vmatprep.subr.mxu0 0.0
    %4223 = vmatpush1.msra.mxu0 %v4121
    %4224 = vmatprep.subr.mxu0 0.0
    %4225 = vmatpush1.msra.mxu0 %v4120
    %4226 = vmatprep.subr.mxu0 0.0
    %4227 = vmatpush1.msra.mxu0 %v4119
    %4228 = vmatprep.subr.mxu0 0.0
    %4229 = vmatpush1.msra.mxu0 %v4118
    %4230 = vmatprep.subr.mxu0 0.0
    %4231 = vmatpush1.msra.mxu0 %v4117
    %4232 = vmatprep.subr.mxu0 0.0
    %4233 = vmatpush1.msra.mxu0 %v4116
    %4234 = vmatprep.subr.mxu0 0.0
    %4235 = vmatpush1.msra.mxu0 %v4115
    %4236 = vmatprep.subr.mxu0 0.0
    %4237 = vmatpush1.msra.mxu0 %v4114
    %4238 = vmatprep.subr.mxu0 0.0
    %4239 = vmatpush1.msra.mxu0 %v4113
    %4240 = vmatprep.subr.mxu0 0.0
    %4241 = vmatpush1.msra.mxu0 %v4112
    %4242 = vmatprep.subr.mxu0 0.0
    %4243 = vmatpush1.msra.mxu0 %v4111
    %4244 = vmatprep.subr.mxu0 0.0
    %4245 = vmatpush2.msra.mxu0 0.0
    %4246 = vmatprep.subr.mxu0 0.0
    %4247 = vmatpush2.msra.mxu0 0.0
    %4248 = vmatprep.subr.mxu0 0.0
    %4249 = vmatpush2.msra.mxu0 0.0
    %4250 = vmatprep.subr.mxu0 0.0
    %4251 = vmatpush2.msra.mxu0 0.0
    %4252 = vmatprep.subr.mxu0 0.0
    %4253 = vmatpush2.msra.mxu0 0.0
    %4254 = vmatprep.subr.mxu0 0.0
    %4255 = vmatpush2.msra.mxu0 0.0
    %4256 = vmatprep.subr.mxu0 0.0
    %4257 = vmatpush2.msra.mxu0 0.0
    %4258 = vmatprep.subr.mxu0 0.0
    %4259 = vmatpush2.msra.mxu0 0.0
    %4260 = vmatprep.subr.mxu0 0.0
    %4261 = vmatpush2.msra.mxu0 0.0
    %4262 = vmatprep.subr.mxu0 0.0
    %4263 = vmatpush2.msra.mxu0 0.0
    %4264 = vmatprep.subr.mxu0 0.0
    %4265 = vmatpush2.msra.mxu0 0.0
    %4266 = vmatprep.subr.mxu0 0.0
    %4267 = vmatpush2.msra.mxu0 0.0
    %4268 = vmatprep.subr.mxu0 0.0
    %4269 = vmatpush2.msra.mxu0 0.0
    %4270 = vmatprep.subr.mxu0 0.0
    %4271 = vmatpush2.msra.mxu0 0.0
    %4272 = vmatprep.subr.mxu0 0.0
    %4273 = vmatpush2.msra.mxu0 0.0
    %4274 = vmatprep.subr.mxu0 0.0
    %4275 = vmatpush2.msra.mxu0 0.0
    %4276 = vmatprep.mubr.f32.mxu0 0.0
    %4277 = vmatmul.mubr.f32.gmra.mxu0 %v4207
    %v4278 = vpop.f32.mrf.mxu0
    %v4279 = vadd.f32 0.0, %v4278
    %v4280 = vpop.f32.mrf.mxu0
    %4281 = vmatprep.mubr.f32.mxu0 0.0
    %4282 = vmatmul.mubr.f32.gmra.mxu0 %v4210
    %v4283 = vpop.f32.mrf.mxu0
    %v4284 = vadd.f32 0.0, %v4283
    %v4285 = vpop.f32.mrf.mxu0
    %4286 = vdwg.mxu0
    %v4288 = vlaneseq
    %v4289 = vshrl.u32 %v4288, 7
    %v4290 = vsub.s32 0, %v4289
    %v4291 = vrot.slane %v4123, %v4290
    %v4293 = vadd.f32 %v4279, %v4291
    %v4294 = vadd.f32 %v4284, %v4291
    %v4295 = vld [vmem:[#allocation14] sm:$0xff]
    %v4296 = vld [vmem:[#allocation14 + $0x8] sm:$0xff]
    %v4297 = vld [vmem:[#allocation14 + $0x10] sm:$0xff]
    %v4298 = vld [vmem:[#allocation14 + $0x18] sm:$0xff]
    %v4299 = vld [vmem:[#allocation14 + $0x20] sm:$0xff]
    %v4300 = vld [vmem:[#allocation14 + $0x28] sm:$0xff]
    %v4301 = vld [vmem:[#allocation14 + $0x30] sm:$0xff]
    %v4302 = vld [vmem:[#allocation14 + $0x38] sm:$0xff]
    %v4303 = vld [vmem:[#allocation14 + $0x40] sm:$0xff]
    %v4304 = vld [vmem:[#allocation14 + $0x48] sm:$0xff]
    %v4305 = vld [vmem:[#allocation14 + $0x50] sm:$0xff]
    %v4306 = vld [vmem:[#allocation14 + $0x58] sm:$0xff]
    %v4307 = vld [vmem:[#allocation16] sm:$0x1]
    %v4308 = vmax.f32 %v4293, 0.0
    %v4309 = vmax.f32 %v4294, 0.0
    %v4312 = vrot.slane %v4308, 5
    %v4313 = vrot.slane %v4309, 5
    %v4316 = vsel %vm1347, 0.0, %v4312
    %v4317 = vsel %vm1347, 0.0, %v4313
    %v4318 = vsel %vm1347, %v4312, 0.0
    %v4319 = vsel %vm1347, %v4313, 0.0
    %v4324 = vrot.slane %v4316, 3
    %v4325 = vrot.slane %v4318, 3
    %v4326 = vsel %vm995, %v4324, %v4325
    %v4327 = vrot.slane %v4317, 3
    %v4328 = vrot.slane %v4319, 3
    %v4329 = vsel %vm995, %v4327, %v4328
    %4330 = vrot.lane.b32.xlu0 %v4326, 32
    %v4331 = vpop.permute.xlu0 %4330
    %4332 = vrot.lane.b32.xlu0 %v4329, 32
    %v4333 = vpop.permute.xlu0 %4332
    %v4336 = vrot.slane %v4316, 6
    %v4337 = vrot.slane %v4318, 6
    %v4338 = vsel %vm1368, %v4336, %v4337
    %v4339 = vrot.slane %v4317, 6
    %v4340 = vrot.slane %v4319, 6
    %v4341 = vsel %vm1368, %v4339, %v4340
    %4342 = vrot.lane.b32.xlu0 %v4338, 64
    %v4343 = vpop.permute.xlu0 %4342
    %4344 = vrot.lane.b32.xlu0 %v4341, 64
    %v4345 = vpop.permute.xlu0 %4344
    %v4348 = vsel %vm1018, %v4316, %v4331
    %v4349 = vsel %vm1018, %v4317, %v4333
    %v4350 = vsel %vm1023, %v4348, %v4343
    %v4351 = vsel %vm1023, %v4349, %v4345
    %v4353 = vsel %vm1028, %v4350, 0
    %v4356 = vsel %vm1028, %v4351, 0
    %4358 = vmatprep.subr.mxu0 0.0
    %4359 = vmatpush1.msra.mxu0 0.0
    %4360 = vmatprep.subr.mxu0 0.0
    %4361 = vmatpush1.msra.mxu0 0.0
    %4362 = vmatprep.subr.mxu0 0.0
    %4363 = vmatpush1.msra.mxu0 0.0
    %4364 = vmatprep.subr.mxu0 0.0
    %4365 = vmatpush1.msra.mxu0 0.0
    %4366 = vmatprep.subr.mxu0 0.0
    %4367 = vmatpush1.msra.mxu0 %v4306
    %4368 = vmatprep.subr.mxu0 0.0
    %4369 = vmatpush1.msra.mxu0 %v4305
    %4370 = vmatprep.subr.mxu0 0.0
    %4371 = vmatpush1.msra.mxu0 %v4304
    %4372 = vmatprep.subr.mxu0 0.0
    %4373 = vmatpush1.msra.mxu0 %v4303
    %4374 = vmatprep.subr.mxu0 0.0
    %4375 = vmatpush1.msra.mxu0 %v4302
    %4376 = vmatprep.subr.mxu0 0.0
    %4377 = vmatpush1.msra.mxu0 %v4301
    %4378 = vmatprep.subr.mxu0 0.0
    %4379 = vmatpush1.msra.mxu0 %v4300
    %4380 = vmatprep.subr.mxu0 0.0
    %4381 = vmatpush1.msra.mxu0 %v4299
    %4382 = vmatprep.subr.mxu0 0.0
    %4383 = vmatpush1.msra.mxu0 %v4298
    %4384 = vmatprep.subr.mxu0 0.0
    %4385 = vmatpush1.msra.mxu0 %v4297
    %4386 = vmatprep.subr.mxu0 0.0
    %4387 = vmatpush1.msra.mxu0 %v4296
    %4388 = vmatprep.subr.mxu0 0.0
    %4389 = vmatpush1.msra.mxu0 %v4295
    %4390 = vmatprep.subr.mxu0 0.0
    %4391 = vmatpush2.msra.mxu0 0.0
    %4392 = vmatprep.subr.mxu0 0.0
    %4393 = vmatpush2.msra.mxu0 0.0
    %4394 = vmatprep.subr.mxu0 0.0
    %4395 = vmatpush2.msra.mxu0 0.0
    %4396 = vmatprep.subr.mxu0 0.0
    %4397 = vmatpush2.msra.mxu0 0.0
    %4398 = vmatprep.subr.mxu0 0.0
    %4399 = vmatpush2.msra.mxu0 0.0
    %4400 = vmatprep.subr.mxu0 0.0
    %4401 = vmatpush2.msra.mxu0 0.0
    %4402 = vmatprep.subr.mxu0 0.0
    %4403 = vmatpush2.msra.mxu0 0.0
    %4404 = vmatprep.subr.mxu0 0.0
    %4405 = vmatpush2.msra.mxu0 0.0
    %4406 = vmatprep.subr.mxu0 0.0
    %4407 = vmatpush2.msra.mxu0 0.0
    %4408 = vmatprep.subr.mxu0 0.0
    %4409 = vmatpush2.msra.mxu0 0.0
    %4410 = vmatprep.subr.mxu0 0.0
    %4411 = vmatpush2.msra.mxu0 0.0
    %4412 = vmatprep.subr.mxu0 0.0
    %4413 = vmatpush2.msra.mxu0 0.0
    %4414 = vmatprep.subr.mxu0 0.0
    %4415 = vmatpush2.msra.mxu0 0.0
    %4416 = vmatprep.subr.mxu0 0.0
    %4417 = vmatpush2.msra.mxu0 0.0
    %4418 = vmatprep.subr.mxu0 0.0
    %4419 = vmatpush2.msra.mxu0 0.0
    %4420 = vmatprep.subr.mxu0 0.0
    %4421 = vmatpush2.msra.mxu0 0.0
    %4422 = vmatprep.mubr.f32.mxu0 0.0
    %4423 = vmatmul.mubr.f32.gmra.mxu0 %v4353
    %v4424 = vpop.f32.mrf.mxu0
    %v4425 = vadd.f32 0.0, %v4424
    %v4426 = vpop.f32.mrf.mxu0
    %4427 = vmatprep.mubr.f32.mxu0 0.0
    %4428 = vmatmul.mubr.f32.gmra.mxu0 %v4356
    %v4429 = vpop.f32.mrf.mxu0
    %v4430 = vadd.f32 0.0, %v4429
    %v4431 = vpop.f32.mrf.mxu0
    %4432 = vdwg.mxu0
    %v4434 = vlaneseq
    %v4435 = vshrl.u32 %v4434, 7
    %v4436 = vsub.s32 0, %v4435
    %v4437 = vrot.slane %v4307, %v4436
    %v4439 = vadd.f32 %v4425, %v4437
    %v4440 = vadd.f32 %v4430, %v4437
    %v4441 = vld [vmem:[#allocation17] sm:$0xff]
    %v4442 = vld [vmem:[#allocation17 + $0x8] sm:$0xff]
    %v4443 = vld [vmem:[#allocation17 + $0x10] sm:$0xff]
    %v4444 = vld [vmem:[#allocation17 + $0x18] sm:$0xff]
    %v4445 = vld [vmem:[#allocation19] sm:$0x1]
    %v4446 = vmax.f32 %v4439, 0.0
    %v4447 = vmax.f32 %v4440, 0.0
    %v4449 = vsel %vm1018, %v4446, 0
    %v4452 = vsel %vm1018, %v4447, 0
    %4454 = vmatprep.subr.mxu0 0.0
    %4455 = vmatpush1.msra.mxu0 0.0
    %4456 = vmatprep.subr.mxu0 0.0
    %4457 = vmatpush1.msra.mxu0 0.0
    %4458 = vmatprep.subr.mxu0 0.0
    %4459 = vmatpush1.msra.mxu0 0.0
    %4460 = vmatprep.subr.mxu0 0.0
    %4461 = vmatpush1.msra.mxu0 0.0
    %4462 = vmatprep.subr.mxu0 0.0
    %4463 = vmatpush1.msra.mxu0 0.0
    %4464 = vmatprep.subr.mxu0 0.0
    %4465 = vmatpush1.msra.mxu0 0.0
    %4466 = vmatprep.subr.mxu0 0.0
    %4467 = vmatpush1.msra.mxu0 0.0
    %4468 = vmatprep.subr.mxu0 0.0
    %4469 = vmatpush1.msra.mxu0 0.0
    %4470 = vmatprep.subr.mxu0 0.0
    %4471 = vmatpush1.msra.mxu0 0.0
    %4472 = vmatprep.subr.mxu0 0.0
    %4473 = vmatpush1.msra.mxu0 0.0
    %4474 = vmatprep.subr.mxu0 0.0
    %4475 = vmatpush1.msra.mxu0 0.0
    %4476 = vmatprep.subr.mxu0 0.0
    %4477 = vmatpush1.msra.mxu0 0.0
    %4478 = vmatprep.subr.mxu0 0.0
    %4479 = vmatpush1.msra.mxu0 %v4444
    %4480 = vmatprep.subr.mxu0 0.0
    %4481 = vmatpush1.msra.mxu0 %v4443
    %4482 = vmatprep.subr.mxu0 0.0
    %4483 = vmatpush1.msra.mxu0 %v4442
    %4484 = vmatprep.subr.mxu0 0.0
    %4485 = vmatpush1.msra.mxu0 %v4441
    %4486 = vmatprep.subr.mxu0 0.0
    %4487 = vmatpush2.msra.mxu0 0.0
    %4488 = vmatprep.subr.mxu0 0.0
    %4489 = vmatpush2.msra.mxu0 0.0
    %4490 = vmatprep.subr.mxu0 0.0
    %4491 = vmatpush2.msra.mxu0 0.0
    %4492 = vmatprep.subr.mxu0 0.0
    %4493 = vmatpush2.msra.mxu0 0.0
    %4494 = vmatprep.subr.mxu0 0.0
    %4495 = vmatpush2.msra.mxu0 0.0
    %4496 = vmatprep.subr.mxu0 0.0
    %4497 = vmatpush2.msra.mxu0 0.0
    %4498 = vmatprep.subr.mxu0 0.0
    %4499 = vmatpush2.msra.mxu0 0.0
    %4500 = vmatprep.subr.mxu0 0.0
    %4501 = vmatpush2.msra.mxu0 0.0
    %4502 = vmatprep.subr.mxu0 0.0
    %4503 = vmatpush2.msra.mxu0 0.0
    %4504 = vmatprep.subr.mxu0 0.0
    %4505 = vmatpush2.msra.mxu0 0.0
    %4506 = vmatprep.subr.mxu0 0.0
    %4507 = vmatpush2.msra.mxu0 0.0
    %4508 = vmatprep.subr.mxu0 0.0
    %4509 = vmatpush2.msra.mxu0 0.0
    %4510 = vmatprep.subr.mxu0 0.0
    %4511 = vmatpush2.msra.mxu0 0.0
    %4512 = vmatprep.subr.mxu0 0.0
    %4513 = vmatpush2.msra.mxu0 0.0
    %4514 = vmatprep.subr.mxu0 0.0
    %4515 = vmatpush2.msra.mxu0 0.0
    %4516 = vmatprep.subr.mxu0 0.0
    %4517 = vmatpush2.msra.mxu0 0.0
    %4518 = vmatprep.mubr.f32.mxu0 0.0
    %4519 = vmatmul.mubr.f32.gmra.mxu0 %v4449
    %v4520 = vpop.f32.mrf.mxu0
    %v4521 = vadd.f32 0.0, %v4520
    %v4522 = vpop.f32.mrf.mxu0
    %4523 = vmatprep.mubr.f32.mxu0 0.0
    %4524 = vmatmul.mubr.f32.gmra.mxu0 %v4452
    %v4525 = vpop.f32.mrf.mxu0
    %v4526 = vadd.f32 0.0, %v4525
    %v4527 = vpop.f32.mrf.mxu0
    %4528 = vdwg.mxu0
    %v4530 = vlaneseq
    %v4531 = vshrl.u32 %v4530, 7
    %v4532 = vsub.s32 0, %v4531
    %v4533 = vrot.slane %v4445, %v4532
    %v4535 = vadd.f32 %v4521, %v4533
    %v4536 = vadd.f32 %v4526, %v4533
    %v4537 = vadd.f32 %v4293, %v4535
    %v4538 = vadd.f32 %v4294, %v4536
    %v4539 = vld [vmem:[#allocation20] sm:$0xff]
    %v4540 = vld [vmem:[#allocation20 + $0x8] sm:$0xff]
    %v4541 = vld [vmem:[#allocation20 + $0x10] sm:$0xff]
    %v4542 = vld [vmem:[#allocation20 + $0x18] sm:$0xff]
    %v4543 = vld [vmem:[#allocation20 + $0x20] sm:$0xff]
    %v4544 = vld [vmem:[#allocation20 + $0x28] sm:$0xff]
    %v4545 = vld [vmem:[#allocation20 + $0x30] sm:$0xff]
    %v4546 = vld [vmem:[#allocation20 + $0x38] sm:$0xff]
    %v4547 = vld [vmem:[#allocation20 + $0x40] sm:$0xff]
    %v4548 = vld [vmem:[#allocation20 + $0x48] sm:$0xff]
    %v4549 = vld [vmem:[#allocation20 + $0x50] sm:$0xff]
    %v4550 = vld [vmem:[#allocation20 + $0x58] sm:$0xff]
    %v4551 = vld [vmem:[#allocation22] sm:$0x1]
    %v4552 = vmax.f32 %v4537, 0.0
    %v4553 = vmax.f32 %v4538, 0.0
    %v4556 = vrot.slane %v4552, 7
    %v4557 = vrot.slane %v4553, 7
    %v4560 = vsel %vm717, 0.0, %v4556
    %v4561 = vsel %vm717, 0.0, %v4557
    %v4562 = vsel %vm717, %v4556, 0.0
    %v4563 = vsel %vm717, %v4557, 0.0
    %v4568 = vrot.slane %v4560, 1
    %v4569 = vrot.slane %v4562, 1
    %v4570 = vsel %vm738, %v4568, %v4569
    %v4571 = vrot.slane %v4561, 1
    %v4572 = vrot.slane %v4563, 1
    %v4573 = vsel %vm738, %v4571, %v4572
    %4574 = vrot.lane.b32.xlu0 %v4570, 32
    %v4575 = vpop.permute.xlu0 %4574
    %4576 = vrot.lane.b32.xlu0 %v4573, 32
    %v4577 = vpop.permute.xlu0 %4576
    %v4580 = vrot.slane %v4560, 2
    %v4581 = vrot.slane %v4562, 2
    %v4582 = vsel %vm761, %v4580, %v4581
    %v4583 = vrot.slane %v4561, 2
    %v4584 = vrot.slane %v4563, 2
    %v4585 = vsel %vm761, %v4583, %v4584
    %4586 = vrot.lane.b32.xlu0 %v4582, 64
    %v4587 = vpop.permute.xlu0 %4586
    %4588 = vrot.lane.b32.xlu0 %v4585, 64
    %v4589 = vpop.permute.xlu0 %4588
    %v4592 = vsel %vm1018, %v4560, %v4575
    %v4593 = vsel %vm1018, %v4561, %v4577
    %v4594 = vsel %vm1023, %v4592, %v4587
    %v4595 = vsel %vm1023, %v4593, %v4589
    %v4597 = vsel %vm1028, %v4594, 0
    %v4600 = vsel %vm1028, %v4595, 0
    %4602 = vmatprep.subr.mxu0 0.0
    %4603 = vmatpush1.msra.mxu0 0.0
    %4604 = vmatprep.subr.mxu0 0.0
    %4605 = vmatpush1.msra.mxu0 0.0
    %4606 = vmatprep.subr.mxu0 0.0
    %4607 = vmatpush1.msra.mxu0 0.0
    %4608 = vmatprep.subr.mxu0 0.0
    %4609 = vmatpush1.msra.mxu0 0.0
    %4610 = vmatprep.subr.mxu0 0.0
    %4611 = vmatpush1.msra.mxu0 %v4550
    %4612 = vmatprep.subr.mxu0 0.0
    %4613 = vmatpush1.msra.mxu0 %v4549
    %4614 = vmatprep.subr.mxu0 0.0
    %4615 = vmatpush1.msra.mxu0 %v4548
    %4616 = vmatprep.subr.mxu0 0.0
    %4617 = vmatpush1.msra.mxu0 %v4547
    %4618 = vmatprep.subr.mxu0 0.0
    %4619 = vmatpush1.msra.mxu0 %v4546
    %4620 = vmatprep.subr.mxu0 0.0
    %4621 = vmatpush1.msra.mxu0 %v4545
    %4622 = vmatprep.subr.mxu0 0.0
    %4623 = vmatpush1.msra.mxu0 %v4544
    %4624 = vmatprep.subr.mxu0 0.0
    %4625 = vmatpush1.msra.mxu0 %v4543
    %4626 = vmatprep.subr.mxu0 0.0
    %4627 = vmatpush1.msra.mxu0 %v4542
    %4628 = vmatprep.subr.mxu0 0.0
    %4629 = vmatpush1.msra.mxu0 %v4541
    %4630 = vmatprep.subr.mxu0 0.0
    %4631 = vmatpush1.msra.mxu0 %v4540
    %4632 = vmatprep.subr.mxu0 0.0
    %4633 = vmatpush1.msra.mxu0 %v4539
    %4634 = vmatprep.subr.mxu0 0.0
    %4635 = vmatpush2.msra.mxu0 0.0
    %4636 = vmatprep.subr.mxu0 0.0
    %4637 = vmatpush2.msra.mxu0 0.0
    %4638 = vmatprep.subr.mxu0 0.0
    %4639 = vmatpush2.msra.mxu0 0.0
    %4640 = vmatprep.subr.mxu0 0.0
    %4641 = vmatpush2.msra.mxu0 0.0
    %4642 = vmatprep.subr.mxu0 0.0
    %4643 = vmatpush2.msra.mxu0 0.0
    %4644 = vmatprep.subr.mxu0 0.0
    %4645 = vmatpush2.msra.mxu0 0.0
    %4646 = vmatprep.subr.mxu0 0.0
    %4647 = vmatpush2.msra.mxu0 0.0
    %4648 = vmatprep.subr.mxu0 0.0
    %4649 = vmatpush2.msra.mxu0 0.0
    %4650 = vmatprep.subr.mxu0 0.0
    %4651 = vmatpush2.msra.mxu0 0.0
    %4652 = vmatprep.subr.mxu0 0.0
    %4653 = vmatpush2.msra.mxu0 0.0
    %4654 = vmatprep.subr.mxu0 0.0
    %4655 = vmatpush2.msra.mxu0 0.0
    %4656 = vmatprep.subr.mxu0 0.0
    %4657 = vmatpush2.msra.mxu0 0.0
    %4658 = vmatprep.subr.mxu0 0.0
    %4659 = vmatpush2.msra.mxu0 0.0
    %4660 = vmatprep.subr.mxu0 0.0
    %4661 = vmatpush2.msra.mxu0 0.0
    %4662 = vmatprep.subr.mxu0 0.0
    %4663 = vmatpush2.msra.mxu0 0.0
    %4664 = vmatprep.subr.mxu0 0.0
    %4665 = vmatpush2.msra.mxu0 0.0
    %4666 = vmatprep.mubr.f32.mxu0 0.0
    %4667 = vmatmul.mubr.f32.gmra.mxu0 %v4597
    %v4668 = vpop.f32.mrf.mxu0
    %v4669 = vadd.f32 0.0, %v4668
    %v4670 = vpop.f32.mrf.mxu0
    %4671 = vmatprep.mubr.f32.mxu0 0.0
    %4672 = vmatmul.mubr.f32.gmra.mxu0 %v4600
    %v4673 = vpop.f32.mrf.mxu0
    %v4674 = vadd.f32 0.0, %v4673
    %v4675 = vpop.f32.mrf.mxu0
    %4676 = vdwg.mxu0
    %v4678 = vlaneseq
    %v4679 = vshrl.u32 %v4678, 7
    %v4680 = vsub.s32 0, %v4679
    %v4681 = vrot.slane %v4551, %v4680
    %v4683 = vadd.f32 %v4669, %v4681
    %v4684 = vadd.f32 %v4674, %v4681
    %v4685 = vld [vmem:[#allocation23] sm:$0xff]
    %v4686 = vld [vmem:[#allocation23 + $0x8] sm:$0xff]
    %v4687 = vld [vmem:[#allocation23 + $0x10] sm:$0xff]
    %v4688 = vld [vmem:[#allocation23 + $0x18] sm:$0xff]
    %v4689 = vld [vmem:[#allocation25] sm:$0x1]
    %v4690 = vmax.f32 %v4683, 0.0
    %v4691 = vmax.f32 %v4684, 0.0
    %v4693 = vsel %vm1018, %v4690, 0
    %v4696 = vsel %vm1018, %v4691, 0
    %4698 = vmatprep.subr.mxu0 0.0
    %4699 = vmatpush1.msra.mxu0 0.0
    %4700 = vmatprep.subr.mxu0 0.0
    %4701 = vmatpush1.msra.mxu0 0.0
    %4702 = vmatprep.subr.mxu0 0.0
    %4703 = vmatpush1.msra.mxu0 0.0
    %4704 = vmatprep.subr.mxu0 0.0
    %4705 = vmatpush1.msra.mxu0 0.0
    %4706 = vmatprep.subr.mxu0 0.0
    %4707 = vmatpush1.msra.mxu0 0.0
    %4708 = vmatprep.subr.mxu0 0.0
    %4709 = vmatpush1.msra.mxu0 0.0
    %4710 = vmatprep.subr.mxu0 0.0
    %4711 = vmatpush1.msra.mxu0 0.0
    %4712 = vmatprep.subr.mxu0 0.0
    %4713 = vmatpush1.msra.mxu0 0.0
    %4714 = vmatprep.subr.mxu0 0.0
    %4715 = vmatpush1.msra.mxu0 0.0
    %4716 = vmatprep.subr.mxu0 0.0
    %4717 = vmatpush1.msra.mxu0 0.0
    %4718 = vmatprep.subr.mxu0 0.0
    %4719 = vmatpush1.msra.mxu0 0.0
    %4720 = vmatprep.subr.mxu0 0.0
    %4721 = vmatpush1.msra.mxu0 0.0
    %4722 = vmatprep.subr.mxu0 0.0
    %4723 = vmatpush1.msra.mxu0 %v4688
    %4724 = vmatprep.subr.mxu0 0.0
    %4725 = vmatpush1.msra.mxu0 %v4687
    %4726 = vmatprep.subr.mxu0 0.0
    %4727 = vmatpush1.msra.mxu0 %v4686
    %4728 = vmatprep.subr.mxu0 0.0
    %4729 = vmatpush1.msra.mxu0 %v4685
    %4730 = vmatprep.subr.mxu0 0.0
    %4731 = vmatpush2.msra.mxu0 0.0
    %4732 = vmatprep.subr.mxu0 0.0
    %4733 = vmatpush2.msra.mxu0 0.0
    %4734 = vmatprep.subr.mxu0 0.0
    %4735 = vmatpush2.msra.mxu0 0.0
    %4736 = vmatprep.subr.mxu0 0.0
    %4737 = vmatpush2.msra.mxu0 0.0
    %4738 = vmatprep.subr.mxu0 0.0
    %4739 = vmatpush2.msra.mxu0 0.0
    %4740 = vmatprep.subr.mxu0 0.0
    %4741 = vmatpush2.msra.mxu0 0.0
    %4742 = vmatprep.subr.mxu0 0.0
    %4743 = vmatpush2.msra.mxu0 0.0
    %4744 = vmatprep.subr.mxu0 0.0
    %4745 = vmatpush2.msra.mxu0 0.0
    %4746 = vmatprep.subr.mxu0 0.0
    %4747 = vmatpush2.msra.mxu0 0.0
    %4748 = vmatprep.subr.mxu0 0.0
    %4749 = vmatpush2.msra.mxu0 0.0
    %4750 = vmatprep.subr.mxu0 0.0
    %4751 = vmatpush2.msra.mxu0 0.0
    %4752 = vmatprep.subr.mxu0 0.0
    %4753 = vmatpush2.msra.mxu0 0.0
    %4754 = vmatprep.subr.mxu0 0.0
    %4755 = vmatpush2.msra.mxu0 0.0
    %4756 = vmatprep.subr.mxu0 0.0
    %4757 = vmatpush2.msra.mxu0 0.0
    %4758 = vmatprep.subr.mxu0 0.0
    %4759 = vmatpush2.msra.mxu0 0.0
    %4760 = vmatprep.subr.mxu0 0.0
    %4761 = vmatpush2.msra.mxu0 0.0
    %4762 = vmatprep.mubr.f32.mxu0 0.0
    %4763 = vmatmul.mubr.f32.gmra.mxu0 %v4693
    %v4764 = vpop.f32.mrf.mxu0
    %v4765 = vadd.f32 0.0, %v4764
    %v4766 = vpop.f32.mrf.mxu0
    %4767 = vmatprep.mubr.f32.mxu0 0.0
    %4768 = vmatmul.mubr.f32.gmra.mxu0 %v4696
    %v4769 = vpop.f32.mrf.mxu0
    %v4770 = vadd.f32 0.0, %v4769
    %v4771 = vpop.f32.mrf.mxu0
    %4772 = vdwg.mxu0
    %v4774 = vlaneseq
    %v4775 = vshrl.u32 %v4774, 7
    %v4776 = vsub.s32 0, %v4775
    %v4777 = vrot.slane %v4689, %v4776
    %v4779 = vadd.f32 %v4765, %v4777
    %v4780 = vadd.f32 %v4770, %v4777
    %v4781 = vadd.f32 %v4537, %v4779
    %v4782 = vadd.f32 %v4538, %v4780
    %v4785 = vcombine.high %v4781, %v4781
    %v4787 = vunpack.c.l.s4 1966171168
    %v4788 = vunpack.c.0.s8 %v4787
    %v4789 = vlaneseq
    %v4790 = vshrl.u32 %v4789, 7
    %v4791 = vsub.s32 %v4788, %v4790
    %v4792 = vrot.slane %v4781, %v4791
    %v4794 = vunpack.c.l.s4 1966171168
    %v4795 = vunpack.c.0.s8 %v4794
    %v4796 = vlaneseq
    %v4797 = vshrl.u32 %v4796, 7
    %v4798 = vsub.s32 %v4795, %v4797
    %v4799 = vrot.slane %v4785, %v4798
    %v4800 = vcombine.high %v4792, %v4792
    %v4801 = vcombine.high %v4799, %v4799
    %v4803 = vunpack.c.l.s4 1966171168
    %v4804 = vunpack.c.0.s8 %v4803
    %v4805 = vlaneseq
    %v4806 = vshrl.u32 %v4805, 7
    %v4807 = vsub.s32 %v4804, %v4806
    %v4808 = vrot.slane %v4792, %v4807
    %v4810 = vunpack.c.l.s4 1966171168
    %v4811 = vunpack.c.0.s8 %v4810
    %v4812 = vlaneseq
    %v4813 = vshrl.u32 %v4812, 7
    %v4814 = vsub.s32 %v4811, %v4813
    %v4815 = vrot.slane %v4799, %v4814
    %v4817 = vunpack.c.l.s4 1966171168
    %v4818 = vunpack.c.0.s8 %v4817
    %v4819 = vlaneseq
    %v4820 = vshrl.u32 %v4819, 7
    %v4821 = vsub.s32 %v4818, %v4820
    %v4822 = vrot.slane %v4800, %v4821
    %v4824 = vunpack.c.l.s4 1966171168
    %v4825 = vunpack.c.0.s8 %v4824
    %v4826 = vlaneseq
    %v4827 = vshrl.u32 %v4826, 7
    %v4828 = vsub.s32 %v4825, %v4827
    %v4829 = vrot.slane %v4801, %v4828
    %v4830 = vcombine.high %v4808, %v4808
    %v4831 = vcombine.high %v4815, %v4815
    %v4832 = vcombine.high %v4822, %v4822
    %v4833 = vcombine.high %v4829, %v4829
    %v4834 = vcombine.high %v4782, %v4782
    %v4836 = vunpack.c.l.s4 1966171168
    %v4837 = vunpack.c.0.s8 %v4836
    %v4838 = vlaneseq
    %v4839 = vshrl.u32 %v4838, 7
    %v4840 = vsub.s32 %v4837, %v4839
    %v4841 = vrot.slane %v4782, %v4840
    %v4843 = vunpack.c.l.s4 1966171168
    %v4844 = vunpack.c.0.s8 %v4843
    %v4845 = vlaneseq
    %v4846 = vshrl.u32 %v4845, 7
    %v4847 = vsub.s32 %v4844, %v4846
    %v4848 = vrot.slane %v4834, %v4847
    %v4849 = vcombine.high %v4841, %v4841
    %v4850 = vcombine.high %v4848, %v4848
    %v4852 = vunpack.c.l.s4 1966171168
    %v4853 = vunpack.c.0.s8 %v4852
    %v4854 = vlaneseq
    %v4855 = vshrl.u32 %v4854, 7
    %v4856 = vsub.s32 %v4853, %v4855
    %v4857 = vrot.slane %v4841, %v4856
    %v4859 = vunpack.c.l.s4 1966171168
    %v4860 = vunpack.c.0.s8 %v4859
    %v4861 = vlaneseq
    %v4862 = vshrl.u32 %v4861, 7
    %v4863 = vsub.s32 %v4860, %v4862
    %v4864 = vrot.slane %v4848, %v4863
    %v4866 = vunpack.c.l.s4 1966171168
    %v4867 = vunpack.c.0.s8 %v4866
    %v4868 = vlaneseq
    %v4869 = vshrl.u32 %v4868, 7
    %v4870 = vsub.s32 %v4867, %v4869
    %v4871 = vrot.slane %v4849, %v4870
    %v4873 = vunpack.c.l.s4 1966171168
    %v4874 = vunpack.c.0.s8 %v4873
    %v4875 = vlaneseq
    %v4876 = vshrl.u32 %v4875, 7
    %v4877 = vsub.s32 %v4874, %v4876
    %v4878 = vrot.slane %v4850, %v4877
    %v4879 = vcombine.high %v4857, %v4857
    %v4880 = vcombine.high %v4864, %v4864
    %v4881 = vcombine.high %v4871, %v4871
    %v4882 = vcombine.high %v4878, %v4878
    %v4899 = vlaneseq
    %v4900 = vshrl.u32 %v4899, 7
    %v4901 = vsub.s32 0, %v4900
    %v4902 = vrot.slane %v4808, %v4901
    %v4903 = vlaneseq
    %v4904 = vshrl.u32 %v4903, 7
    %v4905 = vsub.s32 0, %v4904
    %v4906 = vrot.slane %v4822, %v4905
    %v4907 = vlaneseq
    %v4908 = vshrl.u32 %v4907, 7
    %v4909 = vsub.s32 0, %v4908
    %v4910 = vrot.slane %v4830, %v4909
    %v4911 = vlaneseq
    %v4912 = vshrl.u32 %v4911, 7
    %v4913 = vsub.s32 0, %v4912
    %v4914 = vrot.slane %v4832, %v4913
    %v4915 = vlaneseq
    %v4916 = vshrl.u32 %v4915, 7
    %v4917 = vsub.s32 0, %v4916
    %v4918 = vrot.slane %v4815, %v4917
    %v4919 = vlaneseq
    %v4920 = vshrl.u32 %v4919, 7
    %v4921 = vsub.s32 0, %v4920
    %v4922 = vrot.slane %v4829, %v4921
    %v4923 = vlaneseq
    %v4924 = vshrl.u32 %v4923, 7
    %v4925 = vsub.s32 0, %v4924
    %v4926 = vrot.slane %v4831, %v4925
    %v4927 = vlaneseq
    %v4928 = vshrl.u32 %v4927, 7
    %v4929 = vsub.s32 0, %v4928
    %v4930 = vrot.slane %v4833, %v4929
    %v4931 = vlaneseq
    %v4932 = vshrl.u32 %v4931, 7
    %v4933 = vsub.s32 0, %v4932
    %v4934 = vrot.slane %v4857, %v4933
    %v4935 = vlaneseq
    %v4936 = vshrl.u32 %v4935, 7
    %v4937 = vsub.s32 0, %v4936
    %v4938 = vrot.slane %v4871, %v4937
    %v4939 = vlaneseq
    %v4940 = vshrl.u32 %v4939, 7
    %v4941 = vsub.s32 0, %v4940
    %v4942 = vrot.slane %v4879, %v4941
    %v4943 = vlaneseq
    %v4944 = vshrl.u32 %v4943, 7
    %v4945 = vsub.s32 0, %v4944
    %v4946 = vrot.slane %v4881, %v4945
    %v4947 = vlaneseq
    %v4948 = vshrl.u32 %v4947, 7
    %v4949 = vsub.s32 0, %v4948
    %v4950 = vrot.slane %v4864, %v4949
    %v4951 = vlaneseq
    %v4952 = vshrl.u32 %v4951, 7
    %v4953 = vsub.s32 0, %v4952
    %v4954 = vrot.slane %v4878, %v4953
    %v4955 = vlaneseq
    %v4956 = vshrl.u32 %v4955, 7
    %v4957 = vsub.s32 0, %v4956
    %v4958 = vrot.slane %v4880, %v4957
    %v4959 = vlaneseq
    %v4960 = vshrl.u32 %v4959, 7
    %v4961 = vsub.s32 0, %v4960
    %v4962 = vrot.slane %v4882, %v4961
    %v4979 = vsel %vm717, %v4808, %v4902
    %v4980 = vsel %vm717, %v4822, %v4906
    %v4981 = vsel %vm717, %v4830, %v4910
    %v4982 = vsel %vm717, %v4832, %v4914
    %v4983 = vsel %vm717, %v4815, %v4918
    %v4984 = vsel %vm717, %v4829, %v4922
    %v4985 = vsel %vm717, %v4831, %v4926
    %v4986 = vsel %vm717, %v4833, %v4930
    %v4987 = vsel %vm717, %v4857, %v4934
    %v4988 = vsel %vm717, %v4871, %v4938
    %v4989 = vsel %vm717, %v4879, %v4942
    %v4990 = vsel %vm717, %v4881, %v4946
    %v4991 = vsel %vm717, %v4864, %v4950
    %v4992 = vsel %vm717, %v4878, %v4954
    %v4993 = vsel %vm717, %v4880, %v4958
    %v4994 = vsel %vm717, %v4882, %v4962
    %v4995 = vld [vmem:[#allocation26] sm:$0xff]
    %v4996 = vld [vmem:[#allocation26 + $0x8] sm:$0xff]
    %v4997 = vld [vmem:[#allocation26 + $0x10] sm:$0xff]
    %v4998 = vld [vmem:[#allocation26 + $0x18] sm:$0xff]
    %v4999 = vld [vmem:[#allocation26 + $0x20] sm:$0xff]
    %v5000 = vld [vmem:[#allocation26 + $0x28] sm:$0xff]
    %v5001 = vld [vmem:[#allocation26 + $0x30] sm:$0xff]
    %v5002 = vld [vmem:[#allocation26 + $0x38] sm:$0xff]
    %v5003 = vld [vmem:[#allocation26 + $0x40] sm:$0xff]
    %v5004 = vld [vmem:[#allocation26 + $0x48] sm:$0xff]
    %v5005 = vld [vmem:[#allocation26 + $0x50] sm:$0xff]
    %v5006 = vld [vmem:[#allocation26 + $0x58] sm:$0xff]
    %v5007 = vld [vmem:[#allocation28] sm:$0x1]
    %v5024 = vcombine.low %v4979, %v4980
    %v5025 = vcombine.low %v4981, %v4982
    %v5027 = vunpack.c.l.s4 1983009808
    %v5028 = vunpack.c.0.s8 %v5027
    %v5029 = vlaneseq
    %v5030 = vshrl.u32 %v5029, 7
    %v5031 = vsub.s32 %v5028, %v5030
    %v5032 = vrot.slane %v5024, %v5031
    %v5034 = vunpack.c.l.s4 1983009808
    %v5035 = vunpack.c.0.s8 %v5034
    %v5036 = vlaneseq
    %v5037 = vshrl.u32 %v5036, 7
    %v5038 = vsub.s32 %v5035, %v5037
    %v5039 = vrot.slane %v5025, %v5038
    %v5040 = vcombine.low %v5032, %v5039
    %v5041 = vcombine.low %v4983, %v4984
    %v5042 = vcombine.low %v4985, %v4986
    %v5044 = vunpack.c.l.s4 1983009808
    %v5045 = vunpack.c.0.s8 %v5044
    %v5046 = vlaneseq
    %v5047 = vshrl.u32 %v5046, 7
    %v5048 = vsub.s32 %v5045, %v5047
    %v5049 = vrot.slane %v5041, %v5048
    %v5051 = vunpack.c.l.s4 1983009808
    %v5052 = vunpack.c.0.s8 %v5051
    %v5053 = vlaneseq
    %v5054 = vshrl.u32 %v5053, 7
    %v5055 = vsub.s32 %v5052, %v5054
    %v5056 = vrot.slane %v5042, %v5055
    %v5057 = vcombine.low %v5049, %v5056
    %v5058 = vcombine.low %v4987, %v4988
    %v5059 = vcombine.low %v4989, %v4990
    %v5061 = vunpack.c.l.s4 1983009808
    %v5062 = vunpack.c.0.s8 %v5061
    %v5063 = vlaneseq
    %v5064 = vshrl.u32 %v5063, 7
    %v5065 = vsub.s32 %v5062, %v5064
    %v5066 = vrot.slane %v5058, %v5065
    %v5068 = vunpack.c.l.s4 1983009808
    %v5069 = vunpack.c.0.s8 %v5068
    %v5070 = vlaneseq
    %v5071 = vshrl.u32 %v5070, 7
    %v5072 = vsub.s32 %v5069, %v5071
    %v5073 = vrot.slane %v5059, %v5072
    %v5074 = vcombine.low %v5066, %v5073
    %v5075 = vcombine.low %v4991, %v4992
    %v5076 = vcombine.low %v4993, %v4994
    %v5078 = vunpack.c.l.s4 1983009808
    %v5079 = vunpack.c.0.s8 %v5078
    %v5080 = vlaneseq
    %v5081 = vshrl.u32 %v5080, 7
    %v5082 = vsub.s32 %v5079, %v5081
    %v5083 = vrot.slane %v5075, %v5082
    %v5085 = vunpack.c.l.s4 1983009808
    %v5086 = vunpack.c.0.s8 %v5085
    %v5087 = vlaneseq
    %v5088 = vshrl.u32 %v5087, 7
    %v5089 = vsub.s32 %v5086, %v5088
    %v5090 = vrot.slane %v5076, %v5089
    %v5091 = vcombine.low %v5083, %v5090
    %v5092 = vrot.slane %v5040, 7
    %v5093 = vrot.slane %v5057, 7
    %v5094 = vsel %vm717, %v5092, %v5093
    %v5095 = vrot.slane %v5074, 7
    %v5096 = vrot.slane %v5091, 7
    %v5097 = vsel %vm717, %v5095, %v5096
    %v5104 = vsel %vm717, 0.0, %v5092
    %v5105 = vsel %vm717, 0.0, %v5095
    %v5106 = vsel %vm717, %v5093, 0.0
    %v5107 = vsel %vm717, %v5096, 0.0
    %v5112 = vrot.slane %v5104, 1
    %v5113 = vrot.slane %v5094, 1
    %v5114 = vsel %vm738, %v5112, %v5113
    %v5115 = vrot.slane %v5106, 1
    %v5116 = vsel %vm738, %v5113, %v5115
    %v5117 = vrot.slane %v5105, 1
    %v5118 = vrot.slane %v5097, 1
    %v5119 = vsel %vm738, %v5117, %v5118
    %v5120 = vrot.slane %v5107, 1
    %v5121 = vsel %vm738, %v5118, %v5120
    %5122 = vrot.lane.b32.xlu0 %v5114, 32
    %v5123 = vpop.permute.xlu0 %5122
    %5124 = vrot.lane.b32.xlu0 %v5116, 32
    %v5125 = vpop.permute.xlu0 %5124
    %5126 = vrot.lane.b32.xlu0 %v5119, 32
    %v5127 = vpop.permute.xlu0 %5126
    %5128 = vrot.lane.b32.xlu0 %v5121, 32
    %v5129 = vpop.permute.xlu0 %5128
    %v5134 = vrot.slane %v5104, 2
    %v5135 = vrot.slane %v5094, 2
    %v5136 = vsel %vm761, %v5134, %v5135
    %v5137 = vrot.slane %v5106, 2
    %v5138 = vsel %vm761, %v5135, %v5137
    %v5139 = vrot.slane %v5105, 2
    %v5140 = vrot.slane %v5097, 2
    %v5141 = vsel %vm761, %v5139, %v5140
    %v5142 = vrot.slane %v5107, 2
    %v5143 = vsel %vm761, %v5140, %v5142
    %5144 = vrot.lane.b32.xlu0 %v5136, 64
    %v5145 = vpop.permute.xlu0 %5144
    %5146 = vrot.lane.b32.xlu0 %v5138, 64
    %v5147 = vpop.permute.xlu0 %5146
    %5148 = vrot.lane.b32.xlu0 %v5141, 64
    %v5149 = vpop.permute.xlu0 %5148
    %5150 = vrot.lane.b32.xlu0 %v5143, 64
    %v5151 = vpop.permute.xlu0 %5150
    %v5156 = vsel %vm1018, %v5104, %v5123
    %v5157 = vsel %vm1018, %v5094, %v5125
    %v5158 = vsel %vm1018, %v5105, %v5127
    %v5159 = vsel %vm1018, %v5097, %v5129
    %v5160 = vsel %vm1023, %v5156, %v5145
    %v5161 = vsel %vm1023, %v5157, %v5147
    %v5162 = vsel %vm1023, %v5158, %v5149
    %v5163 = vsel %vm1023, %v5159, %v5151
    %v5165 = vsel %vm1028, %v5160, 0
    %v5168 = vsel %vm1028, %v5161, 0
    %v5171 = vsel %vm1028, %v5162, 0
    %v5174 = vsel %vm1028, %v5163, 0
    %5176 = vmatprep.subr.mxu0 0.0
    %5177 = vmatpush1.msra.mxu0 0.0
    %5178 = vmatprep.subr.mxu0 0.0
    %5179 = vmatpush1.msra.mxu0 0.0
    %5180 = vmatprep.subr.mxu0 0.0
    %5181 = vmatpush1.msra.mxu0 0.0
    %5182 = vmatprep.subr.mxu0 0.0
    %5183 = vmatpush1.msra.mxu0 0.0
    %5184 = vmatprep.subr.mxu0 0.0
    %5185 = vmatpush1.msra.mxu0 %v5006
    %5186 = vmatprep.subr.mxu0 0.0
    %5187 = vmatpush1.msra.mxu0 %v5005
    %5188 = vmatprep.subr.mxu0 0.0
    %5189 = vmatpush1.msra.mxu0 %v5004
    %5190 = vmatprep.subr.mxu0 0.0
    %5191 = vmatpush1.msra.mxu0 %v5003
    %5192 = vmatprep.subr.mxu0 0.0
    %5193 = vmatpush1.msra.mxu0 %v5002
    %5194 = vmatprep.subr.mxu0 0.0
    %5195 = vmatpush1.msra.mxu0 %v5001
    %5196 = vmatprep.subr.mxu0 0.0
    %5197 = vmatpush1.msra.mxu0 %v5000
    %5198 = vmatprep.subr.mxu0 0.0
    %5199 = vmatpush1.msra.mxu0 %v4999
    %5200 = vmatprep.subr.mxu0 0.0
    %5201 = vmatpush1.msra.mxu0 %v4998
    %5202 = vmatprep.subr.mxu0 0.0
    %5203 = vmatpush1.msra.mxu0 %v4997
    %5204 = vmatprep.subr.mxu0 0.0
    %5205 = vmatpush1.msra.mxu0 %v4996
    %5206 = vmatprep.subr.mxu0 0.0
    %5207 = vmatpush1.msra.mxu0 %v4995
    %5208 = vmatprep.subr.mxu0 0.0
    %5209 = vmatpush2.msra.mxu0 0.0
    %5210 = vmatprep.subr.mxu0 0.0
    %5211 = vmatpush2.msra.mxu0 0.0
    %5212 = vmatprep.subr.mxu0 0.0
    %5213 = vmatpush2.msra.mxu0 0.0
    %5214 = vmatprep.subr.mxu0 0.0
    %5215 = vmatpush2.msra.mxu0 0.0
    %5216 = vmatprep.subr.mxu0 0.0
    %5217 = vmatpush2.msra.mxu0 0.0
    %5218 = vmatprep.subr.mxu0 0.0
    %5219 = vmatpush2.msra.mxu0 0.0
    %5220 = vmatprep.subr.mxu0 0.0
    %5221 = vmatpush2.msra.mxu0 0.0
    %5222 = vmatprep.subr.mxu0 0.0
    %5223 = vmatpush2.msra.mxu0 0.0
    %5224 = vmatprep.subr.mxu0 0.0
    %5225 = vmatpush2.msra.mxu0 0.0
    %5226 = vmatprep.subr.mxu0 0.0
    %5227 = vmatpush2.msra.mxu0 0.0
    %5228 = vmatprep.subr.mxu0 0.0
    %5229 = vmatpush2.msra.mxu0 0.0
    %5230 = vmatprep.subr.mxu0 0.0
    %5231 = vmatpush2.msra.mxu0 0.0
    %5232 = vmatprep.subr.mxu0 0.0
    %5233 = vmatpush2.msra.mxu0 0.0
    %5234 = vmatprep.subr.mxu0 0.0
    %5235 = vmatpush2.msra.mxu0 0.0
    %5236 = vmatprep.subr.mxu0 0.0
    %5237 = vmatpush2.msra.mxu0 0.0
    %5238 = vmatprep.subr.mxu0 0.0
    %5239 = vmatpush2.msra.mxu0 0.0
    %5240 = vmatprep.mubr.f32.mxu0 0.0
    %5241 = vmatmul.mubr.f32.gmra.mxu0 %v5165
    %v5242 = vpop.f32.mrf.mxu0
    %v5243 = vadd.f32 0.0, %v5242
    %v5244 = vpop.f32.mrf.mxu0
    %5245 = vmatprep.mubr.f32.mxu0 0.0
    %5246 = vmatmul.mubr.f32.gmra.mxu0 %v5168
    %v5247 = vpop.f32.mrf.mxu0
    %v5248 = vadd.f32 0.0, %v5247
    %v5249 = vpop.f32.mrf.mxu0
    %5250 = vmatprep.mubr.f32.mxu0 0.0
    %5251 = vmatmul.mubr.f32.gmra.mxu0 %v5171
    %v5252 = vpop.f32.mrf.mxu0
    %v5253 = vadd.f32 0.0, %v5252
    %v5254 = vpop.f32.mrf.mxu0
    %5255 = vmatprep.mubr.f32.mxu0 0.0
    %5256 = vmatmul.mubr.f32.gmra.mxu0 %v5174
    %v5257 = vpop.f32.mrf.mxu0
    %v5258 = vadd.f32 0.0, %v5257
    %v5259 = vpop.f32.mrf.mxu0
    %5260 = vdwg.mxu0
    %v5262 = vlaneseq
    %v5263 = vshrl.u32 %v5262, 7
    %v5264 = vsub.s32 0, %v5263
    %v5265 = vrot.slane %v5007, %v5264
    %v5267 = vadd.f32 %v5243, %v5265
    %v5268 = vadd.f32 %v5248, %v5265
    %v5269 = vadd.f32 %v5253, %v5265
    %v5270 = vadd.f32 %v5258, %v5265
    %v5271 = vld [vmem:[#allocation32] sm:$0xff]
    %v5272 = vld [vmem:[#allocation32 + $0x8] sm:$0xff]
    %v5273 = vld [vmem:[#allocation32 + $0x10] sm:$0xff]
    %v5274 = vld [vmem:[#allocation32 + $0x18] sm:$0xff]
    %v5275 = vld [vmem:[#allocation32 + $0x20] sm:$0xff]
    %v5276 = vld [vmem:[#allocation32 + $0x28] sm:$0xff]
    %v5277 = vld [vmem:[#allocation32 + $0x30] sm:$0xff]
    %v5278 = vld [vmem:[#allocation32 + $0x38] sm:$0xff]
    %v5279 = vld [vmem:[#allocation32 + $0x40] sm:$0xff]
    %v5280 = vld [vmem:[#allocation32 + $0x48] sm:$0xff]
    %v5281 = vld [vmem:[#allocation32 + $0x50] sm:$0xff]
    %v5282 = vld [vmem:[#allocation32 + $0x58] sm:$0xff]
    %v5283 = vld [vmem:[#allocation34] sm:$0x1]
    %v5288 = vrot.slane %v5267, 7
    %v5289 = vrot.slane %v5268, 7
    %v5290 = vsel %vm717, %v5288, %v5289
    %v5291 = vrot.slane %v5269, 7
    %v5292 = vrot.slane %v5270, 7
    %v5293 = vsel %vm717, %v5291, %v5292
    %v5300 = vsel %vm717, 0.0, %v5288
    %v5301 = vsel %vm717, 0.0, %v5291
    %v5302 = vsel %vm717, %v5289, 0.0
    %v5303 = vsel %vm717, %v5292, 0.0
    %v5308 = vrot.slane %v5300, 1
    %v5309 = vrot.slane %v5290, 1
    %v5310 = vsel %vm738, %v5308, %v5309
    %v5311 = vrot.slane %v5302, 1
    %v5312 = vsel %vm738, %v5309, %v5311
    %v5313 = vrot.slane %v5301, 1
    %v5314 = vrot.slane %v5293, 1
    %v5315 = vsel %vm738, %v5313, %v5314
    %v5316 = vrot.slane %v5303, 1
    %v5317 = vsel %vm738, %v5314, %v5316
    %5318 = vrot.lane.b32.xlu0 %v5310, 32
    %v5319 = vpop.permute.xlu0 %5318
    %5320 = vrot.lane.b32.xlu0 %v5312, 32
    %v5321 = vpop.permute.xlu0 %5320
    %5322 = vrot.lane.b32.xlu0 %v5315, 32
    %v5323 = vpop.permute.xlu0 %5322
    %5324 = vrot.lane.b32.xlu0 %v5317, 32
    %v5325 = vpop.permute.xlu0 %5324
    %v5330 = vrot.slane %v5300, 2
    %v5331 = vrot.slane %v5290, 2
    %v5332 = vsel %vm761, %v5330, %v5331
    %v5333 = vrot.slane %v5302, 2
    %v5334 = vsel %vm761, %v5331, %v5333
    %v5335 = vrot.slane %v5301, 2
    %v5336 = vrot.slane %v5293, 2
    %v5337 = vsel %vm761, %v5335, %v5336
    %v5338 = vrot.slane %v5303, 2
    %v5339 = vsel %vm761, %v5336, %v5338
    %5340 = vrot.lane.b32.xlu0 %v5332, 64
    %v5341 = vpop.permute.xlu0 %5340
    %5342 = vrot.lane.b32.xlu0 %v5334, 64
    %v5343 = vpop.permute.xlu0 %5342
    %5344 = vrot.lane.b32.xlu0 %v5337, 64
    %v5345 = vpop.permute.xlu0 %5344
    %5346 = vrot.lane.b32.xlu0 %v5339, 64
    %v5347 = vpop.permute.xlu0 %5346
    %v5352 = vsel %vm1018, %v5300, %v5319
    %v5353 = vsel %vm1018, %v5290, %v5321
    %v5354 = vsel %vm1018, %v5301, %v5323
    %v5355 = vsel %vm1018, %v5293, %v5325
    %v5356 = vsel %vm1023, %v5352, %v5341
    %v5357 = vsel %vm1023, %v5353, %v5343
    %v5358 = vsel %vm1023, %v5354, %v5345
    %v5359 = vsel %vm1023, %v5355, %v5347
    %v5361 = vsel %vm1028, %v5356, 0
    %v5364 = vsel %vm1028, %v5357, 0
    %v5367 = vsel %vm1028, %v5358, 0
    %v5370 = vsel %vm1028, %v5359, 0
    %5372 = vmatprep.subr.mxu0 0.0
    %5373 = vmatpush1.msra.mxu0 0.0
    %5374 = vmatprep.subr.mxu0 0.0
    %5375 = vmatpush1.msra.mxu0 0.0
    %5376 = vmatprep.subr.mxu0 0.0
    %5377 = vmatpush1.msra.mxu0 0.0
    %5378 = vmatprep.subr.mxu0 0.0
    %5379 = vmatpush1.msra.mxu0 0.0
    %5380 = vmatprep.subr.mxu0 0.0
    %5381 = vmatpush1.msra.mxu0 %v5282
    %5382 = vmatprep.subr.mxu0 0.0
    %5383 = vmatpush1.msra.mxu0 %v5281
    %5384 = vmatprep.subr.mxu0 0.0
    %5385 = vmatpush1.msra.mxu0 %v5280
    %5386 = vmatprep.subr.mxu0 0.0
    %5387 = vmatpush1.msra.mxu0 %v5279
    %5388 = vmatprep.subr.mxu0 0.0
    %5389 = vmatpush1.msra.mxu0 %v5278
    %5390 = vmatprep.subr.mxu0 0.0
    %5391 = vmatpush1.msra.mxu0 %v5277
    %5392 = vmatprep.subr.mxu0 0.0
    %5393 = vmatpush1.msra.mxu0 %v5276
    %5394 = vmatprep.subr.mxu0 0.0
    %5395 = vmatpush1.msra.mxu0 %v5275
    %5396 = vmatprep.subr.mxu0 0.0
    %5397 = vmatpush1.msra.mxu0 %v5274
    %5398 = vmatprep.subr.mxu0 0.0
    %5399 = vmatpush1.msra.mxu0 %v5273
    %5400 = vmatprep.subr.mxu0 0.0
    %5401 = vmatpush1.msra.mxu0 %v5272
    %5402 = vmatprep.subr.mxu0 0.0
    %5403 = vmatpush1.msra.mxu0 %v5271
    %5404 = vmatprep.subr.mxu0 0.0
    %5405 = vmatpush2.msra.mxu0 0.0
    %5406 = vmatprep.subr.mxu0 0.0
    %5407 = vmatpush2.msra.mxu0 0.0
    %5408 = vmatprep.subr.mxu0 0.0
    %5409 = vmatpush2.msra.mxu0 0.0
    %5410 = vmatprep.subr.mxu0 0.0
    %5411 = vmatpush2.msra.mxu0 0.0
    %5412 = vmatprep.subr.mxu0 0.0
    %5413 = vmatpush2.msra.mxu0 0.0
    %5414 = vmatprep.subr.mxu0 0.0
    %5415 = vmatpush2.msra.mxu0 0.0
    %5416 = vmatprep.subr.mxu0 0.0
    %5417 = vmatpush2.msra.mxu0 0.0
    %5418 = vmatprep.subr.mxu0 0.0
    %5419 = vmatpush2.msra.mxu0 0.0
    %5420 = vmatprep.subr.mxu0 0.0
    %5421 = vmatpush2.msra.mxu0 0.0
    %5422 = vmatprep.subr.mxu0 0.0
    %5423 = vmatpush2.msra.mxu0 0.0
    %5424 = vmatprep.subr.mxu0 0.0
    %5425 = vmatpush2.msra.mxu0 0.0
    %5426 = vmatprep.subr.mxu0 0.0
    %5427 = vmatpush2.msra.mxu0 0.0
    %5428 = vmatprep.subr.mxu0 0.0
    %5429 = vmatpush2.msra.mxu0 0.0
    %5430 = vmatprep.subr.mxu0 0.0
    %5431 = vmatpush2.msra.mxu0 0.0
    %5432 = vmatprep.subr.mxu0 0.0
    %5433 = vmatpush2.msra.mxu0 0.0
    %5434 = vmatprep.subr.mxu0 0.0
    %5435 = vmatpush2.msra.mxu0 0.0
    %5436 = vmatprep.mubr.f32.mxu0 0.0
    %5437 = vmatmul.mubr.f32.gmra.mxu0 %v5361
    %v5438 = vpop.f32.mrf.mxu0
    %v5439 = vadd.f32 0.0, %v5438
    %v5440 = vpop.f32.mrf.mxu0
    %5441 = vmatprep.mubr.f32.mxu0 0.0
    %5442 = vmatmul.mubr.f32.gmra.mxu0 %v5364
    %v5443 = vpop.f32.mrf.mxu0
    %v5444 = vadd.f32 0.0, %v5443
    %v5445 = vpop.f32.mrf.mxu0
    %5446 = vmatprep.mubr.f32.mxu0 0.0
    %5447 = vmatmul.mubr.f32.gmra.mxu0 %v5367
    %v5448 = vpop.f32.mrf.mxu0
    %v5449 = vadd.f32 0.0, %v5448
    %v5450 = vpop.f32.mrf.mxu0
    %5451 = vmatprep.mubr.f32.mxu0 0.0
    %5452 = vmatmul.mubr.f32.gmra.mxu0 %v5370
    %v5453 = vpop.f32.mrf.mxu0
    %v5454 = vadd.f32 0.0, %v5453
    %v5455 = vpop.f32.mrf.mxu0
    %5456 = vdwg.mxu0
    %v5458 = vlaneseq
    %v5459 = vshrl.u32 %v5458, 7
    %v5460 = vsub.s32 0, %v5459
    %v5461 = vrot.slane %v5283, %v5460
    %v5463 = vadd.f32 %v5439, %v5461
    %v5464 = vadd.f32 %v5444, %v5461
    %v5465 = vadd.f32 %v5449, %v5461
    %v5466 = vadd.f32 %v5454, %v5461
    %v5467 = vmax.f32 %v5463, 0.0
    %v5468 = vmax.f32 %v5464, 0.0
    %v5469 = vmax.f32 %v5465, 0.0
    %v5470 = vmax.f32 %v5466, 0.0
    %v5471 = vld [vmem:[#allocation35] sm:$0xff]
    %v5472 = vld [vmem:[#allocation35 + $0x8] sm:$0xff]
    %v5473 = vld [vmem:[#allocation35 + $0x10] sm:$0xff]
    %v5474 = vld [vmem:[#allocation35 + $0x18] sm:$0xff]
    %v5475 = vld [vmem:[#allocation35 + $0x20] sm:$0xff]
    %v5476 = vld [vmem:[#allocation35 + $0x28] sm:$0xff]
    %v5477 = vld [vmem:[#allocation35 + $0x30] sm:$0xff]
    %v5478 = vld [vmem:[#allocation35 + $0x38] sm:$0xff]
    %v5479 = vld [vmem:[#allocation35 + $0x40] sm:$0xff]
    %v5480 = vld [vmem:[#allocation35 + $0x48] sm:$0xff]
    %v5481 = vld [vmem:[#allocation35 + $0x50] sm:$0xff]
    %v5482 = vld [vmem:[#allocation35 + $0x58] sm:$0xff]
    %v5483 = vld [vmem:[#allocation37] sm:$0x1]
    %v5488 = vrot.slane %v5467, 7
    %v5489 = vrot.slane %v5468, 7
    %v5490 = vsel %vm717, %v5488, %v5489
    %v5491 = vrot.slane %v5469, 7
    %v5492 = vrot.slane %v5470, 7
    %v5493 = vsel %vm717, %v5491, %v5492
    %v5500 = vsel %vm717, 0.0, %v5488
    %v5501 = vsel %vm717, 0.0, %v5491
    %v5502 = vsel %vm717, %v5489, 0.0
    %v5503 = vsel %vm717, %v5492, 0.0
    %v5508 = vrot.slane %v5500, 1
    %v5509 = vrot.slane %v5490, 1
    %v5510 = vsel %vm738, %v5508, %v5509
    %v5511 = vrot.slane %v5502, 1
    %v5512 = vsel %vm738, %v5509, %v5511
    %v5513 = vrot.slane %v5501, 1
    %v5514 = vrot.slane %v5493, 1
    %v5515 = vsel %vm738, %v5513, %v5514
    %v5516 = vrot.slane %v5503, 1
    %v5517 = vsel %vm738, %v5514, %v5516
    %5518 = vrot.lane.b32.xlu0 %v5510, 32
    %v5519 = vpop.permute.xlu0 %5518
    %5520 = vrot.lane.b32.xlu0 %v5512, 32
    %v5521 = vpop.permute.xlu0 %5520
    %5522 = vrot.lane.b32.xlu0 %v5515, 32
    %v5523 = vpop.permute.xlu0 %5522
    %5524 = vrot.lane.b32.xlu0 %v5517, 32
    %v5525 = vpop.permute.xlu0 %5524
    %v5530 = vrot.slane %v5500, 2
    %v5531 = vrot.slane %v5490, 2
    %v5532 = vsel %vm761, %v5530, %v5531
    %v5533 = vrot.slane %v5502, 2
    %v5534 = vsel %vm761, %v5531, %v5533
    %v5535 = vrot.slane %v5501, 2
    %v5536 = vrot.slane %v5493, 2
    %v5537 = vsel %vm761, %v5535, %v5536
    %v5538 = vrot.slane %v5503, 2
    %v5539 = vsel %vm761, %v5536, %v5538
    %5540 = vrot.lane.b32.xlu0 %v5532, 64
    %v5541 = vpop.permute.xlu0 %5540
    %5542 = vrot.lane.b32.xlu0 %v5534, 64
    %v5543 = vpop.permute.xlu0 %5542
    %5544 = vrot.lane.b32.xlu0 %v5537, 64
    %v5545 = vpop.permute.xlu0 %5544
    %5546 = vrot.lane.b32.xlu0 %v5539, 64
    %v5547 = vpop.permute.xlu0 %5546
    %v5552 = vsel %vm1018, %v5500, %v5519
    %v5553 = vsel %vm1018, %v5490, %v5521
    %v5554 = vsel %vm1018, %v5501, %v5523
    %v5555 = vsel %vm1018, %v5493, %v5525
    %v5556 = vsel %vm1023, %v5552, %v5541
    %v5557 = vsel %vm1023, %v5553, %v5543
    %v5558 = vsel %vm1023, %v5554, %v5545
    %v5559 = vsel %vm1023, %v5555, %v5547
    %v5561 = vsel %vm1028, %v5556, 0
    %v5564 = vsel %vm1028, %v5557, 0
    %v5567 = vsel %vm1028, %v5558, 0
    %v5570 = vsel %vm1028, %v5559, 0
    %5572 = vmatprep.subr.mxu0 0.0
    %5573 = vmatpush1.msra.mxu0 0.0
    %5574 = vmatprep.subr.mxu0 0.0
    %5575 = vmatpush1.msra.mxu0 0.0
    %5576 = vmatprep.subr.mxu0 0.0
    %5577 = vmatpush1.msra.mxu0 0.0
    %5578 = vmatprep.subr.mxu0 0.0
    %5579 = vmatpush1.msra.mxu0 0.0
    %5580 = vmatprep.subr.mxu0 0.0
    %5581 = vmatpush1.msra.mxu0 %v5482
    %5582 = vmatprep.subr.mxu0 0.0
    %5583 = vmatpush1.msra.mxu0 %v5481
    %5584 = vmatprep.subr.mxu0 0.0
    %5585 = vmatpush1.msra.mxu0 %v5480
    %5586 = vmatprep.subr.mxu0 0.0
    %5587 = vmatpush1.msra.mxu0 %v5479
    %5588 = vmatprep.subr.mxu0 0.0
    %5589 = vmatpush1.msra.mxu0 %v5478
    %5590 = vmatprep.subr.mxu0 0.0
    %5591 = vmatpush1.msra.mxu0 %v5477
    %5592 = vmatprep.subr.mxu0 0.0
    %5593 = vmatpush1.msra.mxu0 %v5476
    %5594 = vmatprep.subr.mxu0 0.0
    %5595 = vmatpush1.msra.mxu0 %v5475
    %5596 = vmatprep.subr.mxu0 0.0
    %5597 = vmatpush1.msra.mxu0 %v5474
    %5598 = vmatprep.subr.mxu0 0.0
    %5599 = vmatpush1.msra.mxu0 %v5473
    %5600 = vmatprep.subr.mxu0 0.0
    %5601 = vmatpush1.msra.mxu0 %v5472
    %5602 = vmatprep.subr.mxu0 0.0
    %5603 = vmatpush1.msra.mxu0 %v5471
    %5604 = vmatprep.subr.mxu0 0.0
    %5605 = vmatpush2.msra.mxu0 0.0
    %5606 = vmatprep.subr.mxu0 0.0
    %5607 = vmatpush2.msra.mxu0 0.0
    %5608 = vmatprep.subr.mxu0 0.0
    %5609 = vmatpush2.msra.mxu0 0.0
    %5610 = vmatprep.subr.mxu0 0.0
    %5611 = vmatpush2.msra.mxu0 0.0
    %5612 = vmatprep.subr.mxu0 0.0
    %5613 = vmatpush2.msra.mxu0 0.0
    %5614 = vmatprep.subr.mxu0 0.0
    %5615 = vmatpush2.msra.mxu0 0.0
    %5616 = vmatprep.subr.mxu0 0.0
    %5617 = vmatpush2.msra.mxu0 0.0
    %5618 = vmatprep.subr.mxu0 0.0
    %5619 = vmatpush2.msra.mxu0 0.0
    %5620 = vmatprep.subr.mxu0 0.0
    %5621 = vmatpush2.msra.mxu0 0.0
    %5622 = vmatprep.subr.mxu0 0.0
    %5623 = vmatpush2.msra.mxu0 0.0
    %5624 = vmatprep.subr.mxu0 0.0
    %5625 = vmatpush2.msra.mxu0 0.0
    %5626 = vmatprep.subr.mxu0 0.0
    %5627 = vmatpush2.msra.mxu0 0.0
    %5628 = vmatprep.subr.mxu0 0.0
    %5629 = vmatpush2.msra.mxu0 0.0
    %5630 = vmatprep.subr.mxu0 0.0
    %5631 = vmatpush2.msra.mxu0 0.0
    %5632 = vmatprep.subr.mxu0 0.0
    %5633 = vmatpush2.msra.mxu0 0.0
    %5634 = vmatprep.subr.mxu0 0.0
    %5635 = vmatpush2.msra.mxu0 0.0
    %5636 = vmatprep.mubr.f32.mxu0 0.0
    %5637 = vmatmul.mubr.f32.gmra.mxu0 %v5561
    %v5638 = vpop.f32.mrf.mxu0
    %v5639 = vadd.f32 0.0, %v5638
    %v5640 = vpop.f32.mrf.mxu0
    %5641 = vmatprep.mubr.f32.mxu0 0.0
    %5642 = vmatmul.mubr.f32.gmra.mxu0 %v5564
    %v5643 = vpop.f32.mrf.mxu0
    %v5644 = vadd.f32 0.0, %v5643
    %v5645 = vpop.f32.mrf.mxu0
    %5646 = vmatprep.mubr.f32.mxu0 0.0
    %5647 = vmatmul.mubr.f32.gmra.mxu0 %v5567
    %v5648 = vpop.f32.mrf.mxu0
    %v5649 = vadd.f32 0.0, %v5648
    %v5650 = vpop.f32.mrf.mxu0
    %5651 = vmatprep.mubr.f32.mxu0 0.0
    %5652 = vmatmul.mubr.f32.gmra.mxu0 %v5570
    %v5653 = vpop.f32.mrf.mxu0
    %v5654 = vadd.f32 0.0, %v5653
    %v5655 = vpop.f32.mrf.mxu0
    %5656 = vdwg.mxu0
    %v5658 = vlaneseq
    %v5659 = vshrl.u32 %v5658, 7
    %v5660 = vsub.s32 0, %v5659
    %v5661 = vrot.slane %v5483, %v5660
    %v5663 = vadd.f32 %v5639, %v5661
    %v5664 = vadd.f32 %v5644, %v5661
    %v5665 = vadd.f32 %v5649, %v5661
    %v5666 = vadd.f32 %v5654, %v5661
    %5667 = vst.msk [vmem:[%s105] sm:$0xff] %vm784, %v5663
    %5668 = vst.msk [vmem:[%s105 + $0x8] sm:$0xff] %vm784, %v5664
    %5669 = vst.msk [vmem:[%s105 + $0x10] sm:$0xff] %vm784, %v5665
    %5670 = vst.msk [vmem:[%s105 + $0x18] sm:$0xff] %vm784, %v5666
    // Predicated region
    $region366: #{_lambda_.1} parent=1 // pred_check
      _
    $region367: #{_lambda_.1} parent=1 // pred_check_branch
      %5672 = sbr.rel (0) target = $region369
    $region368: #{_lambda_.1} parent=1 // pred_region
      _
    $region369: #{_lambda_.1} parent=1 // pred_fallthru
      _
    // Predicated region
    $region370: #{_lambda_.1} parent=1 // pred_check
      _
    $region371: #{_lambda_.1} parent=1 // pred_check_branch
      %5674 = sbr.rel (0) target = $region373
    $region372: #{_lambda_.1} parent=1 // pred_region
      _
    $region373: #{_lambda_.1} parent=1 // pred_fallthru
      _
    // Predicated region
    $region374: #{_lambda_.1} parent=1 // pred_check
      _
    $region375: #{_lambda_.1} parent=1 // pred_check_branch
      %5676 = sbr.rel (0) target = $region377
    $region376: #{_lambda_.1} parent=1 // pred_region
      %s5678 = ssub.s32 16, 16
      %5679 = vsyncadd [#allocation4], %s5678
      %s5681 = sshll.u32 [#allocation62], 4
      %s5682 = int_to_ptr.vmem [resolvable:$true] %s5681
      %5684 = dma.vmem_to_hbm [thread:$0]  %s5682, 16, %s109, [#allocation4]
    $region377: #{_lambda_.1} parent=1 // pred_fallthru
      _
    // Predicated region
    $region378: #{_lambda_.1} parent=1 // pred_check
      _
    $region379: #{_lambda_.1} parent=1 // pred_check_branch
      %5686 = sbr.rel (0) target = $region381
    $region380: #{_lambda_.1} parent=1 // pred_region
      %s5688 = ssub.s32 128, 128
      %5689 = vsyncadd [#allocation64], %s5688
      %s5690 = sshll.u32 [#allocation63], 4
      %s5691 = int_to_ptr.vmem [resolvable:$true] %s5690
      %5696 = dma.vmem_to_hbm [thread:$0]  %s5691, 128, %s111, [#allocation64], 64, 64, 4
    $region381: #{_lambda_.1} parent=1 // pred_fallthru
      _
    // Predicated region
    $region382: #{_lambda_.1} parent=1 // pred_check
      _
    $region383: #{_lambda_.1} parent=1 // pred_check_branch
      %5698 = sbr.rel (0) target = $region385
    $region384: #{_lambda_.1} parent=1 // pred_region
      _
    $region385: #{_lambda_.1} parent=1 // pred_fallthru
      _
    // Predicated region
    $region386: #{_lambda_.1} parent=1 // pred_check
      _
    $region387: #{_lambda_.1} parent=1 // pred_check_branch
      %5700 = sbr.rel (0) target = $region389
    $region388: #{_lambda_.1} parent=1 // pred_region
      _
    $region389: #{_lambda_.1} parent=1 // pred_fallthru
      _
    // Predicated region
    $region390: #{_lambda_.1} parent=1 // pred_check
      _
    $region391: #{_lambda_.1} parent=1 // pred_check_branch
      %5702 = sbr.rel (0) target = $region393
    $region392: #{_lambda_.1} parent=1 // pred_region
      %5703 = dma.done [#allocation4], 16
    $region393: #{_lambda_.1} parent=1 // pred_fallthru
      _
    // Predicated region
    $region394: #{_lambda_.1} parent=1 // pred_check
      _
    $region395: #{_lambda_.1} parent=1 // pred_check_branch
      %5705 = sbr.rel (0) target = $region397
    $region396: #{_lambda_.1} parent=1 // pred_region
      %5706 = dma.done [#allocation64], 128
    $region397: #{_lambda_.1} parent=1 // pred_fallthru
      _
    %5707 = vsyncpa [#allocation3], 1
    %5708 = vsyncpa [#allocation6], 1
    %5709 = vsyncpa [#allocation9], 1
    %5710 = vsyncpa [#allocation12], 1
    %5711 = vsyncpa [#allocation15], 1
    %5712 = vsyncpa [#allocation18], 1
    %5713 = vsyncpa [#allocation21], 1
    %5714 = vsyncpa [#allocation24], 1
    %5715 = vsyncpa [#allocation27], 1
    %5716 = vsyncpa [#allocation30], 1
    %5717 = vsyncpa [#allocation33], 1
    %5718 = vsyncpa [#allocation36], 1
    %5719 = vsyncpa [#allocation39], 1
    %5720 = vsyncpa [#allocation42], 1
    %5721 = vsyncpa [#allocation45], 1
    %5722 = vsyncpa [#allocation48], 1
    %5723 = vsyncpa [#allocation51], 1
    %5724 = vsyncpa [#allocation54], 1
    %5725 = vsyncpa [#allocation57], 1
    %5726 = vsyncpa [#allocation60], 1
    %5727 = vsyncpa [#allocation4], 1
    %5728 = vsyncpa [#allocation64], 1

</llo_original>
